<compile_context>
chip_gen: v7x
topology: tpu7x:2x2x1
jax: 0.10.0
libtpu: 0.0.40
codegen_flags: <defaults>
</compile_context>

<pallas_src>
import functools

import jax
import jax.numpy as jnp
from jax.experimental import pallas as pl
from jax.experimental.pallas import tpu as pltpu


# ---------------------------------------------------------------------------
# math helpers shared by the kernel and the pure-JAX reference
# ---------------------------------------------------------------------------
def _layernorm(x, gamma, beta, eps=1e-5):
    mean = jnp.mean(x, axis=-1, keepdims=True)
    var = jnp.mean(jnp.square(x - mean), axis=-1, keepdims=True)
    return (x - mean) * jax.lax.rsqrt(var + eps) * gamma + beta


# ---------------------------------------------------------------------------
# Pallas kernel: one grid step = one block of Bt batch elements
# ---------------------------------------------------------------------------
def decoder_block_kernel(num_heads, compute_dtype,
                         valid_ref,                      # SMEM (B,) int32 (scalar prefetch)
                         x_ref, enc_ref,                 # (Bt,T,D), (Bt,S,D)
                         wqkv1_ref, wo1_ref, g1_ref, b1_ref,
                         wq2_ref, wkv2_ref, wo2_ref, g2_ref, b2_ref,
                         wf1_ref, bf1_ref, wf2_ref, bf2_ref, g3_ref, b3_ref,
                         out_ref,
                         qh_scr, kh_scr, vh_scr, ke_scr, ve_scr):
    blk = pl.program_id(0)
    Bt, T, D = x_ref.shape
    S = enc_ref.shape[1]
    H = num_heads
    hd = D // H
    N = Bt * T
    cdt = compute_dtype
    scale = 1.0 / float(hd) ** 0.5

    # Flatten (Bt, T, D) -> (Bt*T, D): only leading/sublane dims are regrouped,
    # the lane (hidden) dim is untouched, so projections & FFN see M = Bt*T.
    x = x_ref[...].reshape(N, D).astype(jnp.float32)
    enc = enc_ref[...].reshape(Bt * S, D)

    def mm(a, w_ref):
        # MXU matmul; operands in compute dtype, f32 accumulation.
        return jnp.dot(a.astype(cdt), w_ref[...],
                       preferred_element_type=jnp.float32)

    def split_heads(mat2d, col0, seq, dst):
        # (Bt*seq, >=col0+D) f32 -> dst[(b*H+h)] = (seq, hd) tile.  This is the
        # head relayout done through scratch memory (data movement only; all
        # matmul / softmax work below is batched across heads).
        for b in range(Bt):
            rows = mat2d[b * seq:(b + 1) * seq, :]
            for h in range(H):
                dst[b * H + h] = rows[:, col0 + h * hd: col0 + (h + 1) * hd].astype(dst.dtype)

    def merge_heads(ctx):
        # (Bt*H, T, hd) -> (Bt*T, D) via lane-axis concat per batch element.
        outs = []
        for b in range(Bt):
            outs.append(jnp.concatenate([ctx[b * H + h] for h in range(H)], axis=-1))
        return outs[0] if Bt == 1 else jnp.concatenate(outs, axis=0)

    def attend(q_scr_, k_scr_, v_scr_, mask):
        # Batched over the (Bt*H) leading axis; mask/softmax applied once.
        s = jnp.einsum('bqd,bkd->bqk', q_scr_[...], k_scr_[...],
                       preferred_element_type=jnp.float32) * scale
        s = jnp.where(mask, s, -1e6)                       # d2l masked_softmax
        s = s - jnp.max(s, axis=-1, keepdims=True)
        p = jnp.exp(s)
        p = p * pl.reciprocal(jnp.sum(p, axis=-1, keepdims=True), approx=True)
        return jnp.einsum('bqk,bkd->bqd', p.astype(v_scr_.dtype), v_scr_[...],
                          preferred_element_type=jnp.float32)

    # --- 1. masked multi-head self-attention (causal dec_valid_lens) --------
    qkv = mm(x, wqkv1_ref)                                 # fused QKV: (N, 3D)
    split_heads(qkv, 0 * D, T, qh_scr)
    split_heads(qkv, 1 * D, T, kh_scr)
    split_heads(qkv, 2 * D, T, vh_scr)

    qi = jax.lax.broadcasted_iota(jnp.int32, (1, T, T), 1)
    ki = jax.lax.broadcasted_iota(jnp.int32, (1, T, T), 2)
    causal = ki <= qi                                      # broadcast over Bt*H

    ctx1 = attend(qh_scr, kh_scr, vh_scr, causal)          # (Bt*H, T, hd)
    x2 = mm(merge_heads(ctx1), wo1_ref)                    # (N, D)
    y = _layernorm(x2 + x, g1_ref[...], b1_ref[...])

    # --- 2. encoder-decoder cross attention (enc_valid_lens mask) -----------
    q2 = mm(y, wq2_ref)                                    # (N, D)
    kv2 = mm(enc, wkv2_ref)                                # fused K/V: (Bt*S, 2D)
    split_heads(q2, 0, T, qh_scr)                          # reuse query scratch
    split_heads(kv2, 0 * D, S, ke_scr)
    split_heads(kv2, 1 * D, S, ve_scr)

    si = jax.lax.broadcasted_iota(jnp.int32, (1, T, S), 2)
    if Bt == 1:
        enc_mask = si < valid_ref[blk]                     # (1,T,S) broadcasts over H
    else:
        enc_mask = jnp.concatenate(
            [si < valid_ref[blk * Bt + b] for b in range(Bt) for _ in range(H)],
            axis=0)                                        # (Bt*H, T, S)

    ctx2 = attend(qh_scr, ke_scr, ve_scr, enc_mask)
    y2 = mm(merge_heads(ctx2), wo2_ref)
    z = _layernorm(y2 + y, g2_ref[...], b2_ref[...])

    # --- 3. position-wise FFN ------------------------------------------------
    h1 = jnp.maximum(mm(z, wf1_ref) + bf1_ref[...], 0.0)
    f = mm(h1, wf2_ref) + bf2_ref[...]
    o = _layernorm(f + z, g3_ref[...], b3_ref[...])        # (N, D)

    # --- 4. lane-dense store: pack each batch element's (T, D) rows into one
    #        (1, T*D) row so the output last dim is a multiple of 128 (avoids
    #        masked partial stores).  Built with row-slices + lane-concat
    #        because general lane-changing reshapes are not reliably lowered.
    rows = []
    for b in range(Bt):
        rows.append(jnp.concatenate(
            [o[b * T + t: b * T + t + 1, :] for t in range(T)], axis=-1))  # (1, T*D)
    packed = rows[0][None] if Bt == 1 else jnp.stack(rows, axis=0)          # (Bt,1,T*D)
    out_ref[...] = packed


# ---------------------------------------------------------------------------
# wrapper
# ---------------------------------------------------------------------------
def _default_block_b(B):
    # Keep >=2 grid steps (v7x has 2 TensorCores) while blocking batch when possible.
    if B >= 2 and B % 2 == 0:
        return B // 2
    return 1


def decoder_block(x, enc_outputs, enc_valid_lens, params, num_heads,
                  *, compute_dtype=jnp.float32, block_b=None):
    """Returns (out, key_values) where key_values = X (state[2][i] update)."""
    B, T, D = x.shape
    S = enc_outputs.shape[1]
    assert D % num_heads == 0
    hd = D // num_heads

    Bt = _default_block_b(B) if block_b is None else block_b
    assert B % Bt == 0
    grid = (B // Bt,)

    cdt = compute_dtype
    # Packed / pre-cast matmul weights (bf16 optional); layernorm & bias params stay f32.
    wqkv1 = jnp.concatenate([params["wq1"], params["wk1"], params["wv1"]], axis=1).astype(cdt)
    wkv2 = jnp.concatenate([params["wk2"], params["wv2"]], axis=1).astype(cdt)
    weights = [
        wqkv1, params["wo1"].astype(cdt), params["g1"], params["b1"],
        params["wq2"].astype(cdt), wkv2, params["wo2"].astype(cdt),
        params["g2"], params["b2"],
        params["wf1"].astype(cdt), params["bf1"],
        params["wf2"].astype(cdt), params["bf2"],
        params["g3"], params["b3"],
    ]

    x_spec = pl.BlockSpec((Bt, T, D), lambda i, v: (i, 0, 0))
    enc_spec = pl.BlockSpec((Bt, S, D), lambda i, v: (i, 0, 0))
    w_specs = [pl.BlockSpec(w.shape, lambda i, v: (0, 0)) for w in weights]
    out_spec = pl.BlockSpec((Bt, 1, T * D), lambda i, v: (i, 0, 0))

    scratch = [
        pltpu.VMEM((Bt * num_heads, T, hd), cdt),   # q heads (self & cross)
        pltpu.VMEM((Bt * num_heads, T, hd), cdt),   # self-attn k heads
        pltpu.VMEM((Bt * num_heads, T, hd), cdt),   # self-attn v heads
        pltpu.VMEM((Bt * num_heads, S, hd), cdt),   # cross-attn k heads
        pltpu.VMEM((Bt * num_heads, S, hd), cdt),   # cross-attn v heads
    ]

    kernel = functools.partial(decoder_block_kernel, num_heads, cdt)
    out = pl.pallas_call(
        kernel,
        out_shape=jax.ShapeDtypeStruct((B, 1, T * D), jnp.float32),
        grid_spec=pltpu.PrefetchScalarGridSpec(
            num_scalar_prefetch=1,
            grid=grid,
            in_specs=[x_spec, enc_spec] + w_specs,
            out_specs=out_spec,
            scratch_shapes=scratch,
        ),
        compiler_params=pltpu.CompilerParams(
            dimension_semantics=("parallel",),
            # Explicit VMEM budget (resident weights + double-buffered blocks);
            # keeps headroom on v7x's smaller 64 MiB VMEM at larger sizes.
            vmem_limit_bytes=32 * 1024 * 1024,
        ),
    )(enc_valid_lens.astype(jnp.int32), x, enc_outputs, *weights)

    out = out.reshape(B, T, D)          # undo the lane-dense packing
    key_values = x                      # training path: state[2][i] was None -> key_values = X
    return out, key_values


# ---------------------------------------------------------------------------
# pure-JAX reference (same math, exact softmax division, f32)
# ---------------------------------------------------------------------------
def ref_decoder_block(x, enc, valid, params, num_heads):
    B, T, D = x.shape
    S = enc.shape[1]
    H = num_heads
    hd = D // H

    def mha(q_in, kv_in, wq, wk, wv, wo, mask):
        def split(a):
            L = a.shape[1]
            return a.reshape(B, L, H, hd).transpose(0, 2, 1, 3)   # (B,H,L,hd)
        Qh = split(q_in @ wq)
        Kh = split(kv_in @ wk)
        Vh = split(kv_in @ wv)
        s = jnp.einsum('bhqd,bhkd->bhqk', Qh, Kh) / (hd ** 0.5)
        s = jnp.where(mask, s, -1e6)
        p = jax.nn.softmax(s, axis=-1)
        o = jnp.einsum('bhqk,bhkd->bhqd', p, Vh)
        o = o.transpose(0, 2, 1, 3).reshape(B, -1, D)
        return o @ wo

    qi = jnp.arange(T)[:, None]
    ki = jnp.arange(T)[None, :]
    causal = (ki <= qi)[None, None]                                  # (1,1,T,T)
    x2 = mha(x, x, params["wq1"], params["wk1"], params["wv1"], params["wo1"], causal)
    y = _layernorm(x2 + x, params["g1"], params["b1"])

    ek = jnp.arange(S)[None, None, None, :]                          # (1,1,1,S)
    enc_mask = ek < valid[:, None, None, None]
    y2 = mha(y, enc, params["wq2"], params["wk2"], params["wv2"], params["wo2"], enc_mask)
    z = _layernorm(y2 + y, params["g2"], params["b2"])

    h = jnp.maximum(z @ params["wf1"] + params["bf1"], 0.0)
    f = h @ params["wf2"] + params["bf2"]
    return _layernorm(f + z, params["g3"], params["b3"])


# ---------------------------------------------------------------------------
def init_params(key, num_hiddens, ffn_num_hiddens):
    D, F = num_hiddens, ffn_num_hiddens
    keys = jax.random.split(key, 12)
    s = 0.1
    return {
        # attention1 (masked self) — W_q/W_k/W_v/W_o stored (in, out), no bias (d2l default)
        "wq1": jax.random.normal(keys[0], (D, D), jnp.float32) * s,
        "wk1": jax.random.normal(keys[1], (D, D), jnp.float32) * s,
        "wv1": jax.random.normal(keys[2], (D, D), jnp.float32) * s,
        "wo1": jax.random.normal(keys[3], (D, D), jnp.float32) * s,
        "g1": jnp.ones((1, D), jnp.float32), "b1": jnp.zeros((1, D), jnp.float32),
        # attention2 (cross)
        "wq2": jax.random.normal(keys[4], (D, D), jnp.float32) * s,
        "wk2": jax.random.normal(keys[5], (D, D), jnp.float32) * s,
        "wv2": jax.random.normal(keys[6], (D, D), jnp.float32) * s,
        "wo2": jax.random.normal(keys[7], (D, D), jnp.float32) * s,
        "g2": jnp.ones((1, D), jnp.float32), "b2": jnp.zeros((1, D), jnp.float32),
        # position-wise FFN (with biases, like nn.Linear)
        "wf1": jax.random.normal(keys[8], (D, F), jnp.float32) * s,
        "bf1": jax.random.normal(keys[9], (1, F), jnp.float32) * s,
        "wf2": jax.random.normal(keys[10], (F, D), jnp.float32) * s,
        "bf2": jax.random.normal(keys[11], (1, D), jnp.float32) * s,
        "g3": jnp.ones((1, D), jnp.float32), "b3": jnp.zeros((1, D), jnp.float32),
    }


if __name__ == "__main__":
    # batch, dec steps, enc steps, hidden, heads, ffn hidden
    B, T, S, D, H, F = 2, 8, 8, 32, 4, 64

    key = jax.random.PRNGKey(0)
    kx, ke, kp = jax.random.split(key, 3)
    X = jax.random.normal(kx, (B, T, D), jnp.float32)
    enc_outputs = jax.random.normal(ke, (B, S, D), jnp.float32)
    enc_valid_lens = jnp.array([5, 8], jnp.int32)       # per-batch valid encoder lengths
    params = init_params(kp, D, F)

    ref = ref_decoder_block(X, enc_outputs, enc_valid_lens, params, H)

    # f32 weights.  Tolerance is looser than pure-f32 matching only because the
    # softmax denominator uses the EUP approximate reciprocal inside the kernel.
    out_f32, key_values = decoder_block(X, enc_outputs, enc_valid_lens, params, H,
                                        compute_dtype=jnp.float32)
    out_f32 = jax.block_until_ready(out_f32)
    assert out_f32.shape == (B, T, D)
    assert key_values.shape == X.shape
    assert jnp.allclose(out_f32, ref, rtol=1e-2, atol=1e-2), "f32 kernel mismatch vs reference"

    # bf16 matmul weights/operands (v6e/v7x MXU path), f32 accumulation and
    # f32 layernorm/softmax; checked loosely against the f32 reference.
    out_bf16, _ = decoder_block(X, enc_outputs, enc_valid_lens, params, H,
                                compute_dtype=jnp.bfloat16)
    out_bf16 = jax.block_until_ready(out_bf16)
    assert jnp.allclose(out_bf16, ref, rtol=5e-2, atol=5e-2), "bf16 kernel mismatch vs reference"

    print("KERNEL_OK")
</pallas_src>

<mosaic_0001>
module attributes {stable_mosaic.version = 11 : i64} {
  func.func @decoder_block_kernel(%arg0: i32, %arg1: memref<2xi32, #tpu.memory_space<smem>>, %arg2: memref<1x8x32xf32, #tpu.memory_space<vmem>>, %arg3: memref<1x8x32xf32, #tpu.memory_space<vmem>>, %arg4: memref<32x96xf32, #tpu.memory_space<vmem>>, %arg5: memref<32x32xf32, #tpu.memory_space<vmem>>, %arg6: memref<1x32xf32, #tpu.memory_space<vmem>>, %arg7: memref<1x32xf32, #tpu.memory_space<vmem>>, %arg8: memref<32x32xf32, #tpu.memory_space<vmem>>, %arg9: memref<32x64xf32, #tpu.memory_space<vmem>>, %arg10: memref<32x32xf32, #tpu.memory_space<vmem>>, %arg11: memref<1x32xf32, #tpu.memory_space<vmem>>, %arg12: memref<1x32xf32, #tpu.memory_space<vmem>>, %arg13: memref<32x64xf32, #tpu.memory_space<vmem>>, %arg14: memref<1x64xf32, #tpu.memory_space<vmem>>, %arg15: memref<64x32xf32, #tpu.memory_space<vmem>>, %arg16: memref<1x32xf32, #tpu.memory_space<vmem>>, %arg17: memref<1x32xf32, #tpu.memory_space<vmem>>, %arg18: memref<1x32xf32, #tpu.memory_space<vmem>>, %arg19: memref<1x1x256xf32, #tpu.memory_space<vmem>>, %arg20: memref<4x8x8xf32, #tpu.memory_space<vmem>>, %arg21: memref<4x8x8xf32, #tpu.memory_space<vmem>>, %arg22: memref<4x8x8xf32, #tpu.memory_space<vmem>>, %arg23: memref<4x8x8xf32, #tpu.memory_space<vmem>>, %arg24: memref<4x8x8xf32, #tpu.memory_space<vmem>>) attributes {dimension_semantics = [#tpu.dimension_semantics<parallel>], iteration_bounds = array<i64: 2>, scalar_prefetch = 1 : i64, scratch_operands = 5 : i64, tpu.core_type = #tpu.core_type<tc>, window_params = [{transform_indices = @transform_0, window_bounds = array<i64: 1, 8, 32>}, {transform_indices = @transform_1, window_bounds = array<i64: 1, 8, 32>}, {pipeline_mode = #tpu.pipeline_mode<synchronous>, transform_indices = @transform_2, window_bounds = array<i64: 32, 96>}, {pipeline_mode = #tpu.pipeline_mode<synchronous>, transform_indices = @transform_3, window_bounds = array<i64: 32, 32>}, {pipeline_mode = #tpu.pipeline_mode<synchronous>, transform_indices = @transform_4, window_bounds = array<i64: 1, 32>}, {pipeline_mode = #tpu.pipeline_mode<synchronous>, transform_indices = @transform_5, window_bounds = array<i64: 1, 32>}, {pipeline_mode = #tpu.pipeline_mode<synchronous>, transform_indices = @transform_6, window_bounds = array<i64: 32, 32>}, {pipeline_mode = #tpu.pipeline_mode<synchronous>, transform_indices = @transform_7, window_bounds = array<i64: 32, 64>}, {pipeline_mode = #tpu.pipeline_mode<synchronous>, transform_indices = @transform_8, window_bounds = array<i64: 32, 32>}, {pipeline_mode = #tpu.pipeline_mode<synchronous>, transform_indices = @transform_9, window_bounds = array<i64: 1, 32>}, {pipeline_mode = #tpu.pipeline_mode<synchronous>, transform_indices = @transform_10, window_bounds = array<i64: 1, 32>}, {pipeline_mode = #tpu.pipeline_mode<synchronous>, transform_indices = @transform_11, window_bounds = array<i64: 32, 64>}, {pipeline_mode = #tpu.pipeline_mode<synchronous>, transform_indices = @transform_12, window_bounds = array<i64: 1, 64>}, {pipeline_mode = #tpu.pipeline_mode<synchronous>, transform_indices = @transform_13, window_bounds = array<i64: 64, 32>}, {pipeline_mode = #tpu.pipeline_mode<synchronous>, transform_indices = @transform_14, window_bounds = array<i64: 1, 32>}, {pipeline_mode = #tpu.pipeline_mode<synchronous>, transform_indices = @transform_15, window_bounds = array<i64: 1, 32>}, {pipeline_mode = #tpu.pipeline_mode<synchronous>, transform_indices = @transform_16, window_bounds = array<i64: 1, 32>}, {transform_indices = @transform_17, window_bounds = array<i64: 1, 1, 256>}]} {
    %c0 = arith.constant 0 : index
    %c0_0 = arith.constant 0 : index
    %c0_1 = arith.constant 0 : index
    %0 = vector.load %arg2[%c0, %c0_0, %c0_1] : memref<1x8x32xf32, #tpu.memory_space<vmem>>, vector<1x8x32xf32>
    %1 = vector.shape_cast %0 : vector<1x8x32xf32> to vector<8x32xf32>
    %c0_2 = arith.constant 0 : index
    %c0_3 = arith.constant 0 : index
    %c0_4 = arith.constant 0 : index
    %2 = vector.load %arg3[%c0_2, %c0_3, %c0_4] : memref<1x8x32xf32, #tpu.memory_space<vmem>>, vector<1x8x32xf32>
    %3 = vector.shape_cast %2 : vector<1x8x32xf32> to vector<8x32xf32>
    %c0_5 = arith.constant 0 : index
    %c0_6 = arith.constant 0 : index
    %4 = vector.load %arg4[%c0_5, %c0_6] : memref<32x96xf32, #tpu.memory_space<vmem>>, vector<32x96xf32>
    %cst = arith.constant dense<0.000000e+00> : vector<8x96xf32>
    %5 = tpu.matmul %1, %4, %cst {dimension_numbers = #tpu.dot_dimension_numbers<[1], [0], [0], [1], [0, 0, 1, 1], [], []>} : vector<8x32xf32>, vector<32x96xf32>, vector<8x96xf32> -> vector<8x96xf32>
    %6 = vector.extract_strided_slice %5 {offsets = [0, 0], sizes = [8, 8], strides = [1, 1]} : vector<8x96xf32> to vector<8x8xf32>
    %c0_7 = arith.constant 0 : index
    %c0_8 = arith.constant 0 : index
    %c0_9 = arith.constant 0 : index
    %7 = vector.load %arg20[%c0_7, %c0_8, %c0_9] : memref<4x8x8xf32, #tpu.memory_space<vmem>>, vector<1x8x8xf32>
    %8 = vector.shape_cast %7 : vector<1x8x8xf32> to vector<8x8xf32>
    %9 = vector.shape_cast %6 : vector<8x8xf32> to vector<1x8x8xf32>
    tpu.vector_store %arg20[%c0_7, %c0_8, %c0_9], %9 {strides = array<i32>} : memref<4x8x8xf32, #tpu.memory_space<vmem>>, vector<1x8x8xf32>,
    %10 = vector.extract_strided_slice %5 {offsets = [0, 8], sizes = [8, 8], strides = [1, 1]} : vector<8x96xf32> to vector<8x8xf32>
    %c1 = arith.constant 1 : index
    %c0_10 = arith.constant 0 : index
    %c0_11 = arith.constant 0 : index
    %11 = vector.load %arg20[%c1, %c0_10, %c0_11] : memref<4x8x8xf32, #tpu.memory_space<vmem>>, vector<1x8x8xf32>
    %12 = vector.shape_cast %11 : vector<1x8x8xf32> to vector<8x8xf32>
    %13 = vector.shape_cast %10 : vector<8x8xf32> to vector<1x8x8xf32>
    tpu.vector_store %arg20[%c1, %c0_10, %c0_11], %13 {strides = array<i32>} : memref<4x8x8xf32, #tpu.memory_space<vmem>>, vector<1x8x8xf32>,
    %14 = vector.extract_strided_slice %5 {offsets = [0, 16], sizes = [8, 8], strides = [1, 1]} : vector<8x96xf32> to vector<8x8xf32>
    %c2 = arith.constant 2 : index
    %c0_12 = arith.constant 0 : index
    %c0_13 = arith.constant 0 : index
    %15 = vector.load %arg20[%c2, %c0_12, %c0_13] : memref<4x8x8xf32, #tpu.memory_space<vmem>>, vector<1x8x8xf32>
    %16 = vector.shape_cast %15 : vector<1x8x8xf32> to vector<8x8xf32>
    %17 = vector.shape_cast %14 : vector<8x8xf32> to vector<1x8x8xf32>
    tpu.vector_store %arg20[%c2, %c0_12, %c0_13], %17 {strides = array<i32>} : memref<4x8x8xf32, #tpu.memory_space<vmem>>, vector<1x8x8xf32>,
    %18 = vector.extract_strided_slice %5 {offsets = [0, 24], sizes = [8, 8], strides = [1, 1]} : vector<8x96xf32> to vector<8x8xf32>
    %c3 = arith.constant 3 : index
    %c0_14 = arith.constant 0 : index
    %c0_15 = arith.constant 0 : index
    %19 = vector.load %arg20[%c3, %c0_14, %c0_15] : memref<4x8x8xf32, #tpu.memory_space<vmem>>, vector<1x8x8xf32>
    %20 = vector.shape_cast %19 : vector<1x8x8xf32> to vector<8x8xf32>
    %21 = vector.shape_cast %18 : vector<8x8xf32> to vector<1x8x8xf32>
    tpu.vector_store %arg20[%c3, %c0_14, %c0_15], %21 {strides = array<i32>} : memref<4x8x8xf32, #tpu.memory_space<vmem>>, vector<1x8x8xf32>,
    %22 = vector.extract_strided_slice %5 {offsets = [0, 32], sizes = [8, 8], strides = [1, 1]} : vector<8x96xf32> to vector<8x8xf32>
    %c0_16 = arith.constant 0 : index
    %c0_17 = arith.constant 0 : index
    %c0_18 = arith.constant 0 : index
    %23 = vector.load %arg21[%c0_16, %c0_17, %c0_18] : memref<4x8x8xf32, #tpu.memory_space<vmem>>, vector<1x8x8xf32>
    %24 = vector.shape_cast %23 : vector<1x8x8xf32> to vector<8x8xf32>
    %25 = vector.shape_cast %22 : vector<8x8xf32> to vector<1x8x8xf32>
    tpu.vector_store %arg21[%c0_16, %c0_17, %c0_18], %25 {strides = array<i32>} : memref<4x8x8xf32, #tpu.memory_space<vmem>>, vector<1x8x8xf32>,
    %26 = vector.extract_strided_slice %5 {offsets = [0, 40], sizes = [8, 8], strides = [1, 1]} : vector<8x96xf32> to vector<8x8xf32>
    %c1_19 = arith.constant 1 : index
    %c0_20 = arith.constant 0 : index
    %c0_21 = arith.constant 0 : index
    %27 = vector.load %arg21[%c1_19, %c0_20, %c0_21] : memref<4x8x8xf32, #tpu.memory_space<vmem>>, vector<1x8x8xf32>
    %28 = vector.shape_cast %27 : vector<1x8x8xf32> to vector<8x8xf32>
    %29 = vector.shape_cast %26 : vector<8x8xf32> to vector<1x8x8xf32>
    tpu.vector_store %arg21[%c1_19, %c0_20, %c0_21], %29 {strides = array<i32>} : memref<4x8x8xf32, #tpu.memory_space<vmem>>, vector<1x8x8xf32>,
    %30 = vector.extract_strided_slice %5 {offsets = [0, 48], sizes = [8, 8], strides = [1, 1]} : vector<8x96xf32> to vector<8x8xf32>
    %c2_22 = arith.constant 2 : index
    %c0_23 = arith.constant 0 : index
    %c0_24 = arith.constant 0 : index
    %31 = vector.load %arg21[%c2_22, %c0_23, %c0_24] : memref<4x8x8xf32, #tpu.memory_space<vmem>>, vector<1x8x8xf32>
    %32 = vector.shape_cast %31 : vector<1x8x8xf32> to vector<8x8xf32>
    %33 = vector.shape_cast %30 : vector<8x8xf32> to vector<1x8x8xf32>
    tpu.vector_store %arg21[%c2_22, %c0_23, %c0_24], %33 {strides = array<i32>} : memref<4x8x8xf32, #tpu.memory_space<vmem>>, vector<1x8x8xf32>,
    %34 = vector.extract_strided_slice %5 {offsets = [0, 56], sizes = [8, 8], strides = [1, 1]} : vector<8x96xf32> to vector<8x8xf32>
    %c3_25 = arith.constant 3 : index
    %c0_26 = arith.constant 0 : index
    %c0_27 = arith.constant 0 : index
    %35 = vector.load %arg21[%c3_25, %c0_26, %c0_27] : memref<4x8x8xf32, #tpu.memory_space<vmem>>, vector<1x8x8xf32>
    %36 = vector.shape_cast %35 : vector<1x8x8xf32> to vector<8x8xf32>
    %37 = vector.shape_cast %34 : vector<8x8xf32> to vector<1x8x8xf32>
    tpu.vector_store %arg21[%c3_25, %c0_26, %c0_27], %37 {strides = array<i32>} : memref<4x8x8xf32, #tpu.memory_space<vmem>>, vector<1x8x8xf32>,
    %38 = vector.extract_strided_slice %5 {offsets = [0, 64], sizes = [8, 8], strides = [1, 1]} : vector<8x96xf32> to vector<8x8xf32>
    %c0_28 = arith.constant 0 : index
    %c0_29 = arith.constant 0 : index
    %c0_30 = arith.constant 0 : index
    %39 = vector.load %arg22[%c0_28, %c0_29, %c0_30] : memref<4x8x8xf32, #tpu.memory_space<vmem>>, vector<1x8x8xf32>
    %40 = vector.shape_cast %39 : vector<1x8x8xf32> to vector<8x8xf32>
    %41 = vector.shape_cast %38 : vector<8x8xf32> to vector<1x8x8xf32>
    tpu.vector_store %arg22[%c0_28, %c0_29, %c0_30], %41 {strides = array<i32>} : memref<4x8x8xf32, #tpu.memory_space<vmem>>, vector<1x8x8xf32>,
    %42 = vector.extract_strided_slice %5 {offsets = [0, 72], sizes = [8, 8], strides = [1, 1]} : vector<8x96xf32> to vector<8x8xf32>
    %c1_31 = arith.constant 1 : index
    %c0_32 = arith.constant 0 : index
    %c0_33 = arith.constant 0 : index
    %43 = vector.load %arg22[%c1_31, %c0_32, %c0_33] : memref<4x8x8xf32, #tpu.memory_space<vmem>>, vector<1x8x8xf32>
    %44 = vector.shape_cast %43 : vector<1x8x8xf32> to vector<8x8xf32>
    %45 = vector.shape_cast %42 : vector<8x8xf32> to vector<1x8x8xf32>
    tpu.vector_store %arg22[%c1_31, %c0_32, %c0_33], %45 {strides = array<i32>} : memref<4x8x8xf32, #tpu.memory_space<vmem>>, vector<1x8x8xf32>,
    %46 = vector.extract_strided_slice %5 {offsets = [0, 80], sizes = [8, 8], strides = [1, 1]} : vector<8x96xf32> to vector<8x8xf32>
    %c2_34 = arith.constant 2 : index
    %c0_35 = arith.constant 0 : index
    %c0_36 = arith.constant 0 : index
    %47 = vector.load %arg22[%c2_34, %c0_35, %c0_36] : memref<4x8x8xf32, #tpu.memory_space<vmem>>, vector<1x8x8xf32>
    %48 = vector.shape_cast %47 : vector<1x8x8xf32> to vector<8x8xf32>
    %49 = vector.shape_cast %46 : vector<8x8xf32> to vector<1x8x8xf32>
    tpu.vector_store %arg22[%c2_34, %c0_35, %c0_36], %49 {strides = array<i32>} : memref<4x8x8xf32, #tpu.memory_space<vmem>>, vector<1x8x8xf32>,
    %50 = vector.extract_strided_slice %5 {offsets = [0, 88], sizes = [8, 8], strides = [1, 1]} : vector<8x96xf32> to vector<8x8xf32>
    %c3_37 = arith.constant 3 : index
    %c0_38 = arith.constant 0 : index
    %c0_39 = arith.constant 0 : index
    %51 = vector.load %arg22[%c3_37, %c0_38, %c0_39] : memref<4x8x8xf32, #tpu.memory_space<vmem>>, vector<1x8x8xf32>
    %52 = vector.shape_cast %51 : vector<1x8x8xf32> to vector<8x8xf32>
    %53 = vector.shape_cast %50 : vector<8x8xf32> to vector<1x8x8xf32>
    tpu.vector_store %arg22[%c3_37, %c0_38, %c0_39], %53 {strides = array<i32>} : memref<4x8x8xf32, #tpu.memory_space<vmem>>, vector<1x8x8xf32>,
    %54 = tpu.iota {dimensions = array<i32: 1>} : vector<1x8x8xi32>
    %55 = tpu.iota {dimensions = array<i32: 2>} : vector<1x8x8xi32>
    %56 = arith.cmpi sle, %55, %54 : vector<1x8x8xi32>
    %c0_40 = arith.constant 0 : index
    %c0_41 = arith.constant 0 : index
    %c0_42 = arith.constant 0 : index
    %57 = vector.load %arg20[%c0_40, %c0_41, %c0_42] : memref<4x8x8xf32, #tpu.memory_space<vmem>>, vector<4x8x8xf32>
    %c0_43 = arith.constant 0 : index
    %c0_44 = arith.constant 0 : index
    %c0_45 = arith.constant 0 : index
    %58 = vector.load %arg21[%c0_43, %c0_44, %c0_45] : memref<4x8x8xf32, #tpu.memory_space<vmem>>, vector<4x8x8xf32>
    "tpu.trace_start"() <{level = 10 : i32, message = "bqd,bkd->bqk"}> : () -> ()
    %cst_46 = arith.constant dense<0.000000e+00> : vector<4x8x8xf32>
    %59 = tpu.matmul %57, %58, %cst_46 {dimension_numbers = #tpu.dot_dimension_numbers<[2], [2], [1], [1], [0, 0, 0, 1, 1, 1], [0], [0]>} : vector<4x8x8xf32>, vector<4x8x8xf32>, vector<4x8x8xf32> -> vector<4x8x8xf32>
    "tpu.trace_stop"() : () -> ()
    %cst_47 = arith.constant 0.353553385 : f32
    %60 = vector.broadcast %cst_47 : f32 to vector<4x8x8xf32>
    %61 = arith.mulf %59, %60 : vector<4x8x8xf32>
    %cst_48 = arith.constant -1.000000e+06 : f32
    %62 = vector.shape_cast %56 : vector<1x8x8xi1> to vector<1x8x8xi1>
    %63 = vector.broadcast %62 : vector<1x8x8xi1> to vector<4x8x8xi1>
    %64 = vector.broadcast %cst_48 : f32 to vector<4x8x8xf32>
    %65 = arith.select %63, %61, %64 : vector<4x8x8xi1>, vector<4x8x8xf32>
    %cst_49 = arith.constant dense<0xFF800000> : vector<4x8xf32>
    %66 = vector.multi_reduction <maximumf>, %65, %cst_49 [2] : vector<4x8x8xf32> to vector<4x8xf32>
    %67 = vector.shape_cast %66 : vector<4x8xf32> to vector<4x8x1xf32>
    %68 = vector.broadcast %67 : vector<4x8x1xf32> to vector<4x8x8xf32>
    %69 = arith.subf %65, %68 : vector<4x8x8xf32>
    %70 = math.exp %69 : vector<4x8x8xf32>
    %cst_50 = arith.constant dense<0.000000e+00> : vector<4x8xf32>
    %71 = vector.multi_reduction <add>, %70, %cst_50 [2] : vector<4x8x8xf32> to vector<4x8xf32>
    %72 = vector.shape_cast %71 : vector<4x8xf32> to vector<4x8x1xf32>
    %73 = tpu.reciprocal %72 {approx = true} : vector<4x8x1xf32> -> vector<4x8x1xf32>
    %74 = vector.broadcast %73 : vector<4x8x1xf32> to vector<4x8x8xf32>
    %75 = arith.mulf %70, %74 : vector<4x8x8xf32>
    %c0_51 = arith.constant 0 : index
    %c0_52 = arith.constant 0 : index
    %c0_53 = arith.constant 0 : index
    %76 = vector.load %arg22[%c0_51, %c0_52, %c0_53] : memref<4x8x8xf32, #tpu.memory_space<vmem>>, vector<4x8x8xf32>
    "tpu.trace_start"() <{level = 10 : i32, message = "bqk,bkd->bqd"}> : () -> ()
    %cst_54 = arith.constant dense<0.000000e+00> : vector<4x8x8xf32>
    %77 = tpu.matmul %75, %76, %cst_54 {dimension_numbers = #tpu.dot_dimension_numbers<[2], [1], [1], [2], [0, 0, 0, 1, 1, 2], [0], [0]>} : vector<4x8x8xf32>, vector<4x8x8xf32>, vector<4x8x8xf32> -> vector<4x8x8xf32>
    "tpu.trace_stop"() : () -> ()
    %78 = vector.extract_strided_slice %77 {offsets = [0, 0, 0], sizes = [1, 8, 8], strides = [1, 1, 1]} : vector<4x8x8xf32> to vector<1x8x8xf32>
    %79 = vector.shape_cast %78 : vector<1x8x8xf32> to vector<8x8xf32>
    %80 = vector.extract_strided_slice %77 {offsets = [1, 0, 0], sizes = [1, 8, 8], strides = [1, 1, 1]} : vector<4x8x8xf32> to vector<1x8x8xf32>
    %81 = vector.shape_cast %80 : vector<1x8x8xf32> to vector<8x8xf32>
    %82 = vector.extract_strided_slice %77 {offsets = [2, 0, 0], sizes = [1, 8, 8], strides = [1, 1, 1]} : vector<4x8x8xf32> to vector<1x8x8xf32>
    %83 = vector.shape_cast %82 : vector<1x8x8xf32> to vector<8x8xf32>
    %84 = vector.extract_strided_slice %77 {offsets = [3, 0, 0], sizes = [1, 8, 8], strides = [1, 1, 1]} : vector<4x8x8xf32> to vector<1x8x8xf32>
    %85 = vector.shape_cast %84 : vector<1x8x8xf32> to vector<8x8xf32>
    %86 = tpu.concatenate %79, %81, %83, %85 in 1 : vector<8x8xf32>, vector<8x8xf32>, vector<8x8xf32>, vector<8x8xf32> -> vector<8x32xf32>
    %c0_55 = arith.constant 0 : index
    %c0_56 = arith.constant 0 : index
    %87 = vector.load %arg5[%c0_55, %c0_56] : memref<32x32xf32, #tpu.memory_space<vmem>>, vector<32x32xf32>
    %cst_57 = arith.constant dense<0.000000e+00> : vector<8x32xf32>
    %88 = tpu.matmul %86, %87, %cst_57 {dimension_numbers = #tpu.dot_dimension_numbers<[1], [0], [0], [1], [0, 0, 1, 1], [], []>} : vector<8x32xf32>, vector<32x32xf32>, vector<8x32xf32> -> vector<8x32xf32>
    %89 = arith.addf %88, %1 : vector<8x32xf32>
    %c0_58 = arith.constant 0 : index
    %c0_59 = arith.constant 0 : index
    %90 = vector.load %arg6[%c0_58, %c0_59] : memref<1x32xf32, #tpu.memory_space<vmem>>, vector<1x32xf32>
    %c0_60 = arith.constant 0 : index
    %c0_61 = arith.constant 0 : index
    %91 = vector.load %arg7[%c0_60, %c0_61] : memref<1x32xf32, #tpu.memory_space<vmem>>, vector<1x32xf32>
    %cst_62 = arith.constant dense<0.000000e+00> : vector<8xf32>
    %92 = vector.multi_reduction <add>, %89, %cst_62 [1] : vector<8x32xf32> to vector<8xf32>
    %93 = vector.shape_cast %92 : vector<8xf32> to vector<8x1xf32>
    %cst_63 = arith.constant 3.200000e+01 : f32
    %94 = vector.broadcast %cst_63 : f32 to vector<8x1xf32>
    %95 = arith.divf %93, %94 : vector<8x1xf32>
    %96 = vector.broadcast %95 : vector<8x1xf32> to vector<8x32xf32>
    %97 = arith.subf %89, %96 : vector<8x32xf32>
    %98 = arith.mulf %97, %97 : vector<8x32xf32>
    %cst_64 = arith.constant dense<0.000000e+00> : vector<8xf32>
    %99 = vector.multi_reduction <add>, %98, %cst_64 [1] : vector<8x32xf32> to vector<8xf32>
    %100 = vector.shape_cast %99 : vector<8xf32> to vector<8x1xf32>
    %cst_65 = arith.constant 3.200000e+01 : f32
    %101 = vector.broadcast %cst_65 : f32 to vector<8x1xf32>
    %102 = arith.divf %100, %101 : vector<8x1xf32>
    %103 = vector.broadcast %95 : vector<8x1xf32> to vector<8x32xf32>
    %104 = arith.subf %89, %103 : vector<8x32xf32>
    %cst_66 = arith.constant 9.99999974E-6 : f32
    %105 = vector.broadcast %cst_66 : f32 to vector<8x1xf32>
    %106 = arith.addf %102, %105 : vector<8x1xf32>
    %107 = math.rsqrt %106 : vector<8x1xf32>
    %108 = vector.broadcast %107 : vector<8x1xf32> to vector<8x32xf32>
    %109 = arith.mulf %104, %108 : vector<8x32xf32>
    %110 = vector.broadcast %90 : vector<1x32xf32> to vector<8x32xf32>
    %111 = arith.mulf %109, %110 : vector<8x32xf32>
    %112 = vector.broadcast %91 : vector<1x32xf32> to vector<8x32xf32>
    %113 = arith.addf %111, %112 : vector<8x32xf32>
    %c0_67 = arith.constant 0 : index
    %c0_68 = arith.constant 0 : index
    %114 = vector.load %arg8[%c0_67, %c0_68] : memref<32x32xf32, #tpu.memory_space<vmem>>, vector<32x32xf32>
    %cst_69 = arith.constant dense<0.000000e+00> : vector<8x32xf32>
    %115 = tpu.matmul %113, %114, %cst_69 {dimension_numbers = #tpu.dot_dimension_numbers<[1], [0], [0], [1], [0, 0, 1, 1], [], []>} : vector<8x32xf32>, vector<32x32xf32>, vector<8x32xf32> -> vector<8x32xf32>
    %c0_70 = arith.constant 0 : index
    %c0_71 = arith.constant 0 : index
    %116 = vector.load %arg9[%c0_70, %c0_71] : memref<32x64xf32, #tpu.memory_space<vmem>>, vector<32x64xf32>
    %cst_72 = arith.constant dense<0.000000e+00> : vector<8x64xf32>
    %117 = tpu.matmul %3, %116, %cst_72 {dimension_numbers = #tpu.dot_dimension_numbers<[1], [0], [0], [1], [0, 0, 1, 1], [], []>} : vector<8x32xf32>, vector<32x64xf32>, vector<8x64xf32> -> vector<8x64xf32>
    %118 = vector.extract_strided_slice %115 {offsets = [0, 0], sizes = [8, 8], strides = [1, 1]} : vector<8x32xf32> to vector<8x8xf32>
    %c0_73 = arith.constant 0 : index
    %c0_74 = arith.constant 0 : index
    %c0_75 = arith.constant 0 : index
    %119 = vector.load %arg20[%c0_73, %c0_74, %c0_75] : memref<4x8x8xf32, #tpu.memory_space<vmem>>, vector<1x8x8xf32>
    %120 = vector.shape_cast %119 : vector<1x8x8xf32> to vector<8x8xf32>
    %121 = vector.shape_cast %118 : vector<8x8xf32> to vector<1x8x8xf32>
    tpu.vector_store %arg20[%c0_73, %c0_74, %c0_75], %121 {strides = array<i32>} : memref<4x8x8xf32, #tpu.memory_space<vmem>>, vector<1x8x8xf32>,
    %122 = vector.extract_strided_slice %115 {offsets = [0, 8], sizes = [8, 8], strides = [1, 1]} : vector<8x32xf32> to vector<8x8xf32>
    %c1_76 = arith.constant 1 : index
    %c0_77 = arith.constant 0 : index
    %c0_78 = arith.constant 0 : index
    %123 = vector.load %arg20[%c1_76, %c0_77, %c0_78] : memref<4x8x8xf32, #tpu.memory_space<vmem>>, vector<1x8x8xf32>
    %124 = vector.shape_cast %123 : vector<1x8x8xf32> to vector<8x8xf32>
    %125 = vector.shape_cast %122 : vector<8x8xf32> to vector<1x8x8xf32>
    tpu.vector_store %arg20[%c1_76, %c0_77, %c0_78], %125 {strides = array<i32>} : memref<4x8x8xf32, #tpu.memory_space<vmem>>, vector<1x8x8xf32>,
    %126 = vector.extract_strided_slice %115 {offsets = [0, 16], sizes = [8, 8], strides = [1, 1]} : vector<8x32xf32> to vector<8x8xf32>
    %c2_79 = arith.constant 2 : index
    %c0_80 = arith.constant 0 : index
    %c0_81 = arith.constant 0 : index
    %127 = vector.load %arg20[%c2_79, %c0_80, %c0_81] : memref<4x8x8xf32, #tpu.memory_space<vmem>>, vector<1x8x8xf32>
    %128 = vector.shape_cast %127 : vector<1x8x8xf32> to vector<8x8xf32>
    %129 = vector.shape_cast %126 : vector<8x8xf32> to vector<1x8x8xf32>
    tpu.vector_store %arg20[%c2_79, %c0_80, %c0_81], %129 {strides = array<i32>} : memref<4x8x8xf32, #tpu.memory_space<vmem>>, vector<1x8x8xf32>,
    %130 = vector.extract_strided_slice %115 {offsets = [0, 24], sizes = [8, 8], strides = [1, 1]} : vector<8x32xf32> to vector<8x8xf32>
    %c3_82 = arith.constant 3 : index
    %c0_83 = arith.constant 0 : index
    %c0_84 = arith.constant 0 : index
    %131 = vector.load %arg20[%c3_82, %c0_83, %c0_84] : memref<4x8x8xf32, #tpu.memory_space<vmem>>, vector<1x8x8xf32>
    %132 = vector.shape_cast %131 : vector<1x8x8xf32> to vector<8x8xf32>
    %133 = vector.shape_cast %130 : vector<8x8xf32> to vector<1x8x8xf32>
    tpu.vector_store %arg20[%c3_82, %c0_83, %c0_84], %133 {strides = array<i32>} : memref<4x8x8xf32, #tpu.memory_space<vmem>>, vector<1x8x8xf32>,
    %134 = vector.extract_strided_slice %117 {offsets = [0, 0], sizes = [8, 8], strides = [1, 1]} : vector<8x64xf32> to vector<8x8xf32>
    %c0_85 = arith.constant 0 : index
    %c0_86 = arith.constant 0 : index
    %c0_87 = arith.constant 0 : index
    %135 = vector.load %arg23[%c0_85, %c0_86, %c0_87] : memref<4x8x8xf32, #tpu.memory_space<vmem>>, vector<1x8x8xf32>
    %136 = vector.shape_cast %135 : vector<1x8x8xf32> to vector<8x8xf32>
    %137 = vector.shape_cast %134 : vector<8x8xf32> to vector<1x8x8xf32>
    tpu.vector_store %arg23[%c0_85, %c0_86, %c0_87], %137 {strides = array<i32>} : memref<4x8x8xf32, #tpu.memory_space<vmem>>, vector<1x8x8xf32>,
    %138 = vector.extract_strided_slice %117 {offsets = [0, 8], sizes = [8, 8], strides = [1, 1]} : vector<8x64xf32> to vector<8x8xf32>
    %c1_88 = arith.constant 1 : index
    %c0_89 = arith.constant 0 : index
    %c0_90 = arith.constant 0 : index
    %139 = vector.load %arg23[%c1_88, %c0_89, %c0_90] : memref<4x8x8xf32, #tpu.memory_space<vmem>>, vector<1x8x8xf32>
    %140 = vector.shape_cast %139 : vector<1x8x8xf32> to vector<8x8xf32>
    %141 = vector.shape_cast %138 : vector<8x8xf32> to vector<1x8x8xf32>
    tpu.vector_store %arg23[%c1_88, %c0_89, %c0_90], %141 {strides = array<i32>} : memref<4x8x8xf32, #tpu.memory_space<vmem>>, vector<1x8x8xf32>,
    %142 = vector.extract_strided_slice %117 {offsets = [0, 16], sizes = [8, 8], strides = [1, 1]} : vector<8x64xf32> to vector<8x8xf32>
    %c2_91 = arith.constant 2 : index
    %c0_92 = arith.constant 0 : index
    %c0_93 = arith.constant 0 : index
    %143 = vector.load %arg23[%c2_91, %c0_92, %c0_93] : memref<4x8x8xf32, #tpu.memory_space<vmem>>, vector<1x8x8xf32>
    %144 = vector.shape_cast %143 : vector<1x8x8xf32> to vector<8x8xf32>
    %145 = vector.shape_cast %142 : vector<8x8xf32> to vector<1x8x8xf32>
    tpu.vector_store %arg23[%c2_91, %c0_92, %c0_93], %145 {strides = array<i32>} : memref<4x8x8xf32, #tpu.memory_space<vmem>>, vector<1x8x8xf32>,
    %146 = vector.extract_strided_slice %117 {offsets = [0, 24], sizes = [8, 8], strides = [1, 1]} : vector<8x64xf32> to vector<8x8xf32>
    %c3_94 = arith.constant 3 : index
    %c0_95 = arith.constant 0 : index
    %c0_96 = arith.constant 0 : index
    %147 = vector.load %arg23[%c3_94, %c0_95, %c0_96] : memref<4x8x8xf32, #tpu.memory_space<vmem>>, vector<1x8x8xf32>
    %148 = vector.shape_cast %147 : vector<1x8x8xf32> to vector<8x8xf32>
    %149 = vector.shape_cast %146 : vector<8x8xf32> to vector<1x8x8xf32>
    tpu.vector_store %arg23[%c3_94, %c0_95, %c0_96], %149 {strides = array<i32>} : memref<4x8x8xf32, #tpu.memory_space<vmem>>, vector<1x8x8xf32>,
    %150 = vector.extract_strided_slice %117 {offsets = [0, 32], sizes = [8, 8], strides = [1, 1]} : vector<8x64xf32> to vector<8x8xf32>
    %c0_97 = arith.constant 0 : index
    %c0_98 = arith.constant 0 : index
    %c0_99 = arith.constant 0 : index
    %151 = vector.load %arg24[%c0_97, %c0_98, %c0_99] : memref<4x8x8xf32, #tpu.memory_space<vmem>>, vector<1x8x8xf32>
    %152 = vector.shape_cast %151 : vector<1x8x8xf32> to vector<8x8xf32>
    %153 = vector.shape_cast %150 : vector<8x8xf32> to vector<1x8x8xf32>
    tpu.vector_store %arg24[%c0_97, %c0_98, %c0_99], %153 {strides = array<i32>} : memref<4x8x8xf32, #tpu.memory_space<vmem>>, vector<1x8x8xf32>,
    %154 = vector.extract_strided_slice %117 {offsets = [0, 40], sizes = [8, 8], strides = [1, 1]} : vector<8x64xf32> to vector<8x8xf32>
    %c1_100 = arith.constant 1 : index
    %c0_101 = arith.constant 0 : index
    %c0_102 = arith.constant 0 : index
    %155 = vector.load %arg24[%c1_100, %c0_101, %c0_102] : memref<4x8x8xf32, #tpu.memory_space<vmem>>, vector<1x8x8xf32>
    %156 = vector.shape_cast %155 : vector<1x8x8xf32> to vector<8x8xf32>
    %157 = vector.shape_cast %154 : vector<8x8xf32> to vector<1x8x8xf32>
    tpu.vector_store %arg24[%c1_100, %c0_101, %c0_102], %157 {strides = array<i32>} : memref<4x8x8xf32, #tpu.memory_space<vmem>>, vector<1x8x8xf32>,
    %158 = vector.extract_strided_slice %117 {offsets = [0, 48], sizes = [8, 8], strides = [1, 1]} : vector<8x64xf32> to vector<8x8xf32>
    %c2_103 = arith.constant 2 : index
    %c0_104 = arith.constant 0 : index
    %c0_105 = arith.constant 0 : index
    %159 = vector.load %arg24[%c2_103, %c0_104, %c0_105] : memref<4x8x8xf32, #tpu.memory_space<vmem>>, vector<1x8x8xf32>
    %160 = vector.shape_cast %159 : vector<1x8x8xf32> to vector<8x8xf32>
    %161 = vector.shape_cast %158 : vector<8x8xf32> to vector<1x8x8xf32>
    tpu.vector_store %arg24[%c2_103, %c0_104, %c0_105], %161 {strides = array<i32>} : memref<4x8x8xf32, #tpu.memory_space<vmem>>, vector<1x8x8xf32>,
    %162 = vector.extract_strided_slice %117 {offsets = [0, 56], sizes = [8, 8], strides = [1, 1]} : vector<8x64xf32> to vector<8x8xf32>
    %c3_106 = arith.constant 3 : index
    %c0_107 = arith.constant 0 : index
    %c0_108 = arith.constant 0 : index
    %163 = vector.load %arg24[%c3_106, %c0_107, %c0_108] : memref<4x8x8xf32, #tpu.memory_space<vmem>>, vector<1x8x8xf32>
    %164 = vector.shape_cast %163 : vector<1x8x8xf32> to vector<8x8xf32>
    %165 = vector.shape_cast %162 : vector<8x8xf32> to vector<1x8x8xf32>
    tpu.vector_store %arg24[%c3_106, %c0_107, %c0_108], %165 {strides = array<i32>} : memref<4x8x8xf32, #tpu.memory_space<vmem>>, vector<1x8x8xf32>,
    %166 = tpu.iota {dimensions = array<i32: 2>} : vector<1x8x8xi32>
    %167 = arith.index_cast %arg0 : i32 to index
    %168 = memref.load %arg1[%167] : memref<2xi32, #tpu.memory_space<smem>>
    %169 = vector.broadcast %168 : i32 to vector<1x8x8xi32>
    %170 = arith.cmpi slt, %166, %169 : vector<1x8x8xi32>
    %c0_109 = arith.constant 0 : index
    %c0_110 = arith.constant 0 : index
    %c0_111 = arith.constant 0 : index
    %171 = vector.load %arg20[%c0_109, %c0_110, %c0_111] : memref<4x8x8xf32, #tpu.memory_space<vmem>>, vector<4x8x8xf32>
    %c0_112 = arith.constant 0 : index
    %c0_113 = arith.constant 0 : index
    %c0_114 = arith.constant 0 : index
    %172 = vector.load %arg23[%c0_112, %c0_113, %c0_114] : memref<4x8x8xf32, #tpu.memory_space<vmem>>, vector<4x8x8xf32>
    "tpu.trace_start"() <{level = 10 : i32, message = "bqd,bkd->bqk"}> : () -> ()
    %cst_115 = arith.constant dense<0.000000e+00> : vector<4x8x8xf32>
    %173 = tpu.matmul %171, %172, %cst_115 {dimension_numbers = #tpu.dot_dimension_numbers<[2], [2], [1], [1], [0, 0, 0, 1, 1, 1], [0], [0]>} : vector<4x8x8xf32>, vector<4x8x8xf32>, vector<4x8x8xf32> -> vector<4x8x8xf32>
    "tpu.trace_stop"() : () -> ()
    %cst_116 = arith.constant 0.353553385 : f32
    %174 = vector.broadcast %cst_116 : f32 to vector<4x8x8xf32>
    %175 = arith.mulf %173, %174 : vector<4x8x8xf32>
    %cst_117 = arith.constant -1.000000e+06 : f32
    %176 = vector.shape_cast %170 : vector<1x8x8xi1> to vector<1x8x8xi1>
    %177 = vector.broadcast %176 : vector<1x8x8xi1> to vector<4x8x8xi1>
    %178 = vector.broadcast %cst_117 : f32 to vector<4x8x8xf32>
    %179 = arith.select %177, %175, %178 : vector<4x8x8xi1>, vector<4x8x8xf32>
    %cst_118 = arith.constant dense<0xFF800000> : vector<4x8xf32>
    %180 = vector.multi_reduction <maximumf>, %179, %cst_118 [2] : vector<4x8x8xf32> to vector<4x8xf32>
    %181 = vector.shape_cast %180 : vector<4x8xf32> to vector<4x8x1xf32>
    %182 = vector.broadcast %181 : vector<4x8x1xf32> to vector<4x8x8xf32>
    %183 = arith.subf %179, %182 : vector<4x8x8xf32>
    %184 = math.exp %183 : vector<4x8x8xf32>
    %cst_119 = arith.constant dense<0.000000e+00> : vector<4x8xf32>
    %185 = vector.multi_reduction <add>, %184, %cst_119 [2] : vector<4x8x8xf32> to vector<4x8xf32>
    %186 = vector.shape_cast %185 : vector<4x8xf32> to vector<4x8x1xf32>
    %187 = tpu.reciprocal %186 {approx = true} : vector<4x8x1xf32> -> vector<4x8x1xf32>
    %188 = vector.broadcast %187 : vector<4x8x1xf32> to vector<4x8x8xf32>
    %189 = arith.mulf %184, %188 : vector<4x8x8xf32>
    %c0_120 = arith.constant 0 : index
    %c0_121 = arith.constant 0 : index
    %c0_122 = arith.constant 0 : index
    %190 = vector.load %arg24[%c0_120, %c0_121, %c0_122] : memref<4x8x8xf32, #tpu.memory_space<vmem>>, vector<4x8x8xf32>
    "tpu.trace_start"() <{level = 10 : i32, message = "bqk,bkd->bqd"}> : () -> ()
    %cst_123 = arith.constant dense<0.000000e+00> : vector<4x8x8xf32>
    %191 = tpu.matmul %189, %190, %cst_123 {dimension_numbers = #tpu.dot_dimension_numbers<[2], [1], [1], [2], [0, 0, 0, 1, 1, 2], [0], [0]>} : vector<4x8x8xf32>, vector<4x8x8xf32>, vector<4x8x8xf32> -> vector<4x8x8xf32>
    "tpu.trace_stop"() : () -> ()
    %192 = vector.extract_strided_slice %191 {offsets = [0, 0, 0], sizes = [1, 8, 8], strides = [1, 1, 1]} : vector<4x8x8xf32> to vector<1x8x8xf32>
    %193 = vector.shape_cast %192 : vector<1x8x8xf32> to vector<8x8xf32>
    %194 = vector.extract_strided_slice %191 {offsets = [1, 0, 0], sizes = [1, 8, 8], strides = [1, 1, 1]} : vector<4x8x8xf32> to vector<1x8x8xf32>
    %195 = vector.shape_cast %194 : vector<1x8x8xf32> to vector<8x8xf32>
    %196 = vector.extract_strided_slice %191 {offsets = [2, 0, 0], sizes = [1, 8, 8], strides = [1, 1, 1]} : vector<4x8x8xf32> to vector<1x8x8xf32>
    %197 = vector.shape_cast %196 : vector<1x8x8xf32> to vector<8x8xf32>
    %198 = vector.extract_strided_slice %191 {offsets = [3, 0, 0], sizes = [1, 8, 8], strides = [1, 1, 1]} : vector<4x8x8xf32> to vector<1x8x8xf32>
    %199 = vector.shape_cast %198 : vector<1x8x8xf32> to vector<8x8xf32>
    %200 = tpu.concatenate %193, %195, %197, %199 in 1 : vector<8x8xf32>, vector<8x8xf32>, vector<8x8xf32>, vector<8x8xf32> -> vector<8x32xf32>
    %c0_124 = arith.constant 0 : index
    %c0_125 = arith.constant 0 : index
    %201 = vector.load %arg10[%c0_124, %c0_125] : memref<32x32xf32, #tpu.memory_space<vmem>>, vector<32x32xf32>
    %cst_126 = arith.constant dense<0.000000e+00> : vector<8x32xf32>
    %202 = tpu.matmul %200, %201, %cst_126 {dimension_numbers = #tpu.dot_dimension_numbers<[1], [0], [0], [1], [0, 0, 1, 1], [], []>} : vector<8x32xf32>, vector<32x32xf32>, vector<8x32xf32> -> vector<8x32xf32>
    %203 = arith.addf %202, %113 : vector<8x32xf32>
    %c0_127 = arith.constant 0 : index
    %c0_128 = arith.constant 0 : index
    %204 = vector.load %arg11[%c0_127, %c0_128] : memref<1x32xf32, #tpu.memory_space<vmem>>, vector<1x32xf32>
    %c0_129 = arith.constant 0 : index
    %c0_130 = arith.constant 0 : index
    %205 = vector.load %arg12[%c0_129, %c0_130] : memref<1x32xf32, #tpu.memory_space<vmem>>, vector<1x32xf32>
    %cst_131 = arith.constant dense<0.000000e+00> : vector<8xf32>
    %206 = vector.multi_reduction <add>, %203, %cst_131 [1] : vector<8x32xf32> to vector<8xf32>
    %207 = vector.shape_cast %206 : vector<8xf32> to vector<8x1xf32>
    %cst_132 = arith.constant 3.200000e+01 : f32
    %208 = vector.broadcast %cst_132 : f32 to vector<8x1xf32>
    %209 = arith.divf %207, %208 : vector<8x1xf32>
    %210 = vector.broadcast %209 : vector<8x1xf32> to vector<8x32xf32>
    %211 = arith.subf %203, %210 : vector<8x32xf32>
    %212 = arith.mulf %211, %211 : vector<8x32xf32>
    %cst_133 = arith.constant dense<0.000000e+00> : vector<8xf32>
    %213 = vector.multi_reduction <add>, %212, %cst_133 [1] : vector<8x32xf32> to vector<8xf32>
    %214 = vector.shape_cast %213 : vector<8xf32> to vector<8x1xf32>
    %cst_134 = arith.constant 3.200000e+01 : f32
    %215 = vector.broadcast %cst_134 : f32 to vector<8x1xf32>
    %216 = arith.divf %214, %215 : vector<8x1xf32>
    %217 = vector.broadcast %209 : vector<8x1xf32> to vector<8x32xf32>
    %218 = arith.subf %203, %217 : vector<8x32xf32>
    %cst_135 = arith.constant 9.99999974E-6 : f32
    %219 = vector.broadcast %cst_135 : f32 to vector<8x1xf32>
    %220 = arith.addf %216, %219 : vector<8x1xf32>
    %221 = math.rsqrt %220 : vector<8x1xf32>
    %222 = vector.broadcast %221 : vector<8x1xf32> to vector<8x32xf32>
    %223 = arith.mulf %218, %222 : vector<8x32xf32>
    %224 = vector.broadcast %204 : vector<1x32xf32> to vector<8x32xf32>
    %225 = arith.mulf %223, %224 : vector<8x32xf32>
    %226 = vector.broadcast %205 : vector<1x32xf32> to vector<8x32xf32>
    %227 = arith.addf %225, %226 : vector<8x32xf32>
    %c0_136 = arith.constant 0 : index
    %c0_137 = arith.constant 0 : index
    %228 = vector.load %arg13[%c0_136, %c0_137] : memref<32x64xf32, #tpu.memory_space<vmem>>, vector<32x64xf32>
    %cst_138 = arith.constant dense<0.000000e+00> : vector<8x64xf32>
    %229 = tpu.matmul %227, %228, %cst_138 {dimension_numbers = #tpu.dot_dimension_numbers<[1], [0], [0], [1], [0, 0, 1, 1], [], []>} : vector<8x32xf32>, vector<32x64xf32>, vector<8x64xf32> -> vector<8x64xf32>
    %c0_139 = arith.constant 0 : index
    %c0_140 = arith.constant 0 : index
    %230 = vector.load %arg14[%c0_139, %c0_140] : memref<1x64xf32, #tpu.memory_space<vmem>>, vector<1x64xf32>
    %231 = vector.broadcast %230 : vector<1x64xf32> to vector<8x64xf32>
    %232 = arith.addf %229, %231 : vector<8x64xf32>
    %cst_141 = arith.constant 0.000000e+00 : f32
    %233 = vector.broadcast %cst_141 : f32 to vector<8x64xf32>
    %234 = arith.maximumf %232, %233 : vector<8x64xf32>
    %c0_142 = arith.constant 0 : index
    %c0_143 = arith.constant 0 : index
    %235 = vector.load %arg15[%c0_142, %c0_143] : memref<64x32xf32, #tpu.memory_space<vmem>>, vector<64x32xf32>
    %cst_144 = arith.constant dense<0.000000e+00> : vector<8x32xf32>
    %236 = tpu.matmul %234, %235, %cst_144 {dimension_numbers = #tpu.dot_dimension_numbers<[1], [0], [0], [1], [0, 0, 1, 1], [], []>} : vector<8x64xf32>, vector<64x32xf32>, vector<8x32xf32> -> vector<8x32xf32>
    %c0_145 = arith.constant 0 : index
    %c0_146 = arith.constant 0 : index
    %237 = vector.load %arg16[%c0_145, %c0_146] : memref<1x32xf32, #tpu.memory_space<vmem>>, vector<1x32xf32>
    %238 = vector.broadcast %237 : vector<1x32xf32> to vector<8x32xf32>
    %239 = arith.addf %236, %238 : vector<8x32xf32>
    %240 = arith.addf %239, %227 : vector<8x32xf32>
    %c0_147 = arith.constant 0 : index
    %c0_148 = arith.constant 0 : index
    %241 = vector.load %arg17[%c0_147, %c0_148] : memref<1x32xf32, #tpu.memory_space<vmem>>, vector<1x32xf32>
    %c0_149 = arith.constant 0 : index
    %c0_150 = arith.constant 0 : index
    %242 = vector.load %arg18[%c0_149, %c0_150] : memref<1x32xf32, #tpu.memory_space<vmem>>, vector<1x32xf32>
    %cst_151 = arith.constant dense<0.000000e+00> : vector<8xf32>
    %243 = vector.multi_reduction <add>, %240, %cst_151 [1] : vector<8x32xf32> to vector<8xf32>
    %244 = vector.shape_cast %243 : vector<8xf32> to vector<8x1xf32>
    %cst_152 = arith.constant 3.200000e+01 : f32
    %245 = vector.broadcast %cst_152 : f32 to vector<8x1xf32>
    %246 = arith.divf %244, %245 : vector<8x1xf32>
    %247 = vector.broadcast %246 : vector<8x1xf32> to vector<8x32xf32>
    %248 = arith.subf %240, %247 : vector<8x32xf32>
    %249 = arith.mulf %248, %248 : vector<8x32xf32>
    %cst_153 = arith.constant dense<0.000000e+00> : vector<8xf32>
    %250 = vector.multi_reduction <add>, %249, %cst_153 [1] : vector<8x32xf32> to vector<8xf32>
    %251 = vector.shape_cast %250 : vector<8xf32> to vector<8x1xf32>
    %cst_154 = arith.constant 3.200000e+01 : f32
    %252 = vector.broadcast %cst_154 : f32 to vector<8x1xf32>
    %253 = arith.divf %251, %252 : vector<8x1xf32>
    %254 = vector.broadcast %246 : vector<8x1xf32> to vector<8x32xf32>
    %255 = arith.subf %240, %254 : vector<8x32xf32>
    %cst_155 = arith.constant 9.99999974E-6 : f32
    %256 = vector.broadcast %cst_155 : f32 to vector<8x1xf32>
    %257 = arith.addf %253, %256 : vector<8x1xf32>
    %258 = math.rsqrt %257 : vector<8x1xf32>
    %259 = vector.broadcast %258 : vector<8x1xf32> to vector<8x32xf32>
    %260 = arith.mulf %255, %259 : vector<8x32xf32>
    %261 = vector.broadcast %241 : vector<1x32xf32> to vector<8x32xf32>
    %262 = arith.mulf %260, %261 : vector<8x32xf32>
    %263 = vector.broadcast %242 : vector<1x32xf32> to vector<8x32xf32>
    %264 = arith.addf %262, %263 : vector<8x32xf32>
    %265 = vector.extract_strided_slice %264 {offsets = [0, 0], sizes = [1, 32], strides = [1, 1]} : vector<8x32xf32> to vector<1x32xf32>
    %266 = vector.extract_strided_slice %264 {offsets = [1, 0], sizes = [1, 32], strides = [1, 1]} : vector<8x32xf32> to vector<1x32xf32>
    %267 = vector.extract_strided_slice %264 {offsets = [2, 0], sizes = [1, 32], strides = [1, 1]} : vector<8x32xf32> to vector<1x32xf32>
    %268 = vector.extract_strided_slice %264 {offsets = [3, 0], sizes = [1, 32], strides = [1, 1]} : vector<8x32xf32> to vector<1x32xf32>
    %269 = vector.extract_strided_slice %264 {offsets = [4, 0], sizes = [1, 32], strides = [1, 1]} : vector<8x32xf32> to vector<1x32xf32>
    %270 = vector.extract_strided_slice %264 {offsets = [5, 0], sizes = [1, 32], strides = [1, 1]} : vector<8x32xf32> to vector<1x32xf32>
    %271 = vector.extract_strided_slice %264 {offsets = [6, 0], sizes = [1, 32], strides = [1, 1]} : vector<8x32xf32> to vector<1x32xf32>
    %272 = vector.extract_strided_slice %264 {offsets = [7, 0], sizes = [1, 32], strides = [1, 1]} : vector<8x32xf32> to vector<1x32xf32>
    %273 = tpu.concatenate %265, %266, %267, %268, %269, %270, %271, %272 in 1 : vector<1x32xf32>, vector<1x32xf32>, vector<1x32xf32>, vector<1x32xf32>, vector<1x32xf32>, vector<1x32xf32>, vector<1x32xf32>, vector<1x32xf32> -> vector<1x256xf32>
    %274 = vector.shape_cast %273 : vector<1x256xf32> to vector<1x1x256xf32>
    %c0_156 = arith.constant 0 : index
    %c0_157 = arith.constant 0 : index
    %c0_158 = arith.constant 0 : index
    %275 = vector.load %arg19[%c0_156, %c0_157, %c0_158] : memref<1x1x256xf32, #tpu.memory_space<vmem>>, vector<1x1x256xf32>
    tpu.vector_store %arg19[%c0_156, %c0_157, %c0_158], %274 {strides = array<i32>} : memref<1x1x256xf32, #tpu.memory_space<vmem>>, vector<1x1x256xf32>,
    return
  }
  func.func @transform_0(%arg0: i32, %arg1: memref<2xi32, #tpu.memory_space<smem>>) -> (i32, i32, i32) {
    %c0_i32 = arith.constant 0 : i32
    %c0_i32_0 = arith.constant 0 : i32
    %c0_i32_1 = arith.constant 0 : i32
    return %arg0, %c0_i32, %c0_i32_0 : i32, i32, i32
  }
  func.func @transform_1(%arg0: i32, %arg1: memref<2xi32, #tpu.memory_space<smem>>) -> (i32, i32, i32) {
    %c0_i32 = arith.constant 0 : i32
    %c0_i32_0 = arith.constant 0 : i32
    %c0_i32_1 = arith.constant 0 : i32
    return %arg0, %c0_i32, %c0_i32_0 : i32, i32, i32
  }
  func.func @transform_2(%arg0: i32, %arg1: memref<2xi32, #tpu.memory_space<smem>>) -> (i32, i32) {
    %c0_i32 = arith.constant 0 : i32
    %c0_i32_0 = arith.constant 0 : i32
    %c0_i32_1 = arith.constant 0 : i32
    return %c0_i32, %c0_i32_0 : i32, i32
  }
  func.func @transform_3(%arg0: i32, %arg1: memref<2xi32, #tpu.memory_space<smem>>) -> (i32, i32) {
    %c0_i32 = arith.constant 0 : i32
    %c0_i32_0 = arith.constant 0 : i32
    %c0_i32_1 = arith.constant 0 : i32
    return %c0_i32, %c0_i32_0 : i32, i32
  }
  func.func @transform_4(%arg0: i32, %arg1: memref<2xi32, #tpu.memory_space<smem>>) -> (i32, i32) {
    %c0_i32 = arith.constant 0 : i32
    %c0_i32_0 = arith.constant 0 : i32
    %c0_i32_1 = arith.constant 0 : i32
    return %c0_i32, %c0_i32_0 : i32, i32
  }
  func.func @transform_5(%arg0: i32, %arg1: memref<2xi32, #tpu.memory_space<smem>>) -> (i32, i32) {
    %c0_i32 = arith.constant 0 : i32
    %c0_i32_0 = arith.constant 0 : i32
    %c0_i32_1 = arith.constant 0 : i32
    return %c0_i32, %c0_i32_0 : i32, i32
  }
  func.func @transform_6(%arg0: i32, %arg1: memref<2xi32, #tpu.memory_space<smem>>) -> (i32, i32) {
    %c0_i32 = arith.constant 0 : i32
    %c0_i32_0 = arith.constant 0 : i32
    %c0_i32_1 = arith.constant 0 : i32
    return %c0_i32, %c0_i32_0 : i32, i32
  }
  func.func @transform_7(%arg0: i32, %arg1: memref<2xi32, #tpu.memory_space<smem>>) -> (i32, i32) {
    %c0_i32 = arith.constant 0 : i32
    %c0_i32_0 = arith.constant 0 : i32
    %c0_i32_1 = arith.constant 0 : i32
    return %c0_i32, %c0_i32_0 : i32, i32
  }
  func.func @transform_8(%arg0: i32, %arg1: memref<2xi32, #tpu.memory_space<smem>>) -> (i32, i32) {
    %c0_i32 = arith.constant 0 : i32
    %c0_i32_0 = arith.constant 0 : i32
    %c0_i32_1 = arith.constant 0 : i32
    return %c0_i32, %c0_i32_0 : i32, i32
  }
  func.func @transform_9(%arg0: i32, %arg1: memref<2xi32, #tpu.memory_space<smem>>) -> (i32, i32) {
    %c0_i32 = arith.constant 0 : i32
    %c0_i32_0 = arith.constant 0 : i32
    %c0_i32_1 = arith.constant 0 : i32
    return %c0_i32, %c0_i32_0 : i32, i32
  }
  func.func @transform_10(%arg0: i32, %arg1: memref<2xi32, #tpu.memory_space<smem>>) -> (i32, i32) {
    %c0_i32 = arith.constant 0 : i32
    %c0_i32_0 = arith.constant 0 : i32
    %c0_i32_1 = arith.constant 0 : i32
    return %c0_i32, %c0_i32_0 : i32, i32
  }
  func.func @transform_11(%arg0: i32, %arg1: memref<2xi32, #tpu.memory_space<smem>>) -> (i32, i32) {
    %c0_i32 = arith.constant 0 : i32
    %c0_i32_0 = arith.constant 0 : i32
    %c0_i32_1 = arith.constant 0 : i32
    return %c0_i32, %c0_i32_0 : i32, i32
  }
  func.func @transform_12(%arg0: i32, %arg1: memref<2xi32, #tpu.memory_space<smem>>) -> (i32, i32) {
    %c0_i32 = arith.constant 0 : i32
    %c0_i32_0 = arith.constant 0 : i32
    %c0_i32_1 = arith.constant 0 : i32
    return %c0_i32, %c0_i32_0 : i32, i32
  }
  func.func @transform_13(%arg0: i32, %arg1: memref<2xi32, #tpu.memory_space<smem>>) -> (i32, i32) {
    %c0_i32 = arith.constant 0 : i32
    %c0_i32_0 = arith.constant 0 : i32
    %c0_i32_1 = arith.constant 0 : i32
    return %c0_i32, %c0_i32_0 : i32, i32
  }
  func.func @transform_14(%arg0: i32, %arg1: memref<2xi32, #tpu.memory_space<smem>>) -> (i32, i32) {
    %c0_i32 = arith.constant 0 : i32
    %c0_i32_0 = arith.constant 0 : i32
    %c0_i32_1 = arith.constant 0 : i32
    return %c0_i32, %c0_i32_0 : i32, i32
  }
  func.func @transform_15(%arg0: i32, %arg1: memref<2xi32, #tpu.memory_space<smem>>) -> (i32, i32) {
    %c0_i32 = arith.constant 0 : i32
    %c0_i32_0 = arith.constant 0 : i32
    %c0_i32_1 = arith.constant 0 : i32
    return %c0_i32, %c0_i32_0 : i32, i32
  }
  func.func @transform_16(%arg0: i32, %arg1: memref<2xi32, #tpu.memory_space<smem>>) -> (i32, i32) {
    %c0_i32 = arith.constant 0 : i32
    %c0_i32_0 = arith.constant 0 : i32
    %c0_i32_1 = arith.constant 0 : i32
    return %c0_i32, %c0_i32_0 : i32, i32
  }
  func.func @transform_17(%arg0: i32, %arg1: memref<2xi32, #tpu.memory_space<smem>>) -> (i32, i32, i32) {
    %c0_i32 = arith.constant 0 : i32
    %c0_i32_0 = arith.constant 0 : i32
    %c0_i32_1 = arith.constant 0 : i32
    return %arg0, %c0_i32, %c0_i32_0 : i32, i32, i32
  }
}

</mosaic_0001>

<llo_original>
// kernel: tpu_custom_call.1
$region0: #{tpu_custom_call.1}
  #allocation0 [shape = 'u32[]', space=smem, size = 0x4, offset = 0x4, fixed_abs, tag = 'smem constant byte address 0x4 - core index']
  #allocation1 [shape = 'u32[144,128]{1,0:T(1,128)}', space=vmem, size = 0x12000, scoped, tag = 'internal scratch']
  #allocation2 [shape = 'f32[4,8,8]{2,1,0:T(8,128)}', space=vmem, size = 0x4000, scoped, tag = 'scratch operand']
  #allocation3 [shape = 'f32[4,8,8]{2,1,0:T(8,128)}', space=vmem, size = 0x4000, scoped, tag = 'scratch operand']
  #allocation4 [shape = 'f32[4,8,8]{2,1,0:T(8,128)}', space=vmem, size = 0x4000, scoped, tag = 'scratch operand']
  #allocation5 [shape = 'f32[4,8,8]{2,1,0:T(8,128)}', space=vmem, size = 0x4000, scoped, tag = 'scratch operand']
  #allocation6 [shape = 'f32[4,8,8]{2,1,0:T(8,128)}', space=vmem, size = 0x4000, scoped, tag = 'scratch operand']
  #allocation7 [shape = 's32[1]{0}', space=sflag, size = 0x4, scoped, tag = 'scoped memory for tpu_custom_call.1']
  #allocation8 [shape = 'u8[512]{0}', space=smem, size = 0x200, scoped, tag = 'prefetched SMEM operand 0']
  %s0 = inlined_call_operand.hbm [shape: s32[2], index: 0, kind: input, shape index: {}]
  %s1 = inlined_call_operand.hbm [shape: f32[2,8,32], index: 1, kind: input, shape index: {}]
  %s2 = inlined_call_operand.hbm [shape: f32[2,8,32], index: 2, kind: input, shape index: {}]
  %s3 = inlined_call_operand.vmem [shape: f32[32,96], index: 3, kind: input, shape index: {}]
  %s4 = inlined_call_operand.vmem [shape: f32[32,32], index: 4, kind: input, shape index: {}]
  %s5 = inlined_call_operand.vmem [shape: f32[1,32], index: 5, kind: input, shape index: {}]
  %s6 = inlined_call_operand.vmem [shape: f32[1,32], index: 6, kind: input, shape index: {}]
  %s7 = inlined_call_operand.vmem [shape: f32[32,32], index: 7, kind: input, shape index: {}]
  %s8 = inlined_call_operand.hbm [shape: f32[32,64], index: 8, kind: input, shape index: {}]
  %s9 = inlined_call_operand.hbm [shape: f32[32,32], index: 9, kind: input, shape index: {}]
  %s10 = inlined_call_operand.vmem [shape: f32[1,32], index: 10, kind: input, shape index: {}]
  %s11 = inlined_call_operand.vmem [shape: f32[1,32], index: 11, kind: input, shape index: {}]
  %s12 = inlined_call_operand.hbm [shape: f32[32,64], index: 12, kind: input, shape index: {}]
  %s13 = inlined_call_operand.vmem [shape: f32[1,64], index: 13, kind: input, shape index: {}]
  %s14 = inlined_call_operand.vmem [shape: f32[64,32], index: 14, kind: input, shape index: {}]
  %s15 = inlined_call_operand.vmem [shape: f32[1,32], index: 15, kind: input, shape index: {}]
  %s16 = inlined_call_operand.vmem [shape: f32[1,32], index: 16, kind: input, shape index: {}]
  %s17 = inlined_call_operand.vmem [shape: f32[1,32], index: 17, kind: input, shape index: {}]
  %s18 = inlined_call_operand.hbm [shape: f32[2,1,256], index: 18, kind: output, shape index: {}]
  %s19 = sld [smem:[#allocation0]]
  $region121: #{tpu_custom_call.1} parent=0
    _
  %s21 = ssub.s32 1, %s19
  %s22 = scalar_select 0, %s21, %s19
  %24 = dma.hbm_to_smem %s0, 16, [#allocation8], [#allocation7]
  %25 = dma.done [#allocation7], 16
  %26 = sfence
  $region1: #{tpu_custom_call.1} parent=0
    #allocation9 [shape = 'u8[8192]{0}', space=vmem, size = 0x2000, scoped, tag = 'input window, operand 1']
    #allocation10 [shape = 's32[2]{0}', space=sflag, size = 0x8, scoped, tag = 'scoped memory for tpu_custom_call.1']
    #allocation11 [shape = 's32[2]{0}', space=sflag, size = 0x8, scoped, tag = 'scoped memory for tpu_custom_call.1']
    #allocation12 [shape = 'u8[8192]{0}', space=vmem, size = 0x2000, scoped, tag = 'input window, operand 2']
    #allocation13 [shape = 's32[2]{0}', space=sflag, size = 0x8, scoped, tag = 'scoped memory for tpu_custom_call.1']
    #allocation14 [shape = 'u8[16384]{0}', space=vmem, size = 0x4000, scoped, tag = 'input window, operand 8, single buffered']
    #allocation15 [shape = 'u8[16384]{0}', space=vmem, size = 0x4000, scoped, tag = 'input window, operand 9, single buffered']
    #allocation16 [shape = 's32[1]{0}', space=sflag, size = 0x4, scoped, tag = 'scoped memory for tpu_custom_call.1']
    #allocation17 [shape = 'u8[16384]{0}', space=vmem, size = 0x4000, scoped, tag = 'input window, operand 12, single buffered']
    #allocation18 [shape = 'u8[2048]{0}', space=vmem, size = 0x800, scoped, tag = 'output window, operand 0']
    %27 = vsyncpa [#allocation10], 0
    %s28 = scalar_lea.sflag [#allocation10], 1
    %29 = vsyncpa %s28, 0
    %30 = vsyncpa [#allocation13], 0
    %s31 = scalar_lea.sflag [#allocation13], 1
    %32 = vsyncpa %s31, 0
    %33 = vsyncpa [#allocation16], 0
    %34 = vsyncpa [#allocation11], 0
    %s35 = scalar_lea.sflag [#allocation11], 1
    %36 = vsyncpa %s35, 0
    loop: start=0, step=1, limit=4
    $region2: #{tpu_custom_call.1} parent=1 // loop_pre_header
      _
    $region3: #{tpu_custom_call.1} parent=1 // loop_header
      %s38 = sphi 0, %s42
      %p39 = scmp.ge.s32.totalorder %s38, 4
      %s48 = sphi 0, %s50
      %s51 = sphi 0, %s48
      %s52 = sphi 0, %s51
      %s68 = sphi 0, %s52
      %s74 = sphi 0, %s76
      %s77 = sphi 0, %s74
      %s78 = sphi 0, %s77
      %s94 = sphi 0, %s78
      %s98 = sphi 0, %s98
      %s100 = sphi 0, %s98
      %s101 = sphi 0, %s100
      %s115 = sphi 0, %s101
      %s119 = sphi 0, %s119
      %s121 = sphi 0, %s119
      %s122 = sphi 0, %s121
      %s136 = sphi 0, %s122
      %s140 = sphi 0, %s140
      %s142 = sphi 0, %s140
      %s143 = sphi 0, %s142
      %s157 = sphi 0, %s143
      %s161 = sphi 0, %s161
      %s163 = sphi 0, %s161
      %s164 = sphi 0, %s163
      %s178 = sphi 0, %s164
      %s182 = sphi 0, %s182
      %s184 = sphi 0, %s182
      %s185 = sphi 0, %s184
      %s199 = sphi 0, %s185
      %s203 = sphi 0, %s203
      %s205 = sphi 0, %s203
      %s206 = sphi 0, %s205
      %s220 = sphi 0, %s206
      %s224 = sphi 0, %s224
      %s226 = sphi 0, %s224
      %s227 = sphi 0, %s226
      %s241 = sphi 0, %s227
      %s245 = sphi 0, %s245
      %s247 = sphi 0, %s245
      %s248 = sphi 0, %s247
      %s262 = sphi 0, %s248
      %s266 = sphi 0, %s266
      %s268 = sphi 0, %s266
      %s269 = sphi 0, %s268
      %s283 = sphi 0, %s269
      %s287 = sphi 0, %s287
      %s289 = sphi 0, %s287
      %s290 = sphi 0, %s289
      %s304 = sphi 0, %s290
      %s308 = sphi 0, %s308
      %s310 = sphi 0, %s308
      %s311 = sphi 0, %s310
      %s325 = sphi 0, %s311
      %s329 = sphi 0, %s329
      %s331 = sphi 0, %s329
      %s332 = sphi 0, %s331
      %s346 = sphi 0, %s332
      %s350 = sphi 0, %s350
      %s352 = sphi 0, %s350
      %s353 = sphi 0, %s352
      %s367 = sphi 0, %s353
      %s371 = sphi 0, %s371
      %s373 = sphi 0, %s371
      %s374 = sphi 0, %s373
      %s388 = sphi 0, %s374
      %s392 = sphi 0, %s392
      %s394 = sphi 0, %s392
      %s395 = sphi 0, %s394
      %s409 = sphi 0, %s395
      %s415 = sphi 0, %s417
      %s418 = sphi 0, %s415
      %s419 = sphi 0, %s418
      %s435 = sphi 0, %s419
    $region4: #{tpu_custom_call.1} parent=1 // loop_header_branch
      %41 = sbr.rel (%p39) target = $region8
    $region5: #{tpu_custom_call.1} parent=1 // loop_body
      %s43 = ssub.s32 %s38, 1
      %s44 = ssub.s32 %s38, 2
      %s45 = sadd.s32 %s38, 1
      %s46 = ssub.s32 %s38, %s45
      %p47 = scmp.eq.s32.totalorder %s46, 0
      %s49 = sadd.s32 %s48, 1
      %s50 = scalar_select %p47, %s48, %s49
      %p53 = pneg %p47
      %p54 = scmp.eq.s32.totalorder %s38, 1
      %p55 = por %p53, %p54
      %p56 = scmp.ne.s32.totalorder %s48, %s51
      %p57 = scmp.eq.s32.totalorder %s38, 0
      %p58 = por %p56, %p57
      %p59 = scmp.ne.s32.totalorder %s48, %s51
      %p60 = scmp.eq.s32.totalorder %s43, 1
      %p61 = por %p59, %p60
      %p62 = scmp.ne.s32.totalorder %s51, %s52
      %p63 = scmp.eq.s32.totalorder %s43, 0
      %p64 = por %p62, %p63
      %p65 = scmp.ne.s32.totalorder %s51, %s52
      %p66 = scmp.eq.s32.totalorder %s44, 1
      %p67 = por %p65, %p66
      %p69 = scmp.ne.s32.totalorder %s52, %s68
      %p70 = scmp.eq.s32.totalorder %s44, 0
      %p71 = por %p69, %p70
      %s72 = ssub.s32 %s38, %s45
      %p73 = scmp.eq.s32.totalorder %s72, 0
      %s75 = sadd.s32 %s74, 1
      %s76 = scalar_select %p73, %s74, %s75
      %p79 = pneg %p73
      %p80 = scmp.eq.s32.totalorder %s38, 1
      %p81 = por %p79, %p80
      %p82 = scmp.ne.s32.totalorder %s74, %s77
      %p83 = scmp.eq.s32.totalorder %s38, 0
      %p84 = por %p82, %p83
      %p85 = scmp.ne.s32.totalorder %s74, %s77
      %p86 = scmp.eq.s32.totalorder %s43, 1
      %p87 = por %p85, %p86
      %p88 = scmp.ne.s32.totalorder %s77, %s78
      %p89 = scmp.eq.s32.totalorder %s43, 0
      %p90 = por %p88, %p89
      %p91 = scmp.ne.s32.totalorder %s77, %s78
      %p92 = scmp.eq.s32.totalorder %s44, 1
      %p93 = por %p91, %p92
      %p95 = scmp.ne.s32.totalorder %s78, %s94
      %p96 = scmp.eq.s32.totalorder %s44, 0
      %p97 = por %p95, %p96
      %s99 = sadd.s32 %s98, 1
      %p102 = scmp.eq.s32.totalorder %s38, 1
      %p103 = scmp.ne.s32.totalorder %s98, %s100
      %p104 = scmp.eq.s32.totalorder %s38, 0
      %p105 = por %p103, %p104
      %p106 = scmp.ne.s32.totalorder %s98, %s100
      %p107 = scmp.eq.s32.totalorder %s43, 1
      %p108 = por %p106, %p107
      %p109 = scmp.ne.s32.totalorder %s100, %s101
      %p110 = scmp.eq.s32.totalorder %s43, 0
      %p111 = por %p109, %p110
      %p112 = scmp.ne.s32.totalorder %s100, %s101
      %p113 = scmp.eq.s32.totalorder %s44, 1
      %p114 = por %p112, %p113
      %p116 = scmp.ne.s32.totalorder %s101, %s115
      %p117 = scmp.eq.s32.totalorder %s44, 0
      %p118 = por %p116, %p117
      %s120 = sadd.s32 %s119, 1
      %p123 = scmp.eq.s32.totalorder %s38, 1
      %p124 = scmp.ne.s32.totalorder %s119, %s121
      %p125 = scmp.eq.s32.totalorder %s38, 0
      %p126 = por %p124, %p125
      %p127 = scmp.ne.s32.totalorder %s119, %s121
      %p128 = scmp.eq.s32.totalorder %s43, 1
      %p129 = por %p127, %p128
      %p130 = scmp.ne.s32.totalorder %s121, %s122
      %p131 = scmp.eq.s32.totalorder %s43, 0
      %p132 = por %p130, %p131
      %p133 = scmp.ne.s32.totalorder %s121, %s122
      %p134 = scmp.eq.s32.totalorder %s44, 1
      %p135 = por %p133, %p134
      %p137 = scmp.ne.s32.totalorder %s122, %s136
      %p138 = scmp.eq.s32.totalorder %s44, 0
      %p139 = por %p137, %p138
      %s141 = sadd.s32 %s140, 1
      %p144 = scmp.eq.s32.totalorder %s38, 1
      %p145 = scmp.ne.s32.totalorder %s140, %s142
      %p146 = scmp.eq.s32.totalorder %s38, 0
      %p147 = por %p145, %p146
      %p148 = scmp.ne.s32.totalorder %s140, %s142
      %p149 = scmp.eq.s32.totalorder %s43, 1
      %p150 = por %p148, %p149
      %p151 = scmp.ne.s32.totalorder %s142, %s143
      %p152 = scmp.eq.s32.totalorder %s43, 0
      %p153 = por %p151, %p152
      %p154 = scmp.ne.s32.totalorder %s142, %s143
      %p155 = scmp.eq.s32.totalorder %s44, 1
      %p156 = por %p154, %p155
      %p158 = scmp.ne.s32.totalorder %s143, %s157
      %p159 = scmp.eq.s32.totalorder %s44, 0
      %p160 = por %p158, %p159
      %s162 = sadd.s32 %s161, 1
      %p165 = scmp.eq.s32.totalorder %s38, 1
      %p166 = scmp.ne.s32.totalorder %s161, %s163
      %p167 = scmp.eq.s32.totalorder %s38, 0
      %p168 = por %p166, %p167
      %p169 = scmp.ne.s32.totalorder %s161, %s163
      %p170 = scmp.eq.s32.totalorder %s43, 1
      %p171 = por %p169, %p170
      %p172 = scmp.ne.s32.totalorder %s163, %s164
      %p173 = scmp.eq.s32.totalorder %s43, 0
      %p174 = por %p172, %p173
      %p175 = scmp.ne.s32.totalorder %s163, %s164
      %p176 = scmp.eq.s32.totalorder %s44, 1
      %p177 = por %p175, %p176
      %p179 = scmp.ne.s32.totalorder %s164, %s178
      %p180 = scmp.eq.s32.totalorder %s44, 0
      %p181 = por %p179, %p180
      %s183 = sadd.s32 %s182, 1
      %p186 = scmp.eq.s32.totalorder %s38, 1
      %p187 = scmp.ne.s32.totalorder %s182, %s184
      %p188 = scmp.eq.s32.totalorder %s38, 0
      %p189 = por %p187, %p188
      %p190 = scmp.ne.s32.totalorder %s182, %s184
      %p191 = scmp.eq.s32.totalorder %s43, 1
      %p192 = por %p190, %p191
      %p193 = scmp.ne.s32.totalorder %s184, %s185
      %p194 = scmp.eq.s32.totalorder %s43, 0
      %p195 = por %p193, %p194
      %p196 = scmp.ne.s32.totalorder %s184, %s185
      %p197 = scmp.eq.s32.totalorder %s44, 1
      %p198 = por %p196, %p197
      %p200 = scmp.ne.s32.totalorder %s185, %s199
      %p201 = scmp.eq.s32.totalorder %s44, 0
      %p202 = por %p200, %p201
      %s204 = sadd.s32 %s203, 1
      %p207 = scmp.eq.s32.totalorder %s38, 1
      %p208 = scmp.ne.s32.totalorder %s203, %s205
      %p209 = scmp.eq.s32.totalorder %s38, 0
      %p210 = por %p208, %p209
      %p211 = scmp.ne.s32.totalorder %s203, %s205
      %p212 = scmp.eq.s32.totalorder %s43, 1
      %p213 = por %p211, %p212
      %p214 = scmp.ne.s32.totalorder %s205, %s206
      %p215 = scmp.eq.s32.totalorder %s43, 0
      %p216 = por %p214, %p215
      %p217 = scmp.ne.s32.totalorder %s205, %s206
      %p218 = scmp.eq.s32.totalorder %s44, 1
      %p219 = por %p217, %p218
      %p221 = scmp.ne.s32.totalorder %s206, %s220
      %p222 = scmp.eq.s32.totalorder %s44, 0
      %p223 = por %p221, %p222
      %s225 = sadd.s32 %s224, 1
      %p228 = scmp.eq.s32.totalorder %s38, 1
      %p229 = scmp.ne.s32.totalorder %s224, %s226
      %p230 = scmp.eq.s32.totalorder %s38, 0
      %p231 = por %p229, %p230
      %p232 = scmp.ne.s32.totalorder %s224, %s226
      %p233 = scmp.eq.s32.totalorder %s43, 1
      %p234 = por %p232, %p233
      %p235 = scmp.ne.s32.totalorder %s226, %s227
      %p236 = scmp.eq.s32.totalorder %s43, 0
      %p237 = por %p235, %p236
      %p238 = scmp.ne.s32.totalorder %s226, %s227
      %p239 = scmp.eq.s32.totalorder %s44, 1
      %p240 = por %p238, %p239
      %p242 = scmp.ne.s32.totalorder %s227, %s241
      %p243 = scmp.eq.s32.totalorder %s44, 0
      %p244 = por %p242, %p243
      %s246 = sadd.s32 %s245, 1
      %p249 = scmp.eq.s32.totalorder %s38, 1
      %p250 = scmp.ne.s32.totalorder %s245, %s247
      %p251 = scmp.eq.s32.totalorder %s38, 0
      %p252 = por %p250, %p251
      %p253 = scmp.ne.s32.totalorder %s245, %s247
      %p254 = scmp.eq.s32.totalorder %s43, 1
      %p255 = por %p253, %p254
      %p256 = scmp.ne.s32.totalorder %s247, %s248
      %p257 = scmp.eq.s32.totalorder %s43, 0
      %p258 = por %p256, %p257
      %p259 = scmp.ne.s32.totalorder %s247, %s248
      %p260 = scmp.eq.s32.totalorder %s44, 1
      %p261 = por %p259, %p260
      %p263 = scmp.ne.s32.totalorder %s248, %s262
      %p264 = scmp.eq.s32.totalorder %s44, 0
      %p265 = por %p263, %p264
      %s267 = sadd.s32 %s266, 1
      %p270 = scmp.eq.s32.totalorder %s38, 1
      %p271 = scmp.ne.s32.totalorder %s266, %s268
      %p272 = scmp.eq.s32.totalorder %s38, 0
      %p273 = por %p271, %p272
      %p274 = scmp.ne.s32.totalorder %s266, %s268
      %p275 = scmp.eq.s32.totalorder %s43, 1
      %p276 = por %p274, %p275
      %p277 = scmp.ne.s32.totalorder %s268, %s269
      %p278 = scmp.eq.s32.totalorder %s43, 0
      %p279 = por %p277, %p278
      %p280 = scmp.ne.s32.totalorder %s268, %s269
      %p281 = scmp.eq.s32.totalorder %s44, 1
      %p282 = por %p280, %p281
      %p284 = scmp.ne.s32.totalorder %s269, %s283
      %p285 = scmp.eq.s32.totalorder %s44, 0
      %p286 = por %p284, %p285
      %s288 = sadd.s32 %s287, 1
      %p291 = scmp.eq.s32.totalorder %s38, 1
      %p292 = scmp.ne.s32.totalorder %s287, %s289
      %p293 = scmp.eq.s32.totalorder %s38, 0
      %p294 = por %p292, %p293
      %p295 = scmp.ne.s32.totalorder %s287, %s289
      %p296 = scmp.eq.s32.totalorder %s43, 1
      %p297 = por %p295, %p296
      %p298 = scmp.ne.s32.totalorder %s289, %s290
      %p299 = scmp.eq.s32.totalorder %s43, 0
      %p300 = por %p298, %p299
      %p301 = scmp.ne.s32.totalorder %s289, %s290
      %p302 = scmp.eq.s32.totalorder %s44, 1
      %p303 = por %p301, %p302
      %p305 = scmp.ne.s32.totalorder %s290, %s304
      %p306 = scmp.eq.s32.totalorder %s44, 0
      %p307 = por %p305, %p306
      %s309 = sadd.s32 %s308, 1
      %p312 = scmp.eq.s32.totalorder %s38, 1
      %p313 = scmp.ne.s32.totalorder %s308, %s310
      %p314 = scmp.eq.s32.totalorder %s38, 0
      %p315 = por %p313, %p314
      %p316 = scmp.ne.s32.totalorder %s308, %s310
      %p317 = scmp.eq.s32.totalorder %s43, 1
      %p318 = por %p316, %p317
      %p319 = scmp.ne.s32.totalorder %s310, %s311
      %p320 = scmp.eq.s32.totalorder %s43, 0
      %p321 = por %p319, %p320
      %p322 = scmp.ne.s32.totalorder %s310, %s311
      %p323 = scmp.eq.s32.totalorder %s44, 1
      %p324 = por %p322, %p323
      %p326 = scmp.ne.s32.totalorder %s311, %s325
      %p327 = scmp.eq.s32.totalorder %s44, 0
      %p328 = por %p326, %p327
      %s330 = sadd.s32 %s329, 1
      %p333 = scmp.eq.s32.totalorder %s38, 1
      %p334 = scmp.ne.s32.totalorder %s329, %s331
      %p335 = scmp.eq.s32.totalorder %s38, 0
      %p336 = por %p334, %p335
      %p337 = scmp.ne.s32.totalorder %s329, %s331
      %p338 = scmp.eq.s32.totalorder %s43, 1
      %p339 = por %p337, %p338
      %p340 = scmp.ne.s32.totalorder %s331, %s332
      %p341 = scmp.eq.s32.totalorder %s43, 0
      %p342 = por %p340, %p341
      %p343 = scmp.ne.s32.totalorder %s331, %s332
      %p344 = scmp.eq.s32.totalorder %s44, 1
      %p345 = por %p343, %p344
      %p347 = scmp.ne.s32.totalorder %s332, %s346
      %p348 = scmp.eq.s32.totalorder %s44, 0
      %p349 = por %p347, %p348
      %s351 = sadd.s32 %s350, 1
      %p354 = scmp.eq.s32.totalorder %s38, 1
      %p355 = scmp.ne.s32.totalorder %s350, %s352
      %p356 = scmp.eq.s32.totalorder %s38, 0
      %p357 = por %p355, %p356
      %p358 = scmp.ne.s32.totalorder %s350, %s352
      %p359 = scmp.eq.s32.totalorder %s43, 1
      %p360 = por %p358, %p359
      %p361 = scmp.ne.s32.totalorder %s352, %s353
      %p362 = scmp.eq.s32.totalorder %s43, 0
      %p363 = por %p361, %p362
      %p364 = scmp.ne.s32.totalorder %s352, %s353
      %p365 = scmp.eq.s32.totalorder %s44, 1
      %p366 = por %p364, %p365
      %p368 = scmp.ne.s32.totalorder %s353, %s367
      %p369 = scmp.eq.s32.totalorder %s44, 0
      %p370 = por %p368, %p369
      %s372 = sadd.s32 %s371, 1
      %p375 = scmp.eq.s32.totalorder %s38, 1
      %p376 = scmp.ne.s32.totalorder %s371, %s373
      %p377 = scmp.eq.s32.totalorder %s38, 0
      %p378 = por %p376, %p377
      %p379 = scmp.ne.s32.totalorder %s371, %s373
      %p380 = scmp.eq.s32.totalorder %s43, 1
      %p381 = por %p379, %p380
      %p382 = scmp.ne.s32.totalorder %s373, %s374
      %p383 = scmp.eq.s32.totalorder %s43, 0
      %p384 = por %p382, %p383
      %p385 = scmp.ne.s32.totalorder %s373, %s374
      %p386 = scmp.eq.s32.totalorder %s44, 1
      %p387 = por %p385, %p386
      %p389 = scmp.ne.s32.totalorder %s374, %s388
      %p390 = scmp.eq.s32.totalorder %s44, 0
      %p391 = por %p389, %p390
      %s393 = sadd.s32 %s392, 1
      %p396 = scmp.eq.s32.totalorder %s38, 1
      %p397 = scmp.ne.s32.totalorder %s392, %s394
      %p398 = scmp.eq.s32.totalorder %s38, 0
      %p399 = por %p397, %p398
      %p400 = scmp.ne.s32.totalorder %s392, %s394
      %p401 = scmp.eq.s32.totalorder %s43, 1
      %p402 = por %p400, %p401
      %p403 = scmp.ne.s32.totalorder %s394, %s395
      %p404 = scmp.eq.s32.totalorder %s43, 0
      %p405 = por %p403, %p404
      %p406 = scmp.ne.s32.totalorder %s394, %s395
      %p407 = scmp.eq.s32.totalorder %s44, 1
      %p408 = por %p406, %p407
      %p410 = scmp.ne.s32.totalorder %s395, %s409
      %p411 = scmp.eq.s32.totalorder %s44, 0
      %p412 = por %p410, %p411
      %s413 = ssub.s32 %s38, %s45
      %p414 = scmp.eq.s32.totalorder %s413, 0
      %s416 = sadd.s32 %s415, 1
      %s417 = scalar_select %p414, %s415, %s416
      %p420 = pneg %p414
      %p421 = scmp.eq.s32.totalorder %s38, 1
      %p422 = por %p420, %p421
      %p423 = scmp.ne.s32.totalorder %s415, %s418
      %p424 = scmp.eq.s32.totalorder %s38, 0
      %p425 = por %p423, %p424
      %p426 = scmp.ne.s32.totalorder %s415, %s418
      %p427 = scmp.eq.s32.totalorder %s43, 1
      %p428 = por %p426, %p427
      %p429 = scmp.ne.s32.totalorder %s418, %s419
      %p430 = scmp.eq.s32.totalorder %s43, 0
      %p431 = por %p429, %p430
      %p432 = scmp.ne.s32.totalorder %s418, %s419
      %p433 = scmp.eq.s32.totalorder %s44, 1
      %p434 = por %p432, %p433
      %p436 = scmp.ne.s32.totalorder %s419, %s435
      %p437 = scmp.eq.s32.totalorder %s44, 0
      %p438 = por %p436, %p437
      %p439 = scmp.le.s32.totalorder 1, %s38
      %p440 = scmp.lt.s32.totalorder %s38, 3
      %p441 = pnand %p439, %p440
      %p442 = pneg %p441
      // Predicated region
      $region9: #{tpu_custom_call.1} parent=5 // pred_check
        _
      $region10: #{tpu_custom_call.1} parent=5 // pred_check_branch
        %444 = sbr.rel (%p441) target = $region12
      $region11: #{tpu_custom_call.1} parent=5 // pred_region
        %s445 = ssub.s32 %s38, 1
        // Predicated region
        $region13: #{tpu_custom_call.1} parent=11 // pred_check
          %p446 = pneg %p111
        $region14: #{tpu_custom_call.1} parent=11 // pred_check_branch
          %448 = sbr.rel (%p446) target = $region16
        $region15: #{tpu_custom_call.1} parent=11 // pred_region
          _
        $region16: #{tpu_custom_call.1} parent=11 // pred_fallthru
          _
        // Predicated region
        $region17: #{tpu_custom_call.1} parent=11 // pred_check
          %p449 = pneg %p132
        $region18: #{tpu_custom_call.1} parent=11 // pred_check_branch
          %451 = sbr.rel (%p449) target = $region20
        $region19: #{tpu_custom_call.1} parent=11 // pred_region
          _
        $region20: #{tpu_custom_call.1} parent=11 // pred_fallthru
          _
        // Predicated region
        $region21: #{tpu_custom_call.1} parent=11 // pred_check
          %p452 = pneg %p153
        $region22: #{tpu_custom_call.1} parent=11 // pred_check_branch
          %454 = sbr.rel (%p452) target = $region24
        $region23: #{tpu_custom_call.1} parent=11 // pred_region
          _
        $region24: #{tpu_custom_call.1} parent=11 // pred_fallthru
          _
        // Predicated region
        $region25: #{tpu_custom_call.1} parent=11 // pred_check
          %p455 = pneg %p174
        $region26: #{tpu_custom_call.1} parent=11 // pred_check_branch
          %457 = sbr.rel (%p455) target = $region28
        $region27: #{tpu_custom_call.1} parent=11 // pred_region
          _
        $region28: #{tpu_custom_call.1} parent=11 // pred_fallthru
          _
        // Predicated region
        $region29: #{tpu_custom_call.1} parent=11 // pred_check
          %p458 = pneg %p195
        $region30: #{tpu_custom_call.1} parent=11 // pred_check_branch
          %460 = sbr.rel (%p458) target = $region32
        $region31: #{tpu_custom_call.1} parent=11 // pred_region
          _
        $region32: #{tpu_custom_call.1} parent=11 // pred_fallthru
          _
        // Predicated region
        $region33: #{tpu_custom_call.1} parent=11 // pred_check
          %p461 = pneg %p216
        $region34: #{tpu_custom_call.1} parent=11 // pred_check_branch
          %463 = sbr.rel (%p461) target = $region36
        $region35: #{tpu_custom_call.1} parent=11 // pred_region
          %s465 = ssub.s32 512, 512
          %466 = vsyncadd [#allocation13], %s465
          %s467 = sshll.u32 [#allocation14], 4
          %s468 = int_to_ptr.vmem [resolvable:$true] %s467
          %473 = dma.hbm_to_vmem [thread:$0]  %s8, 512, %s468, [#allocation13], 128, 128, 8
        $region36: #{tpu_custom_call.1} parent=11 // pred_fallthru
          _
        // Predicated region
        $region37: #{tpu_custom_call.1} parent=11 // pred_check
          %p474 = pneg %p237
        $region38: #{tpu_custom_call.1} parent=11 // pred_check_branch
          %476 = sbr.rel (%p474) target = $region40
        $region39: #{tpu_custom_call.1} parent=11 // pred_region
          %s478 = ssub.s32 512, 512
          %479 = vsyncadd [#allocation16], %s478
          %s480 = sshll.u32 [#allocation15], 4
          %s481 = int_to_ptr.vmem [resolvable:$true] %s480
          %486 = dma.hbm_to_vmem [thread:$0]  %s9, 512, %s481, [#allocation16], 128, 128, 8
        $region40: #{tpu_custom_call.1} parent=11 // pred_fallthru
          _
        // Predicated region
        $region41: #{tpu_custom_call.1} parent=11 // pred_check
          %p487 = pneg %p258
        $region42: #{tpu_custom_call.1} parent=11 // pred_check_branch
          %489 = sbr.rel (%p487) target = $region44
        $region43: #{tpu_custom_call.1} parent=11 // pred_region
          _
        $region44: #{tpu_custom_call.1} parent=11 // pred_fallthru
          _
        // Predicated region
        $region45: #{tpu_custom_call.1} parent=11 // pred_check
          %p490 = pneg %p279
        $region46: #{tpu_custom_call.1} parent=11 // pred_check_branch
          %492 = sbr.rel (%p490) target = $region48
        $region47: #{tpu_custom_call.1} parent=11 // pred_region
          _
        $region48: #{tpu_custom_call.1} parent=11 // pred_fallthru
          _
        // Predicated region
        $region49: #{tpu_custom_call.1} parent=11 // pred_check
          %p493 = pneg %p300
        $region50: #{tpu_custom_call.1} parent=11 // pred_check_branch
          %495 = sbr.rel (%p493) target = $region52
        $region51: #{tpu_custom_call.1} parent=11 // pred_region
          %s497 = ssub.s32 512, 512
          %498 = vsyncadd [#allocation16], %s497
          %s499 = sshll.u32 [#allocation17], 4
          %s500 = int_to_ptr.vmem [resolvable:$true] %s499
          %505 = dma.hbm_to_vmem [thread:$0]  %s12, 512, %s500, [#allocation16], 128, 128, 8
        $region52: #{tpu_custom_call.1} parent=11 // pred_fallthru
          _
        // Predicated region
        $region53: #{tpu_custom_call.1} parent=11 // pred_check
          %p506 = pneg %p321
        $region54: #{tpu_custom_call.1} parent=11 // pred_check_branch
          %508 = sbr.rel (%p506) target = $region56
        $region55: #{tpu_custom_call.1} parent=11 // pred_region
          _
        $region56: #{tpu_custom_call.1} parent=11 // pred_fallthru
          _
        // Predicated region
        $region57: #{tpu_custom_call.1} parent=11 // pred_check
          %p509 = pneg %p342
        $region58: #{tpu_custom_call.1} parent=11 // pred_check_branch
          %511 = sbr.rel (%p509) target = $region60
        $region59: #{tpu_custom_call.1} parent=11 // pred_region
          _
        $region60: #{tpu_custom_call.1} parent=11 // pred_fallthru
          _
        // Predicated region
        $region61: #{tpu_custom_call.1} parent=11 // pred_check
          %p512 = pneg %p363
        $region62: #{tpu_custom_call.1} parent=11 // pred_check_branch
          %514 = sbr.rel (%p512) target = $region64
        $region63: #{tpu_custom_call.1} parent=11 // pred_region
          _
        $region64: #{tpu_custom_call.1} parent=11 // pred_fallthru
          _
        // Predicated region
        $region65: #{tpu_custom_call.1} parent=11 // pred_check
          %p515 = pneg %p384
        $region66: #{tpu_custom_call.1} parent=11 // pred_check_branch
          %517 = sbr.rel (%p515) target = $region68
        $region67: #{tpu_custom_call.1} parent=11 // pred_region
          _
        $region68: #{tpu_custom_call.1} parent=11 // pred_fallthru
          _
        // Predicated region
        $region69: #{tpu_custom_call.1} parent=11 // pred_check
          %p518 = pneg %p405
        $region70: #{tpu_custom_call.1} parent=11 // pred_check_branch
          %520 = sbr.rel (%p518) target = $region72
        $region71: #{tpu_custom_call.1} parent=11 // pred_region
          _
        $region72: #{tpu_custom_call.1} parent=11 // pred_fallthru
          _
      $region12: #{tpu_custom_call.1} parent=5 // pred_fallthru
        _
      %p521 = scmp.lt.s32.totalorder %s38, 2
      // Predicated region
      $region73: #{tpu_custom_call.1} parent=5 // pred_check
        %p522 = pneg %p521
      $region74: #{tpu_custom_call.1} parent=5 // pred_check_branch
        %524 = sbr.rel (%p522) target = $region76
      $region75: #{tpu_custom_call.1} parent=5 // pred_region
        // Predicated region
        $region77: #{tpu_custom_call.1} parent=75 // pred_check
          %p525 = pneg %p58
        $region78: #{tpu_custom_call.1} parent=75 // pred_check_branch
          %527 = sbr.rel (%p525) target = $region80
        $region79: #{tpu_custom_call.1} parent=75 // pred_region
          %s528 = sand.u32 %s48, 1
          %s529 = scalar_lea.sflag [#allocation10], %s528
          %s530 = sand.u32 %s48, 1
          %s531 = smul.addr %s530, 8
          %s532 = scalar_lea.vmem [#allocation9], %s531
          %s534 = ssub.s32 128, 128
          %535 = vsyncadd %s529, %s534
          %s536 = smul.addr %s38, 128
          %s537 = scalar_lea.hbm %s1, %s536
          %s539 = sshll.u32 %s532, 4
          %s540 = int_to_ptr.vmem [resolvable:$true] %s539
          %542 = dma.hbm_to_vmem [thread:$0]  %s537, 128, %s540, %s529
        $region80: #{tpu_custom_call.1} parent=75 // pred_fallthru
          _
        // Predicated region
        $region81: #{tpu_custom_call.1} parent=75 // pred_check
          %p543 = pneg %p84
        $region82: #{tpu_custom_call.1} parent=75 // pred_check_branch
          %545 = sbr.rel (%p543) target = $region84
        $region83: #{tpu_custom_call.1} parent=75 // pred_region
          %s546 = sand.u32 %s38, 1
          %s547 = scalar_lea.sflag [#allocation13], %s546
          %s548 = sand.u32 %s74, 1
          %s549 = smul.addr %s548, 8
          %s550 = scalar_lea.vmem [#allocation12], %s549
          %s552 = ssub.s32 128, 128
          %553 = vsyncadd %s547, %s552
          %s554 = smul.addr %s38, 128
          %s555 = scalar_lea.hbm %s2, %s554
          %s557 = sshll.u32 %s550, 4
          %s558 = int_to_ptr.vmem [resolvable:$true] %s557
          %560 = dma.hbm_to_vmem [thread:$0]  %s555, 128, %s558, %s547
        $region84: #{tpu_custom_call.1} parent=75 // pred_fallthru
          _
      $region76: #{tpu_custom_call.1} parent=5 // pred_fallthru
        _
      %p561 = scmp.le.s32.totalorder 1, %s38
      %p562 = scmp.lt.s32.totalorder %s38, 3
      %p563 = pnand %p561, %p562
      %p564 = pneg %p563
      // Predicated region
      $region85: #{tpu_custom_call.1} parent=5 // pred_check
        _
      $region86: #{tpu_custom_call.1} parent=5 // pred_check_branch
        %566 = sbr.rel (%p563) target = $region88
      $region87: #{tpu_custom_call.1} parent=5 // pred_region
        %s567 = ssub.s32 %s38, 1
        %s568 = sand.u32 %s51, 1
        %s569 = scalar_lea.sflag [#allocation10], %s568
        %s570 = sand.u32 %s51, 1
        %s571 = smul.addr %s570, 8
        %s572 = scalar_lea.vmem [#allocation9], %s571
        // Predicated region
        $region89: #{tpu_custom_call.1} parent=87 // pred_check
          %p573 = pneg %p64
        $region90: #{tpu_custom_call.1} parent=87 // pred_check_branch
          %575 = sbr.rel (%p573) target = $region92
        $region91: #{tpu_custom_call.1} parent=87 // pred_region
          %576 = dma.done %s569, 128
        $region92: #{tpu_custom_call.1} parent=87 // pred_fallthru
          _
        %s577 = sand.u32 %s43, 1
        %s578 = scalar_lea.sflag [#allocation13], %s577
        %s579 = sand.u32 %s77, 1
        %s580 = smul.addr %s579, 8
        %s581 = scalar_lea.vmem [#allocation12], %s580
        // Predicated region
        $region93: #{tpu_custom_call.1} parent=87 // pred_check
          %p582 = pneg %p90
        $region94: #{tpu_custom_call.1} parent=87 // pred_check_branch
          %584 = sbr.rel (%p582) target = $region96
        $region95: #{tpu_custom_call.1} parent=87 // pred_region
          %585 = dma.done %s578, 128
        $region96: #{tpu_custom_call.1} parent=87 // pred_fallthru
          _
        // Predicated region
        $region97: #{tpu_custom_call.1} parent=87 // pred_check
          %p586 = pneg %p216
        $region98: #{tpu_custom_call.1} parent=87 // pred_check_branch
          %588 = sbr.rel (%p586) target = $region100
        $region99: #{tpu_custom_call.1} parent=87 // pred_region
          %589 = dma.done [#allocation13], 512
        $region100: #{tpu_custom_call.1} parent=87 // pred_fallthru
          _
        // Predicated region
        $region101: #{tpu_custom_call.1} parent=87 // pred_check
          %p590 = pneg %p237
        $region102: #{tpu_custom_call.1} parent=87 // pred_check_branch
          %592 = sbr.rel (%p590) target = $region104
        $region103: #{tpu_custom_call.1} parent=87 // pred_region
          %593 = dma.done [#allocation16], 512
        $region104: #{tpu_custom_call.1} parent=87 // pred_fallthru
          _
        // Predicated region
        $region105: #{tpu_custom_call.1} parent=87 // pred_check
          %p594 = pneg %p300
        $region106: #{tpu_custom_call.1} parent=87 // pred_check_branch
          %596 = sbr.rel (%p594) target = $region108
        $region107: #{tpu_custom_call.1} parent=87 // pred_region
          %597 = dma.done [#allocation16], 512
        $region108: #{tpu_custom_call.1} parent=87 // pred_fallthru
          _
        %s598 = sand.u32 %s51, 1
        %s599 = scalar_lea.sflag [#allocation10], %s598
        %s600 = sand.u32 %s51, 1
        %s601 = smul.addr %s600, 8
        %s602 = scalar_lea.vmem [#allocation9], %s601
        %p603 = pneg %p64
        %p604 = pneg %p61
        %s605 = sand.u32 %s43, 1
        %s606 = scalar_lea.sflag [#allocation13], %s605
        %s607 = sand.u32 %s77, 1
        %s608 = smul.addr %s607, 8
        %s609 = scalar_lea.vmem [#allocation12], %s608
        %p610 = pneg %p90
        %p611 = pneg %p87
        %p612 = pneg %p111
        %p613 = pneg %p108
        %p614 = pneg %p132
        %p615 = pneg %p129
        %p616 = pneg %p153
        %p617 = pneg %p150
        %p618 = pneg %p174
        %p619 = pneg %p171
        %p620 = pneg %p195
        %p621 = pneg %p192
        %p622 = pneg %p216
        %p623 = pneg %p213
        %p624 = pneg %p237
        %p625 = pneg %p234
        %p626 = pneg %p258
        %p627 = pneg %p255
        %p628 = pneg %p279
        %p629 = pneg %p276
        %p630 = pneg %p300
        %p631 = pneg %p297
        %p632 = pneg %p321
        %p633 = pneg %p318
        %p634 = pneg %p342
        %p635 = pneg %p339
        %p636 = pneg %p363
        %p637 = pneg %p360
        %p638 = pneg %p384
        %p639 = pneg %p381
        %p640 = pneg %p405
        %p641 = pneg %p402
        %p642 = pneg %p431
        %p643 = pneg %p428
        %s644 = sand.u32 %s418, 1
        %s645 = scalar_lea.sflag [#allocation11], %s644
        %s646 = sand.u32 %s418, 1
        %s647 = smul.addr %s646, 2
        %s648 = scalar_lea.vmem [#allocation18], %s647
        %v649 = vld [vmem:[%s572] sm:$0xff]
        %v650 = vld [vmem:[%s581] sm:$0xff]
        %v651 = vld [vmem:[%s3] sm:$0xff]
        %v652 = vld [vmem:[%s3 + $0x8] sm:$0xff]
        %v653 = vld [vmem:[%s3 + $0x10] sm:$0xff]
        %v654 = vld [vmem:[%s3 + $0x18] sm:$0xff]
        %vm655 = vcmask 261120
        %v657 = vsel %vm655, %v649, 0
        %659 = vmatprep.subr.mxu0 0.0
        %660 = vmatpush1.msra.mxu0 %v651
        %661 = vmatprep.subr.mxu0 0.0
        %662 = vmatpush1.msra.mxu0 %v652
        %663 = vmatprep.subr.mxu0 0.0
        %664 = vmatpush1.msra.mxu0 %v653
        %665 = vmatprep.subr.mxu0 0.0
        %666 = vmatpush1.msra.mxu0 %v654
        %667 = vmatprep.subr.mxu0 0.0
        %668 = vmatpush1.msra.mxu0 0.0
        %669 = vmatprep.subr.mxu0 0.0
        %670 = vmatpush1.msra.mxu0 0.0
        %671 = vmatprep.subr.mxu0 0.0
        %672 = vmatpush1.msra.mxu0 0.0
        %673 = vmatprep.subr.mxu0 0.0
        %674 = vmatpush1.msra.mxu0 0.0
        %675 = vmatprep.subr.mxu0 0.0
        %676 = vmatpush1.msra.mxu0 0.0
        %677 = vmatprep.subr.mxu0 0.0
        %678 = vmatpush1.msra.mxu0 0.0
        %679 = vmatprep.subr.mxu0 0.0
        %680 = vmatpush1.msra.mxu0 0.0
        %681 = vmatprep.subr.mxu0 0.0
        %682 = vmatpush1.msra.mxu0 0.0
        %683 = vmatprep.subr.mxu0 0.0
        %684 = vmatpush1.msra.mxu0 0.0
        %685 = vmatprep.subr.mxu0 0.0
        %686 = vmatpush1.msra.mxu0 0.0
        %687 = vmatprep.subr.mxu0 0.0
        %688 = vmatpush1.msra.mxu0 0.0
        %689 = vmatprep.subr.mxu0 0.0
        %690 = vmatpush1.msra.mxu0 0.0
        %691 = vmatprep.subr.mxu0 0.0
        %692 = vmatpush1.msra.mxu0 0.0
        %693 = vmatprep.subr.mxu0 0.0
        %694 = vmatpush1.msra.mxu0 0.0
        %695 = vmatprep.subr.mxu0 0.0
        %696 = vmatpush1.msra.mxu0 0.0
        %697 = vmatprep.subr.mxu0 0.0
        %698 = vmatpush1.msra.mxu0 0.0
        %699 = vmatprep.subr.mxu0 0.0
        %700 = vmatpush1.msra.mxu0 0.0
        %701 = vmatprep.subr.mxu0 0.0
        %702 = vmatpush1.msra.mxu0 0.0
        %703 = vmatprep.subr.mxu0 0.0
        %704 = vmatpush1.msra.mxu0 0.0
        %705 = vmatprep.subr.mxu0 0.0
        %706 = vmatpush1.msra.mxu0 0.0
        %707 = vmatprep.subr.mxu0 0.0
        %708 = vmatpush1.msra.mxu0 0.0
        %709 = vmatprep.subr.mxu0 0.0
        %710 = vmatpush1.msra.mxu0 0.0
        %711 = vmatprep.subr.mxu0 0.0
        %712 = vmatpush1.msra.mxu0 0.0
        %713 = vmatprep.subr.mxu0 0.0
        %714 = vmatpush1.msra.mxu0 0.0
        %715 = vmatprep.subr.mxu0 0.0
        %716 = vmatpush1.msra.mxu0 0.0
        %717 = vmatprep.subr.mxu0 0.0
        %718 = vmatpush1.msra.mxu0 0.0
        %719 = vmatprep.subr.mxu0 0.0
        %720 = vmatpush1.msra.mxu0 0.0
        %721 = vmatprep.subr.mxu0 0.0
        %722 = vmatpush1.msra.mxu0 0.0
        %723 = vmatprep.mubr.f32.mxu0 0.0
        %724 = vmatmul.mubr.f32.gmra.mrb[0].mxu0 %v657
        %v725 = vpop.f32.mrb[0].mxu0
        %v726 = vadd.f32 0.0, %v725
        %v727 = vpop.f32.mrb[0].mxu0
        %728 = vdwg.mxu0
        %vm729 = vcmask 64512
        %730 = vst.msk [vmem:[#allocation2] sm:$0xff] %vm729, %v726
        %732 = vrot.lane.b32.xlu0 %v726, 120
        %v733 = vpop.permute.xlu0 %732
        %s735 = scalar_lea.vmem [#allocation2], 8
        %736 = vst.msk [vmem:[%s735] sm:$0xff] %vm729, %v733
        %737 = vrot.lane.b32.xlu0 %v726, 112
        %v738 = vpop.permute.xlu0 %737
        %s740 = scalar_lea.vmem [#allocation2], 16
        %741 = vst.msk [vmem:[%s740] sm:$0xff] %vm729, %v738
        %742 = vrot.lane.b32.xlu0 %v726, 104
        %v743 = vpop.permute.xlu0 %742
        %s745 = scalar_lea.vmem [#allocation2], 24
        %746 = vst.msk [vmem:[%s745] sm:$0xff] %vm729, %v743
        %747 = vrot.lane.b32.xlu0 %v726, 96
        %v748 = vpop.permute.xlu0 %747
        %750 = vst.msk [vmem:[#allocation3] sm:$0xff] %vm729, %v748
        %751 = vrot.lane.b32.xlu0 %v726, 88
        %v752 = vpop.permute.xlu0 %751
        %s754 = scalar_lea.vmem [#allocation3], 8
        %755 = vst.msk [vmem:[%s754] sm:$0xff] %vm729, %v752
        %756 = vrot.lane.b32.xlu0 %v726, 80
        %v757 = vpop.permute.xlu0 %756
        %s759 = scalar_lea.vmem [#allocation3], 16
        %760 = vst.msk [vmem:[%s759] sm:$0xff] %vm729, %v757
        %761 = vrot.lane.b32.xlu0 %v726, 72
        %v762 = vpop.permute.xlu0 %761
        %s764 = scalar_lea.vmem [#allocation3], 24
        %765 = vst.msk [vmem:[%s764] sm:$0xff] %vm729, %v762
        %766 = vrot.lane.b32.xlu0 %v726, 64
        %v767 = vpop.permute.xlu0 %766
        %769 = vst.msk [vmem:[#allocation4] sm:$0xff] %vm729, %v767
        %770 = vrot.lane.b32.xlu0 %v726, 56
        %v771 = vpop.permute.xlu0 %770
        %s773 = scalar_lea.vmem [#allocation4], 8
        %774 = vst.msk [vmem:[%s773] sm:$0xff] %vm729, %v771
        %775 = vrot.lane.b32.xlu0 %v726, 48
        %v776 = vpop.permute.xlu0 %775
        %s778 = scalar_lea.vmem [#allocation4], 16
        %779 = vst.msk [vmem:[%s778] sm:$0xff] %vm729, %v776
        %780 = vrot.lane.b32.xlu0 %v726, 40
        %v781 = vpop.permute.xlu0 %780
        %s783 = scalar_lea.vmem [#allocation4], 24
        %784 = vst.msk [vmem:[%s783] sm:$0xff] %vm729, %v781
        %v785 = vlaneseq
        %v786 = vshrl.u32 %v785, 7
        %v787 = vlaneseq
        %v788 = vand.u32 %v787, 127
        %vm789 = vcmp.le.s32.totalorder %v788, %v786
        %v790 = vld [vmem:[#allocation2] sm:$0xff]
        %v791 = vld [vmem:[#allocation2 + $0x8] sm:$0xff]
        %v792 = vld [vmem:[#allocation2 + $0x10] sm:$0xff]
        %v793 = vld [vmem:[#allocation2 + $0x18] sm:$0xff]
        %v794 = vld [vmem:[#allocation3] sm:$0xff]
        %v795 = vld [vmem:[#allocation3 + $0x8] sm:$0xff]
        %v796 = vld [vmem:[#allocation3 + $0x10] sm:$0xff]
        %v797 = vld [vmem:[#allocation3 + $0x18] sm:$0xff]
        %v799 = vsel %vm729, %v790, 0
        %v802 = vsel %vm729, %v794, 0
        %804 = vmatprep.subr.mxu0 0.0
        %805 = vmatpush1.xpose.msra.mxu0 %v802
        %806 = vmatprep.subr.mxu0 0.0
        %807 = vmatpush1.xpose.msra.mxu0 0.0
        %808 = vmatprep.subr.mxu0 0.0
        %809 = vmatpush1.xpose.msra.mxu0 0.0
        %810 = vmatprep.subr.mxu0 0.0
        %811 = vmatpush1.xpose.msra.mxu0 0.0
        %812 = vmatprep.subr.mxu0 0.0
        %813 = vmatpush1.xpose.msra.mxu0 0.0
        %814 = vmatprep.subr.mxu0 0.0
        %815 = vmatpush1.xpose.msra.mxu0 0.0
        %816 = vmatprep.subr.mxu0 0.0
        %817 = vmatpush1.xpose.msra.mxu0 0.0
        %818 = vmatprep.subr.mxu0 0.0
        %819 = vmatpush1.xpose.msra.mxu0 0.0
        %820 = vmatprep.subr.mxu0 0.0
        %821 = vmatpush1.xpose.msra.mxu0 0.0
        %822 = vmatprep.subr.mxu0 0.0
        %823 = vmatpush1.xpose.msra.mxu0 0.0
        %824 = vmatprep.subr.mxu0 0.0
        %825 = vmatpush1.xpose.msra.mxu0 0.0
        %826 = vmatprep.subr.mxu0 0.0
        %827 = vmatpush1.xpose.msra.mxu0 0.0
        %828 = vmatprep.subr.mxu0 0.0
        %829 = vmatpush1.xpose.msra.mxu0 0.0
        %830 = vmatprep.subr.mxu0 0.0
        %831 = vmatpush1.xpose.msra.mxu0 0.0
        %832 = vmatprep.subr.mxu0 0.0
        %833 = vmatpush1.xpose.msra.mxu0 0.0
        %834 = vmatprep.subr.mxu0 0.0
        %835 = vmatpush1.xpose.msra.mxu0 0.0
        %836 = vmatprep.subr.mxu0 0.0
        %837 = vmatpush1.xpose.msra.mxu0 0.0
        %838 = vmatprep.subr.mxu0 0.0
        %839 = vmatpush1.xpose.msra.mxu0 0.0
        %840 = vmatprep.subr.mxu0 0.0
        %841 = vmatpush1.xpose.msra.mxu0 0.0
        %842 = vmatprep.subr.mxu0 0.0
        %843 = vmatpush1.xpose.msra.mxu0 0.0
        %844 = vmatprep.subr.mxu0 0.0
        %845 = vmatpush1.xpose.msra.mxu0 0.0
        %846 = vmatprep.subr.mxu0 0.0
        %847 = vmatpush1.xpose.msra.mxu0 0.0
        %848 = vmatprep.subr.mxu0 0.0
        %849 = vmatpush1.xpose.msra.mxu0 0.0
        %850 = vmatprep.subr.mxu0 0.0
        %851 = vmatpush1.xpose.msra.mxu0 0.0
        %852 = vmatprep.subr.mxu0 0.0
        %853 = vmatpush1.xpose.msra.mxu0 0.0
        %854 = vmatprep.subr.mxu0 0.0
        %855 = vmatpush1.xpose.msra.mxu0 0.0
        %856 = vmatprep.subr.mxu0 0.0
        %857 = vmatpush1.xpose.msra.mxu0 0.0
        %858 = vmatprep.subr.mxu0 0.0
        %859 = vmatpush1.xpose.msra.mxu0 0.0
        %860 = vmatprep.subr.mxu0 0.0
        %861 = vmatpush1.xpose.msra.mxu0 0.0
        %862 = vmatprep.subr.mxu0 0.0
        %863 = vmatpush1.xpose.msra.mxu0 0.0
        %864 = vmatprep.subr.mxu0 0.0
        %865 = vmatpush1.xpose.msra.mxu0 0.0
        %866 = vmatprep.subr.mxu0 0.0
        %867 = vmatpush1.xpose.msra.mxu0 0.0
        %868 = vmatprep.mubr.f32.mxu0 0.0
        %869 = vmatmul.mubr.f32.gmra.mrb[0].mxu0 %v799
        %v870 = vpop.f32.mrb[0].mxu0
        %v871 = vadd.f32 0.0, %v870
        %v872 = vpop.f32.mrb[0].mxu0
        %873 = vdwg.mxu0
        %v875 = vsel %vm729, %v791, 0
        %v878 = vsel %vm729, %v795, 0
        %880 = vmatprep.subr.mxu0 0.0
        %881 = vmatpush1.xpose.msra.mxu0 %v878
        %882 = vmatprep.subr.mxu0 0.0
        %883 = vmatpush1.xpose.msra.mxu0 0.0
        %884 = vmatprep.subr.mxu0 0.0
        %885 = vmatpush1.xpose.msra.mxu0 0.0
        %886 = vmatprep.subr.mxu0 0.0
        %887 = vmatpush1.xpose.msra.mxu0 0.0
        %888 = vmatprep.subr.mxu0 0.0
        %889 = vmatpush1.xpose.msra.mxu0 0.0
        %890 = vmatprep.subr.mxu0 0.0
        %891 = vmatpush1.xpose.msra.mxu0 0.0
        %892 = vmatprep.subr.mxu0 0.0
        %893 = vmatpush1.xpose.msra.mxu0 0.0
        %894 = vmatprep.subr.mxu0 0.0
        %895 = vmatpush1.xpose.msra.mxu0 0.0
        %896 = vmatprep.subr.mxu0 0.0
        %897 = vmatpush1.xpose.msra.mxu0 0.0
        %898 = vmatprep.subr.mxu0 0.0
        %899 = vmatpush1.xpose.msra.mxu0 0.0
        %900 = vmatprep.subr.mxu0 0.0
        %901 = vmatpush1.xpose.msra.mxu0 0.0
        %902 = vmatprep.subr.mxu0 0.0
        %903 = vmatpush1.xpose.msra.mxu0 0.0
        %904 = vmatprep.subr.mxu0 0.0
        %905 = vmatpush1.xpose.msra.mxu0 0.0
        %906 = vmatprep.subr.mxu0 0.0
        %907 = vmatpush1.xpose.msra.mxu0 0.0
        %908 = vmatprep.subr.mxu0 0.0
        %909 = vmatpush1.xpose.msra.mxu0 0.0
        %910 = vmatprep.subr.mxu0 0.0
        %911 = vmatpush1.xpose.msra.mxu0 0.0
        %912 = vmatprep.subr.mxu0 0.0
        %913 = vmatpush1.xpose.msra.mxu0 0.0
        %914 = vmatprep.subr.mxu0 0.0
        %915 = vmatpush1.xpose.msra.mxu0 0.0
        %916 = vmatprep.subr.mxu0 0.0
        %917 = vmatpush1.xpose.msra.mxu0 0.0
        %918 = vmatprep.subr.mxu0 0.0
        %919 = vmatpush1.xpose.msra.mxu0 0.0
        %920 = vmatprep.subr.mxu0 0.0
        %921 = vmatpush1.xpose.msra.mxu0 0.0
        %922 = vmatprep.subr.mxu0 0.0
        %923 = vmatpush1.xpose.msra.mxu0 0.0
        %924 = vmatprep.subr.mxu0 0.0
        %925 = vmatpush1.xpose.msra.mxu0 0.0
        %926 = vmatprep.subr.mxu0 0.0
        %927 = vmatpush1.xpose.msra.mxu0 0.0
        %928 = vmatprep.subr.mxu0 0.0
        %929 = vmatpush1.xpose.msra.mxu0 0.0
        %930 = vmatprep.subr.mxu0 0.0
        %931 = vmatpush1.xpose.msra.mxu0 0.0
        %932 = vmatprep.subr.mxu0 0.0
        %933 = vmatpush1.xpose.msra.mxu0 0.0
        %934 = vmatprep.subr.mxu0 0.0
        %935 = vmatpush1.xpose.msra.mxu0 0.0
        %936 = vmatprep.subr.mxu0 0.0
        %937 = vmatpush1.xpose.msra.mxu0 0.0
        %938 = vmatprep.subr.mxu0 0.0
        %939 = vmatpush1.xpose.msra.mxu0 0.0
        %940 = vmatprep.subr.mxu0 0.0
        %941 = vmatpush1.xpose.msra.mxu0 0.0
        %942 = vmatprep.subr.mxu0 0.0
        %943 = vmatpush1.xpose.msra.mxu0 0.0
        %944 = vmatprep.mubr.f32.mxu0 0.0
        %945 = vmatmul.mubr.f32.gmra.mrb[0].mxu0 %v875
        %v946 = vpop.f32.mrb[0].mxu0
        %v947 = vadd.f32 0.0, %v946
        %v948 = vpop.f32.mrb[0].mxu0
        %949 = vdwg.mxu0
        %v951 = vsel %vm729, %v792, 0
        %v954 = vsel %vm729, %v796, 0
        %956 = vmatprep.subr.mxu0 0.0
        %957 = vmatpush1.xpose.msra.mxu0 %v954
        %958 = vmatprep.subr.mxu0 0.0
        %959 = vmatpush1.xpose.msra.mxu0 0.0
        %960 = vmatprep.subr.mxu0 0.0
        %961 = vmatpush1.xpose.msra.mxu0 0.0
        %962 = vmatprep.subr.mxu0 0.0
        %963 = vmatpush1.xpose.msra.mxu0 0.0
        %964 = vmatprep.subr.mxu0 0.0
        %965 = vmatpush1.xpose.msra.mxu0 0.0
        %966 = vmatprep.subr.mxu0 0.0
        %967 = vmatpush1.xpose.msra.mxu0 0.0
        %968 = vmatprep.subr.mxu0 0.0
        %969 = vmatpush1.xpose.msra.mxu0 0.0
        %970 = vmatprep.subr.mxu0 0.0
        %971 = vmatpush1.xpose.msra.mxu0 0.0
        %972 = vmatprep.subr.mxu0 0.0
        %973 = vmatpush1.xpose.msra.mxu0 0.0
        %974 = vmatprep.subr.mxu0 0.0
        %975 = vmatpush1.xpose.msra.mxu0 0.0
        %976 = vmatprep.subr.mxu0 0.0
        %977 = vmatpush1.xpose.msra.mxu0 0.0
        %978 = vmatprep.subr.mxu0 0.0
        %979 = vmatpush1.xpose.msra.mxu0 0.0
        %980 = vmatprep.subr.mxu0 0.0
        %981 = vmatpush1.xpose.msra.mxu0 0.0
        %982 = vmatprep.subr.mxu0 0.0
        %983 = vmatpush1.xpose.msra.mxu0 0.0
        %984 = vmatprep.subr.mxu0 0.0
        %985 = vmatpush1.xpose.msra.mxu0 0.0
        %986 = vmatprep.subr.mxu0 0.0
        %987 = vmatpush1.xpose.msra.mxu0 0.0
        %988 = vmatprep.subr.mxu0 0.0
        %989 = vmatpush1.xpose.msra.mxu0 0.0
        %990 = vmatprep.subr.mxu0 0.0
        %991 = vmatpush1.xpose.msra.mxu0 0.0
        %992 = vmatprep.subr.mxu0 0.0
        %993 = vmatpush1.xpose.msra.mxu0 0.0
        %994 = vmatprep.subr.mxu0 0.0
        %995 = vmatpush1.xpose.msra.mxu0 0.0
        %996 = vmatprep.subr.mxu0 0.0
        %997 = vmatpush1.xpose.msra.mxu0 0.0
        %998 = vmatprep.subr.mxu0 0.0
        %999 = vmatpush1.xpose.msra.mxu0 0.0
        %1000 = vmatprep.subr.mxu0 0.0
        %1001 = vmatpush1.xpose.msra.mxu0 0.0
        %1002 = vmatprep.subr.mxu0 0.0
        %1003 = vmatpush1.xpose.msra.mxu0 0.0
        %1004 = vmatprep.subr.mxu0 0.0
        %1005 = vmatpush1.xpose.msra.mxu0 0.0
        %1006 = vmatprep.subr.mxu0 0.0
        %1007 = vmatpush1.xpose.msra.mxu0 0.0
        %1008 = vmatprep.subr.mxu0 0.0
        %1009 = vmatpush1.xpose.msra.mxu0 0.0
        %1010 = vmatprep.subr.mxu0 0.0
        %1011 = vmatpush1.xpose.msra.mxu0 0.0
        %1012 = vmatprep.subr.mxu0 0.0
        %1013 = vmatpush1.xpose.msra.mxu0 0.0
        %1014 = vmatprep.subr.mxu0 0.0
        %1015 = vmatpush1.xpose.msra.mxu0 0.0
        %1016 = vmatprep.subr.mxu0 0.0
        %1017 = vmatpush1.xpose.msra.mxu0 0.0
        %1018 = vmatprep.subr.mxu0 0.0
        %1019 = vmatpush1.xpose.msra.mxu0 0.0
        %1020 = vmatprep.mubr.f32.mxu0 0.0
        %1021 = vmatmul.mubr.f32.gmra.mrb[0].mxu0 %v951
        %v1022 = vpop.f32.mrb[0].mxu0
        %v1023 = vadd.f32 0.0, %v1022
        %v1024 = vpop.f32.mrb[0].mxu0
        %1025 = vdwg.mxu0
        %v1027 = vsel %vm729, %v793, 0
        %v1030 = vsel %vm729, %v797, 0
        %1032 = vmatprep.subr.mxu0 0.0
        %1033 = vmatpush1.xpose.msra.mxu0 %v1030
        %1034 = vmatprep.subr.mxu0 0.0
        %1035 = vmatpush1.xpose.msra.mxu0 0.0
        %1036 = vmatprep.subr.mxu0 0.0
        %1037 = vmatpush1.xpose.msra.mxu0 0.0
        %1038 = vmatprep.subr.mxu0 0.0
        %1039 = vmatpush1.xpose.msra.mxu0 0.0
        %1040 = vmatprep.subr.mxu0 0.0
        %1041 = vmatpush1.xpose.msra.mxu0 0.0
        %1042 = vmatprep.subr.mxu0 0.0
        %1043 = vmatpush1.xpose.msra.mxu0 0.0
        %1044 = vmatprep.subr.mxu0 0.0
        %1045 = vmatpush1.xpose.msra.mxu0 0.0
        %1046 = vmatprep.subr.mxu0 0.0
        %1047 = vmatpush1.xpose.msra.mxu0 0.0
        %1048 = vmatprep.subr.mxu0 0.0
        %1049 = vmatpush1.xpose.msra.mxu0 0.0
        %1050 = vmatprep.subr.mxu0 0.0
        %1051 = vmatpush1.xpose.msra.mxu0 0.0
        %1052 = vmatprep.subr.mxu0 0.0
        %1053 = vmatpush1.xpose.msra.mxu0 0.0
        %1054 = vmatprep.subr.mxu0 0.0
        %1055 = vmatpush1.xpose.msra.mxu0 0.0
        %1056 = vmatprep.subr.mxu0 0.0
        %1057 = vmatpush1.xpose.msra.mxu0 0.0
        %1058 = vmatprep.subr.mxu0 0.0
        %1059 = vmatpush1.xpose.msra.mxu0 0.0
        %1060 = vmatprep.subr.mxu0 0.0
        %1061 = vmatpush1.xpose.msra.mxu0 0.0
        %1062 = vmatprep.subr.mxu0 0.0
        %1063 = vmatpush1.xpose.msra.mxu0 0.0
        %1064 = vmatprep.subr.mxu0 0.0
        %1065 = vmatpush1.xpose.msra.mxu0 0.0
        %1066 = vmatprep.subr.mxu0 0.0
        %1067 = vmatpush1.xpose.msra.mxu0 0.0
        %1068 = vmatprep.subr.mxu0 0.0
        %1069 = vmatpush1.xpose.msra.mxu0 0.0
        %1070 = vmatprep.subr.mxu0 0.0
        %1071 = vmatpush1.xpose.msra.mxu0 0.0
        %1072 = vmatprep.subr.mxu0 0.0
        %1073 = vmatpush1.xpose.msra.mxu0 0.0
        %1074 = vmatprep.subr.mxu0 0.0
        %1075 = vmatpush1.xpose.msra.mxu0 0.0
        %1076 = vmatprep.subr.mxu0 0.0
        %1077 = vmatpush1.xpose.msra.mxu0 0.0
        %1078 = vmatprep.subr.mxu0 0.0
        %1079 = vmatpush1.xpose.msra.mxu0 0.0
        %1080 = vmatprep.subr.mxu0 0.0
        %1081 = vmatpush1.xpose.msra.mxu0 0.0
        %1082 = vmatprep.subr.mxu0 0.0
        %1083 = vmatpush1.xpose.msra.mxu0 0.0
        %1084 = vmatprep.subr.mxu0 0.0
        %1085 = vmatpush1.xpose.msra.mxu0 0.0
        %1086 = vmatprep.subr.mxu0 0.0
        %1087 = vmatpush1.xpose.msra.mxu0 0.0
        %1088 = vmatprep.subr.mxu0 0.0
        %1089 = vmatpush1.xpose.msra.mxu0 0.0
        %1090 = vmatprep.subr.mxu0 0.0
        %1091 = vmatpush1.xpose.msra.mxu0 0.0
        %1092 = vmatprep.subr.mxu0 0.0
        %1093 = vmatpush1.xpose.msra.mxu0 0.0
        %1094 = vmatprep.subr.mxu0 0.0
        %1095 = vmatpush1.xpose.msra.mxu0 0.0
        %1096 = vmatprep.mubr.f32.mxu0 0.0
        %1097 = vmatmul.mubr.f32.gmra.mrb[0].mxu0 %v1027
        %v1098 = vpop.f32.mrb[0].mxu0
        %v1099 = vadd.f32 0.0, %v1098
        %v1100 = vpop.f32.mrb[0].mxu0
        %1101 = vdwg.mxu0
        %v1102 = vmul.f32 %v871, 0.35355338
        %v1103 = vmul.f32 %v947, 0.35355338
        %v1104 = vmul.f32 %v1023, 0.35355338
        %v1105 = vmul.f32 %v1099, 0.35355338
        %v1106 = vsel %vm789, 1, 0
        %vm1107 = vcmp.eq.s32.totalorder %v1106, 1
        %v1108 = vsel %vm1107, %v1102, -1000000.0
        %v1109 = vsel %vm1107, %v1103, -1000000.0
        %v1110 = vsel %vm1107, %v1104, -1000000.0
        %v1111 = vsel %vm1107, %v1105, -1000000.0
        %v1112 = vsel %vm729, %v1108, -inf
        %1113 = vmax.xlane.f32.xlu0 %v1112
        %v1114 = vpop.xlane.xlu0 %1113
        %v1115 = vsel %vm729, %v1109, -inf
        %1116 = vmax.xlane.f32.xlu0 %v1115
        %v1117 = vpop.xlane.xlu0 %1116
        %v1118 = vsel %vm729, %v1110, -inf
        %1119 = vmax.xlane.f32.xlu0 %v1118
        %v1120 = vpop.xlane.xlu0 %1119
        %v1121 = vsel %vm729, %v1111, -inf
        %1122 = vmax.xlane.f32.xlu0 %v1121
        %v1123 = vpop.xlane.xlu0 %1122
        %v1124 = vsub.f32 %v1108, %v1114
        %v1125 = vsub.f32 %v1109, %v1117
        %v1126 = vsub.f32 %v1110, %v1120
        %v1127 = vsub.f32 %v1111, %v1123
        %v1128 = vmul.f32 %v1124, 1.442695
        %v1129 = vpow.pop %v1128
        %v1130 = vmul.f32 %v1125, 1.442695
        %v1131 = vpow.pop %v1130
        %v1132 = vmul.f32 %v1126, 1.442695
        %v1133 = vpow.pop %v1132
        %v1134 = vmul.f32 %v1127, 1.442695
        %v1135 = vpow.pop %v1134
        %v1136 = vsel %vm729, %v1129, 0.0
        %1137 = vadd.xlane.f32.xlu0 %v1136
        %v1138 = vpop.xlane.xlu0 %1137
        %v1139 = vsel %vm729, %v1131, 0.0
        %1140 = vadd.xlane.f32.xlu0 %v1139
        %v1141 = vpop.xlane.xlu0 %1140
        %v1142 = vsel %vm729, %v1133, 0.0
        %1143 = vadd.xlane.f32.xlu0 %v1142
        %v1144 = vpop.xlane.xlu0 %1143
        %v1145 = vsel %vm729, %v1135, 0.0
        %1146 = vadd.xlane.f32.xlu0 %v1145
        %v1147 = vpop.xlane.xlu0 %1146
        %v1148 = vrcp.pop %v1138
        %v1149 = vrcp.pop %v1141
        %v1150 = vrcp.pop %v1144
        %v1151 = vrcp.pop %v1147
        %v1152 = vmul.f32 %v1129, %v1148
        %v1153 = vmul.f32 %v1131, %v1149
        %v1154 = vmul.f32 %v1133, %v1150
        %v1155 = vmul.f32 %v1135, %v1151
        %v1156 = vld [vmem:[#allocation4] sm:$0xff]
        %v1157 = vld [vmem:[#allocation4 + $0x8] sm:$0xff]
        %v1158 = vld [vmem:[#allocation4 + $0x10] sm:$0xff]
        %v1159 = vld [vmem:[#allocation4 + $0x18] sm:$0xff]
        %v1161 = vsel %vm729, %v1152, 0
        %1163 = vmatprep.subr.mxu0 0.0
        %1164 = vmatpush1.msra.mxu0 %v1156
        %1165 = vmatprep.subr.mxu0 0.0
        %1166 = vmatpush1.msra.mxu0 0.0
        %1167 = vmatprep.subr.mxu0 0.0
        %1168 = vmatpush1.msra.mxu0 0.0
        %1169 = vmatprep.subr.mxu0 0.0
        %1170 = vmatpush1.msra.mxu0 0.0
        %1171 = vmatprep.subr.mxu0 0.0
        %1172 = vmatpush1.msra.mxu0 0.0
        %1173 = vmatprep.subr.mxu0 0.0
        %1174 = vmatpush1.msra.mxu0 0.0
        %1175 = vmatprep.subr.mxu0 0.0
        %1176 = vmatpush1.msra.mxu0 0.0
        %1177 = vmatprep.subr.mxu0 0.0
        %1178 = vmatpush1.msra.mxu0 0.0
        %1179 = vmatprep.subr.mxu0 0.0
        %1180 = vmatpush1.msra.mxu0 0.0
        %1181 = vmatprep.subr.mxu0 0.0
        %1182 = vmatpush1.msra.mxu0 0.0
        %1183 = vmatprep.subr.mxu0 0.0
        %1184 = vmatpush1.msra.mxu0 0.0
        %1185 = vmatprep.subr.mxu0 0.0
        %1186 = vmatpush1.msra.mxu0 0.0
        %1187 = vmatprep.subr.mxu0 0.0
        %1188 = vmatpush1.msra.mxu0 0.0
        %1189 = vmatprep.subr.mxu0 0.0
        %1190 = vmatpush1.msra.mxu0 0.0
        %1191 = vmatprep.subr.mxu0 0.0
        %1192 = vmatpush1.msra.mxu0 0.0
        %1193 = vmatprep.subr.mxu0 0.0
        %1194 = vmatpush1.msra.mxu0 0.0
        %1195 = vmatprep.subr.mxu0 0.0
        %1196 = vmatpush1.msra.mxu0 0.0
        %1197 = vmatprep.subr.mxu0 0.0
        %1198 = vmatpush1.msra.mxu0 0.0
        %1199 = vmatprep.subr.mxu0 0.0
        %1200 = vmatpush1.msra.mxu0 0.0
        %1201 = vmatprep.subr.mxu0 0.0
        %1202 = vmatpush1.msra.mxu0 0.0
        %1203 = vmatprep.subr.mxu0 0.0
        %1204 = vmatpush1.msra.mxu0 0.0
        %1205 = vmatprep.subr.mxu0 0.0
        %1206 = vmatpush1.msra.mxu0 0.0
        %1207 = vmatprep.subr.mxu0 0.0
        %1208 = vmatpush1.msra.mxu0 0.0
        %1209 = vmatprep.subr.mxu0 0.0
        %1210 = vmatpush1.msra.mxu0 0.0
        %1211 = vmatprep.subr.mxu0 0.0
        %1212 = vmatpush1.msra.mxu0 0.0
        %1213 = vmatprep.subr.mxu0 0.0
        %1214 = vmatpush1.msra.mxu0 0.0
        %1215 = vmatprep.subr.mxu0 0.0
        %1216 = vmatpush1.msra.mxu0 0.0
        %1217 = vmatprep.subr.mxu0 0.0
        %1218 = vmatpush1.msra.mxu0 0.0
        %1219 = vmatprep.subr.mxu0 0.0
        %1220 = vmatpush1.msra.mxu0 0.0
        %1221 = vmatprep.subr.mxu0 0.0
        %1222 = vmatpush1.msra.mxu0 0.0
        %1223 = vmatprep.subr.mxu0 0.0
        %1224 = vmatpush1.msra.mxu0 0.0
        %1225 = vmatprep.subr.mxu0 0.0
        %1226 = vmatpush1.msra.mxu0 0.0
        %1227 = vmatprep.mubr.f32.mxu0 0.0
        %1228 = vmatmul.mubr.f32.gmra.mrb[0].mxu0 %v1161
        %v1229 = vpop.f32.mrb[0].mxu0
        %v1230 = vadd.f32 0.0, %v1229
        %v1231 = vpop.f32.mrb[0].mxu0
        %1232 = vdwg.mxu0
        %v1234 = vsel %vm729, %v1153, 0
        %1236 = vmatprep.subr.mxu0 0.0
        %1237 = vmatpush1.msra.mxu0 %v1157
        %1238 = vmatprep.subr.mxu0 0.0
        %1239 = vmatpush1.msra.mxu0 0.0
        %1240 = vmatprep.subr.mxu0 0.0
        %1241 = vmatpush1.msra.mxu0 0.0
        %1242 = vmatprep.subr.mxu0 0.0
        %1243 = vmatpush1.msra.mxu0 0.0
        %1244 = vmatprep.subr.mxu0 0.0
        %1245 = vmatpush1.msra.mxu0 0.0
        %1246 = vmatprep.subr.mxu0 0.0
        %1247 = vmatpush1.msra.mxu0 0.0
        %1248 = vmatprep.subr.mxu0 0.0
        %1249 = vmatpush1.msra.mxu0 0.0
        %1250 = vmatprep.subr.mxu0 0.0
        %1251 = vmatpush1.msra.mxu0 0.0
        %1252 = vmatprep.subr.mxu0 0.0
        %1253 = vmatpush1.msra.mxu0 0.0
        %1254 = vmatprep.subr.mxu0 0.0
        %1255 = vmatpush1.msra.mxu0 0.0
        %1256 = vmatprep.subr.mxu0 0.0
        %1257 = vmatpush1.msra.mxu0 0.0
        %1258 = vmatprep.subr.mxu0 0.0
        %1259 = vmatpush1.msra.mxu0 0.0
        %1260 = vmatprep.subr.mxu0 0.0
        %1261 = vmatpush1.msra.mxu0 0.0
        %1262 = vmatprep.subr.mxu0 0.0
        %1263 = vmatpush1.msra.mxu0 0.0
        %1264 = vmatprep.subr.mxu0 0.0
        %1265 = vmatpush1.msra.mxu0 0.0
        %1266 = vmatprep.subr.mxu0 0.0
        %1267 = vmatpush1.msra.mxu0 0.0
        %1268 = vmatprep.subr.mxu0 0.0
        %1269 = vmatpush1.msra.mxu0 0.0
        %1270 = vmatprep.subr.mxu0 0.0
        %1271 = vmatpush1.msra.mxu0 0.0
        %1272 = vmatprep.subr.mxu0 0.0
        %1273 = vmatpush1.msra.mxu0 0.0
        %1274 = vmatprep.subr.mxu0 0.0
        %1275 = vmatpush1.msra.mxu0 0.0
        %1276 = vmatprep.subr.mxu0 0.0
        %1277 = vmatpush1.msra.mxu0 0.0
        %1278 = vmatprep.subr.mxu0 0.0
        %1279 = vmatpush1.msra.mxu0 0.0
        %1280 = vmatprep.subr.mxu0 0.0
        %1281 = vmatpush1.msra.mxu0 0.0
        %1282 = vmatprep.subr.mxu0 0.0
        %1283 = vmatpush1.msra.mxu0 0.0
        %1284 = vmatprep.subr.mxu0 0.0
        %1285 = vmatpush1.msra.mxu0 0.0
        %1286 = vmatprep.subr.mxu0 0.0
        %1287 = vmatpush1.msra.mxu0 0.0
        %1288 = vmatprep.subr.mxu0 0.0
        %1289 = vmatpush1.msra.mxu0 0.0
        %1290 = vmatprep.subr.mxu0 0.0
        %1291 = vmatpush1.msra.mxu0 0.0
        %1292 = vmatprep.subr.mxu0 0.0
        %1293 = vmatpush1.msra.mxu0 0.0
        %1294 = vmatprep.subr.mxu0 0.0
        %1295 = vmatpush1.msra.mxu0 0.0
        %1296 = vmatprep.subr.mxu0 0.0
        %1297 = vmatpush1.msra.mxu0 0.0
        %1298 = vmatprep.subr.mxu0 0.0
        %1299 = vmatpush1.msra.mxu0 0.0
        %1300 = vmatprep.mubr.f32.mxu0 0.0
        %1301 = vmatmul.mubr.f32.gmra.mrb[0].mxu0 %v1234
        %v1302 = vpop.f32.mrb[0].mxu0
        %v1303 = vadd.f32 0.0, %v1302
        %v1304 = vpop.f32.mrb[0].mxu0
        %1305 = vdwg.mxu0
        %v1307 = vsel %vm729, %v1154, 0
        %1309 = vmatprep.subr.mxu0 0.0
        %1310 = vmatpush1.msra.mxu0 %v1158
        %1311 = vmatprep.subr.mxu0 0.0
        %1312 = vmatpush1.msra.mxu0 0.0
        %1313 = vmatprep.subr.mxu0 0.0
        %1314 = vmatpush1.msra.mxu0 0.0
        %1315 = vmatprep.subr.mxu0 0.0
        %1316 = vmatpush1.msra.mxu0 0.0
        %1317 = vmatprep.subr.mxu0 0.0
        %1318 = vmatpush1.msra.mxu0 0.0
        %1319 = vmatprep.subr.mxu0 0.0
        %1320 = vmatpush1.msra.mxu0 0.0
        %1321 = vmatprep.subr.mxu0 0.0
        %1322 = vmatpush1.msra.mxu0 0.0
        %1323 = vmatprep.subr.mxu0 0.0
        %1324 = vmatpush1.msra.mxu0 0.0
        %1325 = vmatprep.subr.mxu0 0.0
        %1326 = vmatpush1.msra.mxu0 0.0
        %1327 = vmatprep.subr.mxu0 0.0
        %1328 = vmatpush1.msra.mxu0 0.0
        %1329 = vmatprep.subr.mxu0 0.0
        %1330 = vmatpush1.msra.mxu0 0.0
        %1331 = vmatprep.subr.mxu0 0.0
        %1332 = vmatpush1.msra.mxu0 0.0
        %1333 = vmatprep.subr.mxu0 0.0
        %1334 = vmatpush1.msra.mxu0 0.0
        %1335 = vmatprep.subr.mxu0 0.0
        %1336 = vmatpush1.msra.mxu0 0.0
        %1337 = vmatprep.subr.mxu0 0.0
        %1338 = vmatpush1.msra.mxu0 0.0
        %1339 = vmatprep.subr.mxu0 0.0
        %1340 = vmatpush1.msra.mxu0 0.0
        %1341 = vmatprep.subr.mxu0 0.0
        %1342 = vmatpush1.msra.mxu0 0.0
        %1343 = vmatprep.subr.mxu0 0.0
        %1344 = vmatpush1.msra.mxu0 0.0
        %1345 = vmatprep.subr.mxu0 0.0
        %1346 = vmatpush1.msra.mxu0 0.0
        %1347 = vmatprep.subr.mxu0 0.0
        %1348 = vmatpush1.msra.mxu0 0.0
        %1349 = vmatprep.subr.mxu0 0.0
        %1350 = vmatpush1.msra.mxu0 0.0
        %1351 = vmatprep.subr.mxu0 0.0
        %1352 = vmatpush1.msra.mxu0 0.0
        %1353 = vmatprep.subr.mxu0 0.0
        %1354 = vmatpush1.msra.mxu0 0.0
        %1355 = vmatprep.subr.mxu0 0.0
        %1356 = vmatpush1.msra.mxu0 0.0
        %1357 = vmatprep.subr.mxu0 0.0
        %1358 = vmatpush1.msra.mxu0 0.0
        %1359 = vmatprep.subr.mxu0 0.0
        %1360 = vmatpush1.msra.mxu0 0.0
        %1361 = vmatprep.subr.mxu0 0.0
        %1362 = vmatpush1.msra.mxu0 0.0
        %1363 = vmatprep.subr.mxu0 0.0
        %1364 = vmatpush1.msra.mxu0 0.0
        %1365 = vmatprep.subr.mxu0 0.0
        %1366 = vmatpush1.msra.mxu0 0.0
        %1367 = vmatprep.subr.mxu0 0.0
        %1368 = vmatpush1.msra.mxu0 0.0
        %1369 = vmatprep.subr.mxu0 0.0
        %1370 = vmatpush1.msra.mxu0 0.0
        %1371 = vmatprep.subr.mxu0 0.0
        %1372 = vmatpush1.msra.mxu0 0.0
        %1373 = vmatprep.mubr.f32.mxu0 0.0
        %1374 = vmatmul.mubr.f32.gmra.mrb[0].mxu0 %v1307
        %v1375 = vpop.f32.mrb[0].mxu0
        %v1376 = vadd.f32 0.0, %v1375
        %v1377 = vpop.f32.mrb[0].mxu0
        %1378 = vdwg.mxu0
        %v1380 = vsel %vm729, %v1155, 0
        %1382 = vmatprep.subr.mxu0 0.0
        %1383 = vmatpush1.msra.mxu0 %v1159
        %1384 = vmatprep.subr.mxu0 0.0
        %1385 = vmatpush1.msra.mxu0 0.0
        %1386 = vmatprep.subr.mxu0 0.0
        %1387 = vmatpush1.msra.mxu0 0.0
        %1388 = vmatprep.subr.mxu0 0.0
        %1389 = vmatpush1.msra.mxu0 0.0
        %1390 = vmatprep.subr.mxu0 0.0
        %1391 = vmatpush1.msra.mxu0 0.0
        %1392 = vmatprep.subr.mxu0 0.0
        %1393 = vmatpush1.msra.mxu0 0.0
        %1394 = vmatprep.subr.mxu0 0.0
        %1395 = vmatpush1.msra.mxu0 0.0
        %1396 = vmatprep.subr.mxu0 0.0
        %1397 = vmatpush1.msra.mxu0 0.0
        %1398 = vmatprep.subr.mxu0 0.0
        %1399 = vmatpush1.msra.mxu0 0.0
        %1400 = vmatprep.subr.mxu0 0.0
        %1401 = vmatpush1.msra.mxu0 0.0
        %1402 = vmatprep.subr.mxu0 0.0
        %1403 = vmatpush1.msra.mxu0 0.0
        %1404 = vmatprep.subr.mxu0 0.0
        %1405 = vmatpush1.msra.mxu0 0.0
        %1406 = vmatprep.subr.mxu0 0.0
        %1407 = vmatpush1.msra.mxu0 0.0
        %1408 = vmatprep.subr.mxu0 0.0
        %1409 = vmatpush1.msra.mxu0 0.0
        %1410 = vmatprep.subr.mxu0 0.0
        %1411 = vmatpush1.msra.mxu0 0.0
        %1412 = vmatprep.subr.mxu0 0.0
        %1413 = vmatpush1.msra.mxu0 0.0
        %1414 = vmatprep.subr.mxu0 0.0
        %1415 = vmatpush1.msra.mxu0 0.0
        %1416 = vmatprep.subr.mxu0 0.0
        %1417 = vmatpush1.msra.mxu0 0.0
        %1418 = vmatprep.subr.mxu0 0.0
        %1419 = vmatpush1.msra.mxu0 0.0
        %1420 = vmatprep.subr.mxu0 0.0
        %1421 = vmatpush1.msra.mxu0 0.0
        %1422 = vmatprep.subr.mxu0 0.0
        %1423 = vmatpush1.msra.mxu0 0.0
        %1424 = vmatprep.subr.mxu0 0.0
        %1425 = vmatpush1.msra.mxu0 0.0
        %1426 = vmatprep.subr.mxu0 0.0
        %1427 = vmatpush1.msra.mxu0 0.0
        %1428 = vmatprep.subr.mxu0 0.0
        %1429 = vmatpush1.msra.mxu0 0.0
        %1430 = vmatprep.subr.mxu0 0.0
        %1431 = vmatpush1.msra.mxu0 0.0
        %1432 = vmatprep.subr.mxu0 0.0
        %1433 = vmatpush1.msra.mxu0 0.0
        %1434 = vmatprep.subr.mxu0 0.0
        %1435 = vmatpush1.msra.mxu0 0.0
        %1436 = vmatprep.subr.mxu0 0.0
        %1437 = vmatpush1.msra.mxu0 0.0
        %1438 = vmatprep.subr.mxu0 0.0
        %1439 = vmatpush1.msra.mxu0 0.0
        %1440 = vmatprep.subr.mxu0 0.0
        %1441 = vmatpush1.msra.mxu0 0.0
        %1442 = vmatprep.subr.mxu0 0.0
        %1443 = vmatpush1.msra.mxu0 0.0
        %1444 = vmatprep.subr.mxu0 0.0
        %1445 = vmatpush1.msra.mxu0 0.0
        %1446 = vmatprep.mubr.f32.mxu0 0.0
        %1447 = vmatmul.mubr.f32.gmra.mrb[0].mxu0 %v1380
        %v1448 = vpop.f32.mrb[0].mxu0
        %v1449 = vadd.f32 0.0, %v1448
        %v1450 = vpop.f32.mrb[0].mxu0
        %1451 = vdwg.mxu0
        %1453 = vrot.lane.b32.xlu0 %v1303, 8
        %v1454 = vpop.permute.xlu0 %1453
        %1457 = vrot.lane.b32.xlu0 %v1376, 16
        %v1458 = vpop.permute.xlu0 %1457
        %1461 = vrot.lane.b32.xlu0 %v1449, 24
        %v1462 = vpop.permute.xlu0 %1461
        %v1464 = vsel %vm729, %v1230, %v1454
        %vm1465 = vcmask 130048
        %v1466 = vsel %vm1465, %v1464, %v1458
        %vm1467 = vcmask 195584
        %v1468 = vsel %vm1467, %v1466, %v1462
        %v1469 = vld [vmem:[%s4] sm:$0xff]
        %v1470 = vld [vmem:[%s4 + $0x8] sm:$0xff]
        %v1471 = vld [vmem:[%s4 + $0x10] sm:$0xff]
        %v1472 = vld [vmem:[%s4 + $0x18] sm:$0xff]
        %v1474 = vsel %vm655, %v1468, 0
        %1476 = vmatprep.subr.mxu0 0.0
        %1477 = vmatpush1.msra.mxu0 %v1469
        %1478 = vmatprep.subr.mxu0 0.0
        %1479 = vmatpush1.msra.mxu0 %v1470
        %1480 = vmatprep.subr.mxu0 0.0
        %1481 = vmatpush1.msra.mxu0 %v1471
        %1482 = vmatprep.subr.mxu0 0.0
        %1483 = vmatpush1.msra.mxu0 %v1472
        %1484 = vmatprep.subr.mxu0 0.0
        %1485 = vmatpush1.msra.mxu0 0.0
        %1486 = vmatprep.subr.mxu0 0.0
        %1487 = vmatpush1.msra.mxu0 0.0
        %1488 = vmatprep.subr.mxu0 0.0
        %1489 = vmatpush1.msra.mxu0 0.0
        %1490 = vmatprep.subr.mxu0 0.0
        %1491 = vmatpush1.msra.mxu0 0.0
        %1492 = vmatprep.subr.mxu0 0.0
        %1493 = vmatpush1.msra.mxu0 0.0
        %1494 = vmatprep.subr.mxu0 0.0
        %1495 = vmatpush1.msra.mxu0 0.0
        %1496 = vmatprep.subr.mxu0 0.0
        %1497 = vmatpush1.msra.mxu0 0.0
        %1498 = vmatprep.subr.mxu0 0.0
        %1499 = vmatpush1.msra.mxu0 0.0
        %1500 = vmatprep.subr.mxu0 0.0
        %1501 = vmatpush1.msra.mxu0 0.0
        %1502 = vmatprep.subr.mxu0 0.0
        %1503 = vmatpush1.msra.mxu0 0.0
        %1504 = vmatprep.subr.mxu0 0.0
        %1505 = vmatpush1.msra.mxu0 0.0
        %1506 = vmatprep.subr.mxu0 0.0
        %1507 = vmatpush1.msra.mxu0 0.0
        %1508 = vmatprep.subr.mxu0 0.0
        %1509 = vmatpush1.msra.mxu0 0.0
        %1510 = vmatprep.subr.mxu0 0.0
        %1511 = vmatpush1.msra.mxu0 0.0
        %1512 = vmatprep.subr.mxu0 0.0
        %1513 = vmatpush1.msra.mxu0 0.0
        %1514 = vmatprep.subr.mxu0 0.0
        %1515 = vmatpush1.msra.mxu0 0.0
        %1516 = vmatprep.subr.mxu0 0.0
        %1517 = vmatpush1.msra.mxu0 0.0
        %1518 = vmatprep.subr.mxu0 0.0
        %1519 = vmatpush1.msra.mxu0 0.0
        %1520 = vmatprep.subr.mxu0 0.0
        %1521 = vmatpush1.msra.mxu0 0.0
        %1522 = vmatprep.subr.mxu0 0.0
        %1523 = vmatpush1.msra.mxu0 0.0
        %1524 = vmatprep.subr.mxu0 0.0
        %1525 = vmatpush1.msra.mxu0 0.0
        %1526 = vmatprep.subr.mxu0 0.0
        %1527 = vmatpush1.msra.mxu0 0.0
        %1528 = vmatprep.subr.mxu0 0.0
        %1529 = vmatpush1.msra.mxu0 0.0
        %1530 = vmatprep.subr.mxu0 0.0
        %1531 = vmatpush1.msra.mxu0 0.0
        %1532 = vmatprep.subr.mxu0 0.0
        %1533 = vmatpush1.msra.mxu0 0.0
        %1534 = vmatprep.subr.mxu0 0.0
        %1535 = vmatpush1.msra.mxu0 0.0
        %1536 = vmatprep.subr.mxu0 0.0
        %1537 = vmatpush1.msra.mxu0 0.0
        %1538 = vmatprep.subr.mxu0 0.0
        %1539 = vmatpush1.msra.mxu0 0.0
        %1540 = vmatprep.mubr.f32.mxu0 0.0
        %1541 = vmatmul.mubr.f32.gmra.mrb[0].mxu0 %v1474
        %v1542 = vpop.f32.mrb[0].mxu0
        %v1543 = vadd.f32 %v649, %v1542
        %v1544 = vpop.f32.mrb[0].mxu0
        %1545 = vdwg.mxu0
        %v1546 = vld [vmem:[%s5] sm:$0x1]
        %v1547 = vld [vmem:[%s6] sm:$0x1]
        %v1548 = vsel %vm655, %v1543, 0.0
        %1549 = vadd.xlane.f32.xlu0 %v1548
        %v1550 = vpop.xlane.xlu0 %1549
        %v1551 = vrcp.pop 32.0
        %v1552 = vmul.f32 %v1550, %v1551
        %v1553 = vsub.f32 %v1543, %v1552
        %v1554 = vmul.f32 %v1553, %v1553
        %v1555 = vsel %vm655, %v1554, 0.0
        %1556 = vadd.xlane.f32.xlu0 %v1555
        %v1557 = vpop.xlane.xlu0 %1556
        %v1558 = vmul.f32 %v1557, %v1551
        %v1559 = vadd.f32 %v1558, 1e-05
        %v1560 = vrsqrt.pop %v1559
        %v1561 = vmul.f32 %v1553, %v1560
        %v1563 = vlaneseq
        %v1564 = vshrl.u32 %v1563, 7
        %v1565 = vsub.s32 0, %v1564
        %v1566 = vrot.slane %v1546, %v1565
        %v1568 = vmul.f32 %v1561, %v1566
        %v1570 = vlaneseq
        %v1571 = vshrl.u32 %v1570, 7
        %v1572 = vsub.s32 0, %v1571
        %v1573 = vrot.slane %v1547, %v1572
        %v1575 = vadd.f32 %v1568, %v1573
        %v1576 = vld [vmem:[%s7] sm:$0xff]
        %v1577 = vld [vmem:[%s7 + $0x8] sm:$0xff]
        %v1578 = vld [vmem:[%s7 + $0x10] sm:$0xff]
        %v1579 = vld [vmem:[%s7 + $0x18] sm:$0xff]
        %v1581 = vsel %vm655, %v1575, 0
        %1583 = vmatprep.subr.mxu0 0.0
        %1584 = vmatpush1.msra.mxu0 %v1576
        %1585 = vmatprep.subr.mxu0 0.0
        %1586 = vmatpush1.msra.mxu0 %v1577
        %1587 = vmatprep.subr.mxu0 0.0
        %1588 = vmatpush1.msra.mxu0 %v1578
        %1589 = vmatprep.subr.mxu0 0.0
        %1590 = vmatpush1.msra.mxu0 %v1579
        %1591 = vmatprep.subr.mxu0 0.0
        %1592 = vmatpush1.msra.mxu0 0.0
        %1593 = vmatprep.subr.mxu0 0.0
        %1594 = vmatpush1.msra.mxu0 0.0
        %1595 = vmatprep.subr.mxu0 0.0
        %1596 = vmatpush1.msra.mxu0 0.0
        %1597 = vmatprep.subr.mxu0 0.0
        %1598 = vmatpush1.msra.mxu0 0.0
        %1599 = vmatprep.subr.mxu0 0.0
        %1600 = vmatpush1.msra.mxu0 0.0
        %1601 = vmatprep.subr.mxu0 0.0
        %1602 = vmatpush1.msra.mxu0 0.0
        %1603 = vmatprep.subr.mxu0 0.0
        %1604 = vmatpush1.msra.mxu0 0.0
        %1605 = vmatprep.subr.mxu0 0.0
        %1606 = vmatpush1.msra.mxu0 0.0
        %1607 = vmatprep.subr.mxu0 0.0
        %1608 = vmatpush1.msra.mxu0 0.0
        %1609 = vmatprep.subr.mxu0 0.0
        %1610 = vmatpush1.msra.mxu0 0.0
        %1611 = vmatprep.subr.mxu0 0.0
        %1612 = vmatpush1.msra.mxu0 0.0
        %1613 = vmatprep.subr.mxu0 0.0
        %1614 = vmatpush1.msra.mxu0 0.0
        %1615 = vmatprep.subr.mxu0 0.0
        %1616 = vmatpush1.msra.mxu0 0.0
        %1617 = vmatprep.subr.mxu0 0.0
        %1618 = vmatpush1.msra.mxu0 0.0
        %1619 = vmatprep.subr.mxu0 0.0
        %1620 = vmatpush1.msra.mxu0 0.0
        %1621 = vmatprep.subr.mxu0 0.0
        %1622 = vmatpush1.msra.mxu0 0.0
        %1623 = vmatprep.subr.mxu0 0.0
        %1624 = vmatpush1.msra.mxu0 0.0
        %1625 = vmatprep.subr.mxu0 0.0
        %1626 = vmatpush1.msra.mxu0 0.0
        %1627 = vmatprep.subr.mxu0 0.0
        %1628 = vmatpush1.msra.mxu0 0.0
        %1629 = vmatprep.subr.mxu0 0.0
        %1630 = vmatpush1.msra.mxu0 0.0
        %1631 = vmatprep.subr.mxu0 0.0
        %1632 = vmatpush1.msra.mxu0 0.0
        %1633 = vmatprep.subr.mxu0 0.0
        %1634 = vmatpush1.msra.mxu0 0.0
        %1635 = vmatprep.subr.mxu0 0.0
        %1636 = vmatpush1.msra.mxu0 0.0
        %1637 = vmatprep.subr.mxu0 0.0
        %1638 = vmatpush1.msra.mxu0 0.0
        %1639 = vmatprep.subr.mxu0 0.0
        %1640 = vmatpush1.msra.mxu0 0.0
        %1641 = vmatprep.subr.mxu0 0.0
        %1642 = vmatpush1.msra.mxu0 0.0
        %1643 = vmatprep.subr.mxu0 0.0
        %1644 = vmatpush1.msra.mxu0 0.0
        %1645 = vmatprep.subr.mxu0 0.0
        %1646 = vmatpush1.msra.mxu0 0.0
        %1647 = vmatprep.mubr.f32.mxu0 0.0
        %1648 = vmatmul.mubr.f32.gmra.mrb[0].mxu0 %v1581
        %v1649 = vpop.f32.mrb[0].mxu0
        %v1650 = vadd.f32 0.0, %v1649
        %v1651 = vpop.f32.mrb[0].mxu0
        %1652 = vdwg.mxu0
        %v1653 = vld [vmem:[#allocation14] sm:$0xff]
        %v1654 = vld [vmem:[#allocation14 + $0x8] sm:$0xff]
        %v1655 = vld [vmem:[#allocation14 + $0x10] sm:$0xff]
        %v1656 = vld [vmem:[#allocation14 + $0x18] sm:$0xff]
        %v1658 = vsel %vm655, %v650, 0
        %1660 = vmatprep.subr.mxu0 0.0
        %1661 = vmatpush1.msra.mxu0 %v1653
        %1662 = vmatprep.subr.mxu0 0.0
        %1663 = vmatpush1.msra.mxu0 %v1654
        %1664 = vmatprep.subr.mxu0 0.0
        %1665 = vmatpush1.msra.mxu0 %v1655
        %1666 = vmatprep.subr.mxu0 0.0
        %1667 = vmatpush1.msra.mxu0 %v1656
        %1668 = vmatprep.subr.mxu0 0.0
        %1669 = vmatpush1.msra.mxu0 0.0
        %1670 = vmatprep.subr.mxu0 0.0
        %1671 = vmatpush1.msra.mxu0 0.0
        %1672 = vmatprep.subr.mxu0 0.0
        %1673 = vmatpush1.msra.mxu0 0.0
        %1674 = vmatprep.subr.mxu0 0.0
        %1675 = vmatpush1.msra.mxu0 0.0
        %1676 = vmatprep.subr.mxu0 0.0
        %1677 = vmatpush1.msra.mxu0 0.0
        %1678 = vmatprep.subr.mxu0 0.0
        %1679 = vmatpush1.msra.mxu0 0.0
        %1680 = vmatprep.subr.mxu0 0.0
        %1681 = vmatpush1.msra.mxu0 0.0
        %1682 = vmatprep.subr.mxu0 0.0
        %1683 = vmatpush1.msra.mxu0 0.0
        %1684 = vmatprep.subr.mxu0 0.0
        %1685 = vmatpush1.msra.mxu0 0.0
        %1686 = vmatprep.subr.mxu0 0.0
        %1687 = vmatpush1.msra.mxu0 0.0
        %1688 = vmatprep.subr.mxu0 0.0
        %1689 = vmatpush1.msra.mxu0 0.0
        %1690 = vmatprep.subr.mxu0 0.0
        %1691 = vmatpush1.msra.mxu0 0.0
        %1692 = vmatprep.subr.mxu0 0.0
        %1693 = vmatpush1.msra.mxu0 0.0
        %1694 = vmatprep.subr.mxu0 0.0
        %1695 = vmatpush1.msra.mxu0 0.0
        %1696 = vmatprep.subr.mxu0 0.0
        %1697 = vmatpush1.msra.mxu0 0.0
        %1698 = vmatprep.subr.mxu0 0.0
        %1699 = vmatpush1.msra.mxu0 0.0
        %1700 = vmatprep.subr.mxu0 0.0
        %1701 = vmatpush1.msra.mxu0 0.0
        %1702 = vmatprep.subr.mxu0 0.0
        %1703 = vmatpush1.msra.mxu0 0.0
        %1704 = vmatprep.subr.mxu0 0.0
        %1705 = vmatpush1.msra.mxu0 0.0
        %1706 = vmatprep.subr.mxu0 0.0
        %1707 = vmatpush1.msra.mxu0 0.0
        %1708 = vmatprep.subr.mxu0 0.0
        %1709 = vmatpush1.msra.mxu0 0.0
        %1710 = vmatprep.subr.mxu0 0.0
        %1711 = vmatpush1.msra.mxu0 0.0
        %1712 = vmatprep.subr.mxu0 0.0
        %1713 = vmatpush1.msra.mxu0 0.0
        %1714 = vmatprep.subr.mxu0 0.0
        %1715 = vmatpush1.msra.mxu0 0.0
        %1716 = vmatprep.subr.mxu0 0.0
        %1717 = vmatpush1.msra.mxu0 0.0
        %1718 = vmatprep.subr.mxu0 0.0
        %1719 = vmatpush1.msra.mxu0 0.0
        %1720 = vmatprep.subr.mxu0 0.0
        %1721 = vmatpush1.msra.mxu0 0.0
        %1722 = vmatprep.subr.mxu0 0.0
        %1723 = vmatpush1.msra.mxu0 0.0
        %1724 = vmatprep.mubr.f32.mxu0 0.0
        %1725 = vmatmul.mubr.f32.gmra.mrb[0].mxu0 %v1658
        %v1726 = vpop.f32.mrb[0].mxu0
        %v1727 = vadd.f32 0.0, %v1726
        %v1728 = vpop.f32.mrb[0].mxu0
        %1729 = vdwg.mxu0
        %1730 = vst.msk [vmem:[#allocation2] sm:$0xff] %vm729, %v1650
        %1732 = vrot.lane.b32.xlu0 %v1650, 120
        %v1733 = vpop.permute.xlu0 %1732
        %1735 = vst.msk [vmem:[%s735] sm:$0xff] %vm729, %v1733
        %1736 = vrot.lane.b32.xlu0 %v1650, 112
        %v1737 = vpop.permute.xlu0 %1736
        %1739 = vst.msk [vmem:[%s740] sm:$0xff] %vm729, %v1737
        %1740 = vrot.lane.b32.xlu0 %v1650, 104
        %v1741 = vpop.permute.xlu0 %1740
        %1743 = vst.msk [vmem:[%s745] sm:$0xff] %vm729, %v1741
        %1744 = vst.msk [vmem:[#allocation5] sm:$0xff] %vm729, %v1727
        %1746 = vrot.lane.b32.xlu0 %v1727, 120
        %v1747 = vpop.permute.xlu0 %1746
        %s1749 = scalar_lea.vmem [#allocation5], 8
        %1750 = vst.msk [vmem:[%s1749] sm:$0xff] %vm729, %v1747
        %1751 = vrot.lane.b32.xlu0 %v1727, 112
        %v1752 = vpop.permute.xlu0 %1751
        %s1754 = scalar_lea.vmem [#allocation5], 16
        %1755 = vst.msk [vmem:[%s1754] sm:$0xff] %vm729, %v1752
        %1756 = vrot.lane.b32.xlu0 %v1727, 104
        %v1757 = vpop.permute.xlu0 %1756
        %s1759 = scalar_lea.vmem [#allocation5], 24
        %1760 = vst.msk [vmem:[%s1759] sm:$0xff] %vm729, %v1757
        %1761 = vrot.lane.b32.xlu0 %v1727, 96
        %v1762 = vpop.permute.xlu0 %1761
        %1764 = vst.msk [vmem:[#allocation6] sm:$0xff] %vm729, %v1762
        %1765 = vrot.lane.b32.xlu0 %v1727, 88
        %v1766 = vpop.permute.xlu0 %1765
        %s1768 = scalar_lea.vmem [#allocation6], 8
        %1769 = vst.msk [vmem:[%s1768] sm:$0xff] %vm729, %v1766
        %1770 = vrot.lane.b32.xlu0 %v1727, 80
        %v1771 = vpop.permute.xlu0 %1770
        %s1773 = scalar_lea.vmem [#allocation6], 16
        %1774 = vst.msk [vmem:[%s1773] sm:$0xff] %vm729, %v1771
        %1775 = vrot.lane.b32.xlu0 %v1727, 72
        %v1776 = vpop.permute.xlu0 %1775
        %s1778 = scalar_lea.vmem [#allocation6], 24
        %1779 = vst.msk [vmem:[%s1778] sm:$0xff] %vm729, %v1776
        %s1780 = sld [smem:[#allocation8 + %s43]]
        %v1781 = vstv %s1780
        %vm1782 = vcmp.lt.s32.totalorder %v788, %v1781
        %v1783 = vld [vmem:[#allocation2] sm:$0xff]
        %v1784 = vld [vmem:[#allocation2 + $0x8] sm:$0xff]
        %v1785 = vld [vmem:[#allocation2 + $0x10] sm:$0xff]
        %v1786 = vld [vmem:[#allocation2 + $0x18] sm:$0xff]
        %v1787 = vld [vmem:[#allocation5] sm:$0xff]
        %v1788 = vld [vmem:[#allocation5 + $0x8] sm:$0xff]
        %v1789 = vld [vmem:[#allocation5 + $0x10] sm:$0xff]
        %v1790 = vld [vmem:[#allocation5 + $0x18] sm:$0xff]
        %v1792 = vsel %vm729, %v1783, 0
        %v1795 = vsel %vm729, %v1787, 0
        %1797 = vmatprep.subr.mxu0 0.0
        %1798 = vmatpush1.xpose.msra.mxu0 %v1795
        %1799 = vmatprep.subr.mxu0 0.0
        %1800 = vmatpush1.xpose.msra.mxu0 0.0
        %1801 = vmatprep.subr.mxu0 0.0
        %1802 = vmatpush1.xpose.msra.mxu0 0.0
        %1803 = vmatprep.subr.mxu0 0.0
        %1804 = vmatpush1.xpose.msra.mxu0 0.0
        %1805 = vmatprep.subr.mxu0 0.0
        %1806 = vmatpush1.xpose.msra.mxu0 0.0
        %1807 = vmatprep.subr.mxu0 0.0
        %1808 = vmatpush1.xpose.msra.mxu0 0.0
        %1809 = vmatprep.subr.mxu0 0.0
        %1810 = vmatpush1.xpose.msra.mxu0 0.0
        %1811 = vmatprep.subr.mxu0 0.0
        %1812 = vmatpush1.xpose.msra.mxu0 0.0
        %1813 = vmatprep.subr.mxu0 0.0
        %1814 = vmatpush1.xpose.msra.mxu0 0.0
        %1815 = vmatprep.subr.mxu0 0.0
        %1816 = vmatpush1.xpose.msra.mxu0 0.0
        %1817 = vmatprep.subr.mxu0 0.0
        %1818 = vmatpush1.xpose.msra.mxu0 0.0
        %1819 = vmatprep.subr.mxu0 0.0
        %1820 = vmatpush1.xpose.msra.mxu0 0.0
        %1821 = vmatprep.subr.mxu0 0.0
        %1822 = vmatpush1.xpose.msra.mxu0 0.0
        %1823 = vmatprep.subr.mxu0 0.0
        %1824 = vmatpush1.xpose.msra.mxu0 0.0
        %1825 = vmatprep.subr.mxu0 0.0
        %1826 = vmatpush1.xpose.msra.mxu0 0.0
        %1827 = vmatprep.subr.mxu0 0.0
        %1828 = vmatpush1.xpose.msra.mxu0 0.0
        %1829 = vmatprep.subr.mxu0 0.0
        %1830 = vmatpush1.xpose.msra.mxu0 0.0
        %1831 = vmatprep.subr.mxu0 0.0
        %1832 = vmatpush1.xpose.msra.mxu0 0.0
        %1833 = vmatprep.subr.mxu0 0.0
        %1834 = vmatpush1.xpose.msra.mxu0 0.0
        %1835 = vmatprep.subr.mxu0 0.0
        %1836 = vmatpush1.xpose.msra.mxu0 0.0
        %1837 = vmatprep.subr.mxu0 0.0
        %1838 = vmatpush1.xpose.msra.mxu0 0.0
        %1839 = vmatprep.subr.mxu0 0.0
        %1840 = vmatpush1.xpose.msra.mxu0 0.0
        %1841 = vmatprep.subr.mxu0 0.0
        %1842 = vmatpush1.xpose.msra.mxu0 0.0
        %1843 = vmatprep.subr.mxu0 0.0
        %1844 = vmatpush1.xpose.msra.mxu0 0.0
        %1845 = vmatprep.subr.mxu0 0.0
        %1846 = vmatpush1.xpose.msra.mxu0 0.0
        %1847 = vmatprep.subr.mxu0 0.0
        %1848 = vmatpush1.xpose.msra.mxu0 0.0
        %1849 = vmatprep.subr.mxu0 0.0
        %1850 = vmatpush1.xpose.msra.mxu0 0.0
        %1851 = vmatprep.subr.mxu0 0.0
        %1852 = vmatpush1.xpose.msra.mxu0 0.0
        %1853 = vmatprep.subr.mxu0 0.0
        %1854 = vmatpush1.xpose.msra.mxu0 0.0
        %1855 = vmatprep.subr.mxu0 0.0
        %1856 = vmatpush1.xpose.msra.mxu0 0.0
        %1857 = vmatprep.subr.mxu0 0.0
        %1858 = vmatpush1.xpose.msra.mxu0 0.0
        %1859 = vmatprep.subr.mxu0 0.0
        %1860 = vmatpush1.xpose.msra.mxu0 0.0
        %1861 = vmatprep.mubr.f32.mxu0 0.0
        %1862 = vmatmul.mubr.f32.gmra.mrb[0].mxu0 %v1792
        %v1863 = vpop.f32.mrb[0].mxu0
        %v1864 = vadd.f32 0.0, %v1863
        %v1865 = vpop.f32.mrb[0].mxu0
        %1866 = vdwg.mxu0
        %v1868 = vsel %vm729, %v1784, 0
        %v1871 = vsel %vm729, %v1788, 0
        %1873 = vmatprep.subr.mxu0 0.0
        %1874 = vmatpush1.xpose.msra.mxu0 %v1871
        %1875 = vmatprep.subr.mxu0 0.0
        %1876 = vmatpush1.xpose.msra.mxu0 0.0
        %1877 = vmatprep.subr.mxu0 0.0
        %1878 = vmatpush1.xpose.msra.mxu0 0.0
        %1879 = vmatprep.subr.mxu0 0.0
        %1880 = vmatpush1.xpose.msra.mxu0 0.0
        %1881 = vmatprep.subr.mxu0 0.0
        %1882 = vmatpush1.xpose.msra.mxu0 0.0
        %1883 = vmatprep.subr.mxu0 0.0
        %1884 = vmatpush1.xpose.msra.mxu0 0.0
        %1885 = vmatprep.subr.mxu0 0.0
        %1886 = vmatpush1.xpose.msra.mxu0 0.0
        %1887 = vmatprep.subr.mxu0 0.0
        %1888 = vmatpush1.xpose.msra.mxu0 0.0
        %1889 = vmatprep.subr.mxu0 0.0
        %1890 = vmatpush1.xpose.msra.mxu0 0.0
        %1891 = vmatprep.subr.mxu0 0.0
        %1892 = vmatpush1.xpose.msra.mxu0 0.0
        %1893 = vmatprep.subr.mxu0 0.0
        %1894 = vmatpush1.xpose.msra.mxu0 0.0
        %1895 = vmatprep.subr.mxu0 0.0
        %1896 = vmatpush1.xpose.msra.mxu0 0.0
        %1897 = vmatprep.subr.mxu0 0.0
        %1898 = vmatpush1.xpose.msra.mxu0 0.0
        %1899 = vmatprep.subr.mxu0 0.0
        %1900 = vmatpush1.xpose.msra.mxu0 0.0
        %1901 = vmatprep.subr.mxu0 0.0
        %1902 = vmatpush1.xpose.msra.mxu0 0.0
        %1903 = vmatprep.subr.mxu0 0.0
        %1904 = vmatpush1.xpose.msra.mxu0 0.0
        %1905 = vmatprep.subr.mxu0 0.0
        %1906 = vmatpush1.xpose.msra.mxu0 0.0
        %1907 = vmatprep.subr.mxu0 0.0
        %1908 = vmatpush1.xpose.msra.mxu0 0.0
        %1909 = vmatprep.subr.mxu0 0.0
        %1910 = vmatpush1.xpose.msra.mxu0 0.0
        %1911 = vmatprep.subr.mxu0 0.0
        %1912 = vmatpush1.xpose.msra.mxu0 0.0
        %1913 = vmatprep.subr.mxu0 0.0
        %1914 = vmatpush1.xpose.msra.mxu0 0.0
        %1915 = vmatprep.subr.mxu0 0.0
        %1916 = vmatpush1.xpose.msra.mxu0 0.0
        %1917 = vmatprep.subr.mxu0 0.0
        %1918 = vmatpush1.xpose.msra.mxu0 0.0
        %1919 = vmatprep.subr.mxu0 0.0
        %1920 = vmatpush1.xpose.msra.mxu0 0.0
        %1921 = vmatprep.subr.mxu0 0.0
        %1922 = vmatpush1.xpose.msra.mxu0 0.0
        %1923 = vmatprep.subr.mxu0 0.0
        %1924 = vmatpush1.xpose.msra.mxu0 0.0
        %1925 = vmatprep.subr.mxu0 0.0
        %1926 = vmatpush1.xpose.msra.mxu0 0.0
        %1927 = vmatprep.subr.mxu0 0.0
        %1928 = vmatpush1.xpose.msra.mxu0 0.0
        %1929 = vmatprep.subr.mxu0 0.0
        %1930 = vmatpush1.xpose.msra.mxu0 0.0
        %1931 = vmatprep.subr.mxu0 0.0
        %1932 = vmatpush1.xpose.msra.mxu0 0.0
        %1933 = vmatprep.subr.mxu0 0.0
        %1934 = vmatpush1.xpose.msra.mxu0 0.0
        %1935 = vmatprep.subr.mxu0 0.0
        %1936 = vmatpush1.xpose.msra.mxu0 0.0
        %1937 = vmatprep.mubr.f32.mxu0 0.0
        %1938 = vmatmul.mubr.f32.gmra.mrb[0].mxu0 %v1868
        %v1939 = vpop.f32.mrb[0].mxu0
        %v1940 = vadd.f32 0.0, %v1939
        %v1941 = vpop.f32.mrb[0].mxu0
        %1942 = vdwg.mxu0
        %v1944 = vsel %vm729, %v1785, 0
        %v1947 = vsel %vm729, %v1789, 0
        %1949 = vmatprep.subr.mxu0 0.0
        %1950 = vmatpush1.xpose.msra.mxu0 %v1947
        %1951 = vmatprep.subr.mxu0 0.0
        %1952 = vmatpush1.xpose.msra.mxu0 0.0
        %1953 = vmatprep.subr.mxu0 0.0
        %1954 = vmatpush1.xpose.msra.mxu0 0.0
        %1955 = vmatprep.subr.mxu0 0.0
        %1956 = vmatpush1.xpose.msra.mxu0 0.0
        %1957 = vmatprep.subr.mxu0 0.0
        %1958 = vmatpush1.xpose.msra.mxu0 0.0
        %1959 = vmatprep.subr.mxu0 0.0
        %1960 = vmatpush1.xpose.msra.mxu0 0.0
        %1961 = vmatprep.subr.mxu0 0.0
        %1962 = vmatpush1.xpose.msra.mxu0 0.0
        %1963 = vmatprep.subr.mxu0 0.0
        %1964 = vmatpush1.xpose.msra.mxu0 0.0
        %1965 = vmatprep.subr.mxu0 0.0
        %1966 = vmatpush1.xpose.msra.mxu0 0.0
        %1967 = vmatprep.subr.mxu0 0.0
        %1968 = vmatpush1.xpose.msra.mxu0 0.0
        %1969 = vmatprep.subr.mxu0 0.0
        %1970 = vmatpush1.xpose.msra.mxu0 0.0
        %1971 = vmatprep.subr.mxu0 0.0
        %1972 = vmatpush1.xpose.msra.mxu0 0.0
        %1973 = vmatprep.subr.mxu0 0.0
        %1974 = vmatpush1.xpose.msra.mxu0 0.0
        %1975 = vmatprep.subr.mxu0 0.0
        %1976 = vmatpush1.xpose.msra.mxu0 0.0
        %1977 = vmatprep.subr.mxu0 0.0
        %1978 = vmatpush1.xpose.msra.mxu0 0.0
        %1979 = vmatprep.subr.mxu0 0.0
        %1980 = vmatpush1.xpose.msra.mxu0 0.0
        %1981 = vmatprep.subr.mxu0 0.0
        %1982 = vmatpush1.xpose.msra.mxu0 0.0
        %1983 = vmatprep.subr.mxu0 0.0
        %1984 = vmatpush1.xpose.msra.mxu0 0.0
        %1985 = vmatprep.subr.mxu0 0.0
        %1986 = vmatpush1.xpose.msra.mxu0 0.0
        %1987 = vmatprep.subr.mxu0 0.0
        %1988 = vmatpush1.xpose.msra.mxu0 0.0
        %1989 = vmatprep.subr.mxu0 0.0
        %1990 = vmatpush1.xpose.msra.mxu0 0.0
        %1991 = vmatprep.subr.mxu0 0.0
        %1992 = vmatpush1.xpose.msra.mxu0 0.0
        %1993 = vmatprep.subr.mxu0 0.0
        %1994 = vmatpush1.xpose.msra.mxu0 0.0
        %1995 = vmatprep.subr.mxu0 0.0
        %1996 = vmatpush1.xpose.msra.mxu0 0.0
        %1997 = vmatprep.subr.mxu0 0.0
        %1998 = vmatpush1.xpose.msra.mxu0 0.0
        %1999 = vmatprep.subr.mxu0 0.0
        %2000 = vmatpush1.xpose.msra.mxu0 0.0
        %2001 = vmatprep.subr.mxu0 0.0
        %2002 = vmatpush1.xpose.msra.mxu0 0.0
        %2003 = vmatprep.subr.mxu0 0.0
        %2004 = vmatpush1.xpose.msra.mxu0 0.0
        %2005 = vmatprep.subr.mxu0 0.0
        %2006 = vmatpush1.xpose.msra.mxu0 0.0
        %2007 = vmatprep.subr.mxu0 0.0
        %2008 = vmatpush1.xpose.msra.mxu0 0.0
        %2009 = vmatprep.subr.mxu0 0.0
        %2010 = vmatpush1.xpose.msra.mxu0 0.0
        %2011 = vmatprep.subr.mxu0 0.0
        %2012 = vmatpush1.xpose.msra.mxu0 0.0
        %2013 = vmatprep.mubr.f32.mxu0 0.0
        %2014 = vmatmul.mubr.f32.gmra.mrb[0].mxu0 %v1944
        %v2015 = vpop.f32.mrb[0].mxu0
        %v2016 = vadd.f32 0.0, %v2015
        %v2017 = vpop.f32.mrb[0].mxu0
        %2018 = vdwg.mxu0
        %v2020 = vsel %vm729, %v1786, 0
        %v2023 = vsel %vm729, %v1790, 0
        %2025 = vmatprep.subr.mxu0 0.0
        %2026 = vmatpush1.xpose.msra.mxu0 %v2023
        %2027 = vmatprep.subr.mxu0 0.0
        %2028 = vmatpush1.xpose.msra.mxu0 0.0
        %2029 = vmatprep.subr.mxu0 0.0
        %2030 = vmatpush1.xpose.msra.mxu0 0.0
        %2031 = vmatprep.subr.mxu0 0.0
        %2032 = vmatpush1.xpose.msra.mxu0 0.0
        %2033 = vmatprep.subr.mxu0 0.0
        %2034 = vmatpush1.xpose.msra.mxu0 0.0
        %2035 = vmatprep.subr.mxu0 0.0
        %2036 = vmatpush1.xpose.msra.mxu0 0.0
        %2037 = vmatprep.subr.mxu0 0.0
        %2038 = vmatpush1.xpose.msra.mxu0 0.0
        %2039 = vmatprep.subr.mxu0 0.0
        %2040 = vmatpush1.xpose.msra.mxu0 0.0
        %2041 = vmatprep.subr.mxu0 0.0
        %2042 = vmatpush1.xpose.msra.mxu0 0.0
        %2043 = vmatprep.subr.mxu0 0.0
        %2044 = vmatpush1.xpose.msra.mxu0 0.0
        %2045 = vmatprep.subr.mxu0 0.0
        %2046 = vmatpush1.xpose.msra.mxu0 0.0
        %2047 = vmatprep.subr.mxu0 0.0
        %2048 = vmatpush1.xpose.msra.mxu0 0.0
        %2049 = vmatprep.subr.mxu0 0.0
        %2050 = vmatpush1.xpose.msra.mxu0 0.0
        %2051 = vmatprep.subr.mxu0 0.0
        %2052 = vmatpush1.xpose.msra.mxu0 0.0
        %2053 = vmatprep.subr.mxu0 0.0
        %2054 = vmatpush1.xpose.msra.mxu0 0.0
        %2055 = vmatprep.subr.mxu0 0.0
        %2056 = vmatpush1.xpose.msra.mxu0 0.0
        %2057 = vmatprep.subr.mxu0 0.0
        %2058 = vmatpush1.xpose.msra.mxu0 0.0
        %2059 = vmatprep.subr.mxu0 0.0
        %2060 = vmatpush1.xpose.msra.mxu0 0.0
        %2061 = vmatprep.subr.mxu0 0.0
        %2062 = vmatpush1.xpose.msra.mxu0 0.0
        %2063 = vmatprep.subr.mxu0 0.0
        %2064 = vmatpush1.xpose.msra.mxu0 0.0
        %2065 = vmatprep.subr.mxu0 0.0
        %2066 = vmatpush1.xpose.msra.mxu0 0.0
        %2067 = vmatprep.subr.mxu0 0.0
        %2068 = vmatpush1.xpose.msra.mxu0 0.0
        %2069 = vmatprep.subr.mxu0 0.0
        %2070 = vmatpush1.xpose.msra.mxu0 0.0
        %2071 = vmatprep.subr.mxu0 0.0
        %2072 = vmatpush1.xpose.msra.mxu0 0.0
        %2073 = vmatprep.subr.mxu0 0.0
        %2074 = vmatpush1.xpose.msra.mxu0 0.0
        %2075 = vmatprep.subr.mxu0 0.0
        %2076 = vmatpush1.xpose.msra.mxu0 0.0
        %2077 = vmatprep.subr.mxu0 0.0
        %2078 = vmatpush1.xpose.msra.mxu0 0.0
        %2079 = vmatprep.subr.mxu0 0.0
        %2080 = vmatpush1.xpose.msra.mxu0 0.0
        %2081 = vmatprep.subr.mxu0 0.0
        %2082 = vmatpush1.xpose.msra.mxu0 0.0
        %2083 = vmatprep.subr.mxu0 0.0
        %2084 = vmatpush1.xpose.msra.mxu0 0.0
        %2085 = vmatprep.subr.mxu0 0.0
        %2086 = vmatpush1.xpose.msra.mxu0 0.0
        %2087 = vmatprep.subr.mxu0 0.0
        %2088 = vmatpush1.xpose.msra.mxu0 0.0
        %2089 = vmatprep.mubr.f32.mxu0 0.0
        %2090 = vmatmul.mubr.f32.gmra.mrb[0].mxu0 %v2020
        %v2091 = vpop.f32.mrb[0].mxu0
        %v2092 = vadd.f32 0.0, %v2091
        %v2093 = vpop.f32.mrb[0].mxu0
        %2094 = vdwg.mxu0
        %v2095 = vmul.f32 %v1864, 0.35355338
        %v2096 = vmul.f32 %v1940, 0.35355338
        %v2097 = vmul.f32 %v2016, 0.35355338
        %v2098 = vmul.f32 %v2092, 0.35355338
        %v2099 = vsel %vm1782, 1, 0
        %vm2100 = vcmp.eq.s32.totalorder %v2099, 1
        %v2101 = vsel %vm2100, %v2095, -1000000.0
        %v2102 = vsel %vm2100, %v2096, -1000000.0
        %v2103 = vsel %vm2100, %v2097, -1000000.0
        %v2104 = vsel %vm2100, %v2098, -1000000.0
        %v2105 = vsel %vm729, %v2101, -inf
        %2106 = vmax.xlane.f32.xlu0 %v2105
        %v2107 = vpop.xlane.xlu0 %2106
        %v2108 = vsel %vm729, %v2102, -inf
        %2109 = vmax.xlane.f32.xlu0 %v2108
        %v2110 = vpop.xlane.xlu0 %2109
        %v2111 = vsel %vm729, %v2103, -inf
        %2112 = vmax.xlane.f32.xlu0 %v2111
        %v2113 = vpop.xlane.xlu0 %2112
        %v2114 = vsel %vm729, %v2104, -inf
        %2115 = vmax.xlane.f32.xlu0 %v2114
        %v2116 = vpop.xlane.xlu0 %2115
        %v2117 = vsub.f32 %v2101, %v2107
        %v2118 = vsub.f32 %v2102, %v2110
        %v2119 = vsub.f32 %v2103, %v2113
        %v2120 = vsub.f32 %v2104, %v2116
        %v2121 = vmul.f32 %v2117, 1.442695
        %v2122 = vpow.pop %v2121
        %v2123 = vmul.f32 %v2118, 1.442695
        %v2124 = vpow.pop %v2123
        %v2125 = vmul.f32 %v2119, 1.442695
        %v2126 = vpow.pop %v2125
        %v2127 = vmul.f32 %v2120, 1.442695
        %v2128 = vpow.pop %v2127
        %v2129 = vsel %vm729, %v2122, 0.0
        %2130 = vadd.xlane.f32.xlu0 %v2129
        %v2131 = vpop.xlane.xlu0 %2130
        %v2132 = vsel %vm729, %v2124, 0.0
        %2133 = vadd.xlane.f32.xlu0 %v2132
        %v2134 = vpop.xlane.xlu0 %2133
        %v2135 = vsel %vm729, %v2126, 0.0
        %2136 = vadd.xlane.f32.xlu0 %v2135
        %v2137 = vpop.xlane.xlu0 %2136
        %v2138 = vsel %vm729, %v2128, 0.0
        %2139 = vadd.xlane.f32.xlu0 %v2138
        %v2140 = vpop.xlane.xlu0 %2139
        %v2141 = vrcp.pop %v2131
        %v2142 = vrcp.pop %v2134
        %v2143 = vrcp.pop %v2137
        %v2144 = vrcp.pop %v2140
        %v2145 = vmul.f32 %v2122, %v2141
        %v2146 = vmul.f32 %v2124, %v2142
        %v2147 = vmul.f32 %v2126, %v2143
        %v2148 = vmul.f32 %v2128, %v2144
        %v2149 = vld [vmem:[#allocation6] sm:$0xff]
        %v2150 = vld [vmem:[#allocation6 + $0x8] sm:$0xff]
        %v2151 = vld [vmem:[#allocation6 + $0x10] sm:$0xff]
        %v2152 = vld [vmem:[#allocation6 + $0x18] sm:$0xff]
        %v2154 = vsel %vm729, %v2145, 0
        %2156 = vmatprep.subr.mxu0 0.0
        %2157 = vmatpush1.msra.mxu0 %v2149
        %2158 = vmatprep.subr.mxu0 0.0
        %2159 = vmatpush1.msra.mxu0 0.0
        %2160 = vmatprep.subr.mxu0 0.0
        %2161 = vmatpush1.msra.mxu0 0.0
        %2162 = vmatprep.subr.mxu0 0.0
        %2163 = vmatpush1.msra.mxu0 0.0
        %2164 = vmatprep.subr.mxu0 0.0
        %2165 = vmatpush1.msra.mxu0 0.0
        %2166 = vmatprep.subr.mxu0 0.0
        %2167 = vmatpush1.msra.mxu0 0.0
        %2168 = vmatprep.subr.mxu0 0.0
        %2169 = vmatpush1.msra.mxu0 0.0
        %2170 = vmatprep.subr.mxu0 0.0
        %2171 = vmatpush1.msra.mxu0 0.0
        %2172 = vmatprep.subr.mxu0 0.0
        %2173 = vmatpush1.msra.mxu0 0.0
        %2174 = vmatprep.subr.mxu0 0.0
        %2175 = vmatpush1.msra.mxu0 0.0
        %2176 = vmatprep.subr.mxu0 0.0
        %2177 = vmatpush1.msra.mxu0 0.0
        %2178 = vmatprep.subr.mxu0 0.0
        %2179 = vmatpush1.msra.mxu0 0.0
        %2180 = vmatprep.subr.mxu0 0.0
        %2181 = vmatpush1.msra.mxu0 0.0
        %2182 = vmatprep.subr.mxu0 0.0
        %2183 = vmatpush1.msra.mxu0 0.0
        %2184 = vmatprep.subr.mxu0 0.0
        %2185 = vmatpush1.msra.mxu0 0.0
        %2186 = vmatprep.subr.mxu0 0.0
        %2187 = vmatpush1.msra.mxu0 0.0
        %2188 = vmatprep.subr.mxu0 0.0
        %2189 = vmatpush1.msra.mxu0 0.0
        %2190 = vmatprep.subr.mxu0 0.0
        %2191 = vmatpush1.msra.mxu0 0.0
        %2192 = vmatprep.subr.mxu0 0.0
        %2193 = vmatpush1.msra.mxu0 0.0
        %2194 = vmatprep.subr.mxu0 0.0
        %2195 = vmatpush1.msra.mxu0 0.0
        %2196 = vmatprep.subr.mxu0 0.0
        %2197 = vmatpush1.msra.mxu0 0.0
        %2198 = vmatprep.subr.mxu0 0.0
        %2199 = vmatpush1.msra.mxu0 0.0
        %2200 = vmatprep.subr.mxu0 0.0
        %2201 = vmatpush1.msra.mxu0 0.0
        %2202 = vmatprep.subr.mxu0 0.0
        %2203 = vmatpush1.msra.mxu0 0.0
        %2204 = vmatprep.subr.mxu0 0.0
        %2205 = vmatpush1.msra.mxu0 0.0
        %2206 = vmatprep.subr.mxu0 0.0
        %2207 = vmatpush1.msra.mxu0 0.0
        %2208 = vmatprep.subr.mxu0 0.0
        %2209 = vmatpush1.msra.mxu0 0.0
        %2210 = vmatprep.subr.mxu0 0.0
        %2211 = vmatpush1.msra.mxu0 0.0
        %2212 = vmatprep.subr.mxu0 0.0
        %2213 = vmatpush1.msra.mxu0 0.0
        %2214 = vmatprep.subr.mxu0 0.0
        %2215 = vmatpush1.msra.mxu0 0.0
        %2216 = vmatprep.subr.mxu0 0.0
        %2217 = vmatpush1.msra.mxu0 0.0
        %2218 = vmatprep.subr.mxu0 0.0
        %2219 = vmatpush1.msra.mxu0 0.0
        %2220 = vmatprep.mubr.f32.mxu0 0.0
        %2221 = vmatmul.mubr.f32.gmra.mrb[0].mxu0 %v2154
        %v2222 = vpop.f32.mrb[0].mxu0
        %v2223 = vadd.f32 0.0, %v2222
        %v2224 = vpop.f32.mrb[0].mxu0
        %2225 = vdwg.mxu0
        %v2227 = vsel %vm729, %v2146, 0
        %2229 = vmatprep.subr.mxu0 0.0
        %2230 = vmatpush1.msra.mxu0 %v2150
        %2231 = vmatprep.subr.mxu0 0.0
        %2232 = vmatpush1.msra.mxu0 0.0
        %2233 = vmatprep.subr.mxu0 0.0
        %2234 = vmatpush1.msra.mxu0 0.0
        %2235 = vmatprep.subr.mxu0 0.0
        %2236 = vmatpush1.msra.mxu0 0.0
        %2237 = vmatprep.subr.mxu0 0.0
        %2238 = vmatpush1.msra.mxu0 0.0
        %2239 = vmatprep.subr.mxu0 0.0
        %2240 = vmatpush1.msra.mxu0 0.0
        %2241 = vmatprep.subr.mxu0 0.0
        %2242 = vmatpush1.msra.mxu0 0.0
        %2243 = vmatprep.subr.mxu0 0.0
        %2244 = vmatpush1.msra.mxu0 0.0
        %2245 = vmatprep.subr.mxu0 0.0
        %2246 = vmatpush1.msra.mxu0 0.0
        %2247 = vmatprep.subr.mxu0 0.0
        %2248 = vmatpush1.msra.mxu0 0.0
        %2249 = vmatprep.subr.mxu0 0.0
        %2250 = vmatpush1.msra.mxu0 0.0
        %2251 = vmatprep.subr.mxu0 0.0
        %2252 = vmatpush1.msra.mxu0 0.0
        %2253 = vmatprep.subr.mxu0 0.0
        %2254 = vmatpush1.msra.mxu0 0.0
        %2255 = vmatprep.subr.mxu0 0.0
        %2256 = vmatpush1.msra.mxu0 0.0
        %2257 = vmatprep.subr.mxu0 0.0
        %2258 = vmatpush1.msra.mxu0 0.0
        %2259 = vmatprep.subr.mxu0 0.0
        %2260 = vmatpush1.msra.mxu0 0.0
        %2261 = vmatprep.subr.mxu0 0.0
        %2262 = vmatpush1.msra.mxu0 0.0
        %2263 = vmatprep.subr.mxu0 0.0
        %2264 = vmatpush1.msra.mxu0 0.0
        %2265 = vmatprep.subr.mxu0 0.0
        %2266 = vmatpush1.msra.mxu0 0.0
        %2267 = vmatprep.subr.mxu0 0.0
        %2268 = vmatpush1.msra.mxu0 0.0
        %2269 = vmatprep.subr.mxu0 0.0
        %2270 = vmatpush1.msra.mxu0 0.0
        %2271 = vmatprep.subr.mxu0 0.0
        %2272 = vmatpush1.msra.mxu0 0.0
        %2273 = vmatprep.subr.mxu0 0.0
        %2274 = vmatpush1.msra.mxu0 0.0
        %2275 = vmatprep.subr.mxu0 0.0
        %2276 = vmatpush1.msra.mxu0 0.0
        %2277 = vmatprep.subr.mxu0 0.0
        %2278 = vmatpush1.msra.mxu0 0.0
        %2279 = vmatprep.subr.mxu0 0.0
        %2280 = vmatpush1.msra.mxu0 0.0
        %2281 = vmatprep.subr.mxu0 0.0
        %2282 = vmatpush1.msra.mxu0 0.0
        %2283 = vmatprep.subr.mxu0 0.0
        %2284 = vmatpush1.msra.mxu0 0.0
        %2285 = vmatprep.subr.mxu0 0.0
        %2286 = vmatpush1.msra.mxu0 0.0
        %2287 = vmatprep.subr.mxu0 0.0
        %2288 = vmatpush1.msra.mxu0 0.0
        %2289 = vmatprep.subr.mxu0 0.0
        %2290 = vmatpush1.msra.mxu0 0.0
        %2291 = vmatprep.subr.mxu0 0.0
        %2292 = vmatpush1.msra.mxu0 0.0
        %2293 = vmatprep.mubr.f32.mxu0 0.0
        %2294 = vmatmul.mubr.f32.gmra.mrb[0].mxu0 %v2227
        %v2295 = vpop.f32.mrb[0].mxu0
        %v2296 = vadd.f32 0.0, %v2295
        %v2297 = vpop.f32.mrb[0].mxu0
        %2298 = vdwg.mxu0
        %v2300 = vsel %vm729, %v2147, 0
        %2302 = vmatprep.subr.mxu0 0.0
        %2303 = vmatpush1.msra.mxu0 %v2151
        %2304 = vmatprep.subr.mxu0 0.0
        %2305 = vmatpush1.msra.mxu0 0.0
        %2306 = vmatprep.subr.mxu0 0.0
        %2307 = vmatpush1.msra.mxu0 0.0
        %2308 = vmatprep.subr.mxu0 0.0
        %2309 = vmatpush1.msra.mxu0 0.0
        %2310 = vmatprep.subr.mxu0 0.0
        %2311 = vmatpush1.msra.mxu0 0.0
        %2312 = vmatprep.subr.mxu0 0.0
        %2313 = vmatpush1.msra.mxu0 0.0
        %2314 = vmatprep.subr.mxu0 0.0
        %2315 = vmatpush1.msra.mxu0 0.0
        %2316 = vmatprep.subr.mxu0 0.0
        %2317 = vmatpush1.msra.mxu0 0.0
        %2318 = vmatprep.subr.mxu0 0.0
        %2319 = vmatpush1.msra.mxu0 0.0
        %2320 = vmatprep.subr.mxu0 0.0
        %2321 = vmatpush1.msra.mxu0 0.0
        %2322 = vmatprep.subr.mxu0 0.0
        %2323 = vmatpush1.msra.mxu0 0.0
        %2324 = vmatprep.subr.mxu0 0.0
        %2325 = vmatpush1.msra.mxu0 0.0
        %2326 = vmatprep.subr.mxu0 0.0
        %2327 = vmatpush1.msra.mxu0 0.0
        %2328 = vmatprep.subr.mxu0 0.0
        %2329 = vmatpush1.msra.mxu0 0.0
        %2330 = vmatprep.subr.mxu0 0.0
        %2331 = vmatpush1.msra.mxu0 0.0
        %2332 = vmatprep.subr.mxu0 0.0
        %2333 = vmatpush1.msra.mxu0 0.0
        %2334 = vmatprep.subr.mxu0 0.0
        %2335 = vmatpush1.msra.mxu0 0.0
        %2336 = vmatprep.subr.mxu0 0.0
        %2337 = vmatpush1.msra.mxu0 0.0
        %2338 = vmatprep.subr.mxu0 0.0
        %2339 = vmatpush1.msra.mxu0 0.0
        %2340 = vmatprep.subr.mxu0 0.0
        %2341 = vmatpush1.msra.mxu0 0.0
        %2342 = vmatprep.subr.mxu0 0.0
        %2343 = vmatpush1.msra.mxu0 0.0
        %2344 = vmatprep.subr.mxu0 0.0
        %2345 = vmatpush1.msra.mxu0 0.0
        %2346 = vmatprep.subr.mxu0 0.0
        %2347 = vmatpush1.msra.mxu0 0.0
        %2348 = vmatprep.subr.mxu0 0.0
        %2349 = vmatpush1.msra.mxu0 0.0
        %2350 = vmatprep.subr.mxu0 0.0
        %2351 = vmatpush1.msra.mxu0 0.0
        %2352 = vmatprep.subr.mxu0 0.0
        %2353 = vmatpush1.msra.mxu0 0.0
        %2354 = vmatprep.subr.mxu0 0.0
        %2355 = vmatpush1.msra.mxu0 0.0
        %2356 = vmatprep.subr.mxu0 0.0
        %2357 = vmatpush1.msra.mxu0 0.0
        %2358 = vmatprep.subr.mxu0 0.0
        %2359 = vmatpush1.msra.mxu0 0.0
        %2360 = vmatprep.subr.mxu0 0.0
        %2361 = vmatpush1.msra.mxu0 0.0
        %2362 = vmatprep.subr.mxu0 0.0
        %2363 = vmatpush1.msra.mxu0 0.0
        %2364 = vmatprep.subr.mxu0 0.0
        %2365 = vmatpush1.msra.mxu0 0.0
        %2366 = vmatprep.mubr.f32.mxu0 0.0
        %2367 = vmatmul.mubr.f32.gmra.mrb[0].mxu0 %v2300
        %v2368 = vpop.f32.mrb[0].mxu0
        %v2369 = vadd.f32 0.0, %v2368
        %v2370 = vpop.f32.mrb[0].mxu0
        %2371 = vdwg.mxu0
        %v2373 = vsel %vm729, %v2148, 0
        %2375 = vmatprep.subr.mxu0 0.0
        %2376 = vmatpush1.msra.mxu0 %v2152
        %2377 = vmatprep.subr.mxu0 0.0
        %2378 = vmatpush1.msra.mxu0 0.0
        %2379 = vmatprep.subr.mxu0 0.0
        %2380 = vmatpush1.msra.mxu0 0.0
        %2381 = vmatprep.subr.mxu0 0.0
        %2382 = vmatpush1.msra.mxu0 0.0
        %2383 = vmatprep.subr.mxu0 0.0
        %2384 = vmatpush1.msra.mxu0 0.0
        %2385 = vmatprep.subr.mxu0 0.0
        %2386 = vmatpush1.msra.mxu0 0.0
        %2387 = vmatprep.subr.mxu0 0.0
        %2388 = vmatpush1.msra.mxu0 0.0
        %2389 = vmatprep.subr.mxu0 0.0
        %2390 = vmatpush1.msra.mxu0 0.0
        %2391 = vmatprep.subr.mxu0 0.0
        %2392 = vmatpush1.msra.mxu0 0.0
        %2393 = vmatprep.subr.mxu0 0.0
        %2394 = vmatpush1.msra.mxu0 0.0
        %2395 = vmatprep.subr.mxu0 0.0
        %2396 = vmatpush1.msra.mxu0 0.0
        %2397 = vmatprep.subr.mxu0 0.0
        %2398 = vmatpush1.msra.mxu0 0.0
        %2399 = vmatprep.subr.mxu0 0.0
        %2400 = vmatpush1.msra.mxu0 0.0
        %2401 = vmatprep.subr.mxu0 0.0
        %2402 = vmatpush1.msra.mxu0 0.0
        %2403 = vmatprep.subr.mxu0 0.0
        %2404 = vmatpush1.msra.mxu0 0.0
        %2405 = vmatprep.subr.mxu0 0.0
        %2406 = vmatpush1.msra.mxu0 0.0
        %2407 = vmatprep.subr.mxu0 0.0
        %2408 = vmatpush1.msra.mxu0 0.0
        %2409 = vmatprep.subr.mxu0 0.0
        %2410 = vmatpush1.msra.mxu0 0.0
        %2411 = vmatprep.subr.mxu0 0.0
        %2412 = vmatpush1.msra.mxu0 0.0
        %2413 = vmatprep.subr.mxu0 0.0
        %2414 = vmatpush1.msra.mxu0 0.0
        %2415 = vmatprep.subr.mxu0 0.0
        %2416 = vmatpush1.msra.mxu0 0.0
        %2417 = vmatprep.subr.mxu0 0.0
        %2418 = vmatpush1.msra.mxu0 0.0
        %2419 = vmatprep.subr.mxu0 0.0
        %2420 = vmatpush1.msra.mxu0 0.0
        %2421 = vmatprep.subr.mxu0 0.0
        %2422 = vmatpush1.msra.mxu0 0.0
        %2423 = vmatprep.subr.mxu0 0.0
        %2424 = vmatpush1.msra.mxu0 0.0
        %2425 = vmatprep.subr.mxu0 0.0
        %2426 = vmatpush1.msra.mxu0 0.0
        %2427 = vmatprep.subr.mxu0 0.0
        %2428 = vmatpush1.msra.mxu0 0.0
        %2429 = vmatprep.subr.mxu0 0.0
        %2430 = vmatpush1.msra.mxu0 0.0
        %2431 = vmatprep.subr.mxu0 0.0
        %2432 = vmatpush1.msra.mxu0 0.0
        %2433 = vmatprep.subr.mxu0 0.0
        %2434 = vmatpush1.msra.mxu0 0.0
        %2435 = vmatprep.subr.mxu0 0.0
        %2436 = vmatpush1.msra.mxu0 0.0
        %2437 = vmatprep.subr.mxu0 0.0
        %2438 = vmatpush1.msra.mxu0 0.0
        %2439 = vmatprep.mubr.f32.mxu0 0.0
        %2440 = vmatmul.mubr.f32.gmra.mrb[0].mxu0 %v2373
        %v2441 = vpop.f32.mrb[0].mxu0
        %v2442 = vadd.f32 0.0, %v2441
        %v2443 = vpop.f32.mrb[0].mxu0
        %2444 = vdwg.mxu0
        %2446 = vrot.lane.b32.xlu0 %v2296, 8
        %v2447 = vpop.permute.xlu0 %2446
        %2450 = vrot.lane.b32.xlu0 %v2369, 16
        %v2451 = vpop.permute.xlu0 %2450
        %2454 = vrot.lane.b32.xlu0 %v2442, 24
        %v2455 = vpop.permute.xlu0 %2454
        %v2457 = vsel %vm729, %v2223, %v2447
        %v2458 = vsel %vm1465, %v2457, %v2451
        %v2459 = vsel %vm1467, %v2458, %v2455
        %v2460 = vld [vmem:[#allocation15] sm:$0xff]
        %v2461 = vld [vmem:[#allocation15 + $0x8] sm:$0xff]
        %v2462 = vld [vmem:[#allocation15 + $0x10] sm:$0xff]
        %v2463 = vld [vmem:[#allocation15 + $0x18] sm:$0xff]
        %v2465 = vsel %vm655, %v2459, 0
        %2467 = vmatprep.subr.mxu0 0.0
        %2468 = vmatpush1.msra.mxu0 %v2460
        %2469 = vmatprep.subr.mxu0 0.0
        %2470 = vmatpush1.msra.mxu0 %v2461
        %2471 = vmatprep.subr.mxu0 0.0
        %2472 = vmatpush1.msra.mxu0 %v2462
        %2473 = vmatprep.subr.mxu0 0.0
        %2474 = vmatpush1.msra.mxu0 %v2463
        %2475 = vmatprep.subr.mxu0 0.0
        %2476 = vmatpush1.msra.mxu0 0.0
        %2477 = vmatprep.subr.mxu0 0.0
        %2478 = vmatpush1.msra.mxu0 0.0
        %2479 = vmatprep.subr.mxu0 0.0
        %2480 = vmatpush1.msra.mxu0 0.0
        %2481 = vmatprep.subr.mxu0 0.0
        %2482 = vmatpush1.msra.mxu0 0.0
        %2483 = vmatprep.subr.mxu0 0.0
        %2484 = vmatpush1.msra.mxu0 0.0
        %2485 = vmatprep.subr.mxu0 0.0
        %2486 = vmatpush1.msra.mxu0 0.0
        %2487 = vmatprep.subr.mxu0 0.0
        %2488 = vmatpush1.msra.mxu0 0.0
        %2489 = vmatprep.subr.mxu0 0.0
        %2490 = vmatpush1.msra.mxu0 0.0
        %2491 = vmatprep.subr.mxu0 0.0
        %2492 = vmatpush1.msra.mxu0 0.0
        %2493 = vmatprep.subr.mxu0 0.0
        %2494 = vmatpush1.msra.mxu0 0.0
        %2495 = vmatprep.subr.mxu0 0.0
        %2496 = vmatpush1.msra.mxu0 0.0
        %2497 = vmatprep.subr.mxu0 0.0
        %2498 = vmatpush1.msra.mxu0 0.0
        %2499 = vmatprep.subr.mxu0 0.0
        %2500 = vmatpush1.msra.mxu0 0.0
        %2501 = vmatprep.subr.mxu0 0.0
        %2502 = vmatpush1.msra.mxu0 0.0
        %2503 = vmatprep.subr.mxu0 0.0
        %2504 = vmatpush1.msra.mxu0 0.0
        %2505 = vmatprep.subr.mxu0 0.0
        %2506 = vmatpush1.msra.mxu0 0.0
        %2507 = vmatprep.subr.mxu0 0.0
        %2508 = vmatpush1.msra.mxu0 0.0
        %2509 = vmatprep.subr.mxu0 0.0
        %2510 = vmatpush1.msra.mxu0 0.0
        %2511 = vmatprep.subr.mxu0 0.0
        %2512 = vmatpush1.msra.mxu0 0.0
        %2513 = vmatprep.subr.mxu0 0.0
        %2514 = vmatpush1.msra.mxu0 0.0
        %2515 = vmatprep.subr.mxu0 0.0
        %2516 = vmatpush1.msra.mxu0 0.0
        %2517 = vmatprep.subr.mxu0 0.0
        %2518 = vmatpush1.msra.mxu0 0.0
        %2519 = vmatprep.subr.mxu0 0.0
        %2520 = vmatpush1.msra.mxu0 0.0
        %2521 = vmatprep.subr.mxu0 0.0
        %2522 = vmatpush1.msra.mxu0 0.0
        %2523 = vmatprep.subr.mxu0 0.0
        %2524 = vmatpush1.msra.mxu0 0.0
        %2525 = vmatprep.subr.mxu0 0.0
        %2526 = vmatpush1.msra.mxu0 0.0
        %2527 = vmatprep.subr.mxu0 0.0
        %2528 = vmatpush1.msra.mxu0 0.0
        %2529 = vmatprep.subr.mxu0 0.0
        %2530 = vmatpush1.msra.mxu0 0.0
        %2531 = vmatprep.mubr.f32.mxu0 0.0
        %2532 = vmatmul.mubr.f32.gmra.mrb[0].mxu0 %v2465
        %v2533 = vpop.f32.mrb[0].mxu0
        %v2534 = vadd.f32 %v1575, %v2533
        %v2535 = vpop.f32.mrb[0].mxu0
        %2536 = vdwg.mxu0
        %v2537 = vld [vmem:[%s10] sm:$0x1]
        %v2538 = vld [vmem:[%s11] sm:$0x1]
        %v2539 = vsel %vm655, %v2534, 0.0
        %2540 = vadd.xlane.f32.xlu0 %v2539
        %v2541 = vpop.xlane.xlu0 %2540
        %v2542 = vmul.f32 %v2541, %v1551
        %v2543 = vsub.f32 %v2534, %v2542
        %v2544 = vmul.f32 %v2543, %v2543
        %v2545 = vsel %vm655, %v2544, 0.0
        %2546 = vadd.xlane.f32.xlu0 %v2545
        %v2547 = vpop.xlane.xlu0 %2546
        %v2548 = vmul.f32 %v2547, %v1551
        %v2549 = vadd.f32 %v2548, 1e-05
        %v2550 = vrsqrt.pop %v2549
        %v2551 = vmul.f32 %v2543, %v2550
        %v2553 = vlaneseq
        %v2554 = vshrl.u32 %v2553, 7
        %v2555 = vsub.s32 0, %v2554
        %v2556 = vrot.slane %v2537, %v2555
        %v2558 = vmul.f32 %v2551, %v2556
        %v2560 = vlaneseq
        %v2561 = vshrl.u32 %v2560, 7
        %v2562 = vsub.s32 0, %v2561
        %v2563 = vrot.slane %v2538, %v2562
        %v2565 = vadd.f32 %v2558, %v2563
        %v2566 = vld [vmem:[#allocation17] sm:$0xff]
        %v2567 = vld [vmem:[#allocation17 + $0x8] sm:$0xff]
        %v2568 = vld [vmem:[#allocation17 + $0x10] sm:$0xff]
        %v2569 = vld [vmem:[#allocation17 + $0x18] sm:$0xff]
        %v2570 = vld [vmem:[%s13] sm:$0x1]
        %v2572 = vlaneseq
        %v2573 = vshrl.u32 %v2572, 7
        %v2574 = vsub.s32 0, %v2573
        %v2575 = vrot.slane %v2570, %v2574
        %v2578 = vsel %vm655, %v2565, 0
        %2580 = vmatprep.subr.mxu0 0.0
        %2581 = vmatpush1.msra.mxu0 %v2566
        %2582 = vmatprep.subr.mxu0 0.0
        %2583 = vmatpush1.msra.mxu0 %v2567
        %2584 = vmatprep.subr.mxu0 0.0
        %2585 = vmatpush1.msra.mxu0 %v2568
        %2586 = vmatprep.subr.mxu0 0.0
        %2587 = vmatpush1.msra.mxu0 %v2569
        %2588 = vmatprep.subr.mxu0 0.0
        %2589 = vmatpush1.msra.mxu0 0.0
        %2590 = vmatprep.subr.mxu0 0.0
        %2591 = vmatpush1.msra.mxu0 0.0
        %2592 = vmatprep.subr.mxu0 0.0
        %2593 = vmatpush1.msra.mxu0 0.0
        %2594 = vmatprep.subr.mxu0 0.0
        %2595 = vmatpush1.msra.mxu0 0.0
        %2596 = vmatprep.subr.mxu0 0.0
        %2597 = vmatpush1.msra.mxu0 0.0
        %2598 = vmatprep.subr.mxu0 0.0
        %2599 = vmatpush1.msra.mxu0 0.0
        %2600 = vmatprep.subr.mxu0 0.0
        %2601 = vmatpush1.msra.mxu0 0.0
        %2602 = vmatprep.subr.mxu0 0.0
        %2603 = vmatpush1.msra.mxu0 0.0
        %2604 = vmatprep.subr.mxu0 0.0
        %2605 = vmatpush1.msra.mxu0 0.0
        %2606 = vmatprep.subr.mxu0 0.0
        %2607 = vmatpush1.msra.mxu0 0.0
        %2608 = vmatprep.subr.mxu0 0.0
        %2609 = vmatpush1.msra.mxu0 0.0
        %2610 = vmatprep.subr.mxu0 0.0
        %2611 = vmatpush1.msra.mxu0 0.0
        %2612 = vmatprep.subr.mxu0 0.0
        %2613 = vmatpush1.msra.mxu0 0.0
        %2614 = vmatprep.subr.mxu0 0.0
        %2615 = vmatpush1.msra.mxu0 0.0
        %2616 = vmatprep.subr.mxu0 0.0
        %2617 = vmatpush1.msra.mxu0 0.0
        %2618 = vmatprep.subr.mxu0 0.0
        %2619 = vmatpush1.msra.mxu0 0.0
        %2620 = vmatprep.subr.mxu0 0.0
        %2621 = vmatpush1.msra.mxu0 0.0
        %2622 = vmatprep.subr.mxu0 0.0
        %2623 = vmatpush1.msra.mxu0 0.0
        %2624 = vmatprep.subr.mxu0 0.0
        %2625 = vmatpush1.msra.mxu0 0.0
        %2626 = vmatprep.subr.mxu0 0.0
        %2627 = vmatpush1.msra.mxu0 0.0
        %2628 = vmatprep.subr.mxu0 0.0
        %2629 = vmatpush1.msra.mxu0 0.0
        %2630 = vmatprep.subr.mxu0 0.0
        %2631 = vmatpush1.msra.mxu0 0.0
        %2632 = vmatprep.subr.mxu0 0.0
        %2633 = vmatpush1.msra.mxu0 0.0
        %2634 = vmatprep.subr.mxu0 0.0
        %2635 = vmatpush1.msra.mxu0 0.0
        %2636 = vmatprep.subr.mxu0 0.0
        %2637 = vmatpush1.msra.mxu0 0.0
        %2638 = vmatprep.subr.mxu0 0.0
        %2639 = vmatpush1.msra.mxu0 0.0
        %2640 = vmatprep.subr.mxu0 0.0
        %2641 = vmatpush1.msra.mxu0 0.0
        %2642 = vmatprep.subr.mxu0 0.0
        %2643 = vmatpush1.msra.mxu0 0.0
        %2644 = vmatprep.mubr.f32.mxu0 0.0
        %2645 = vmatmul.mubr.f32.gmra.mrb[0].mxu0 %v2578
        %v2646 = vpop.f32.mrb[0].mxu0
        %v2647 = vadd.f32 %v2575, %v2646
        %v2648 = vpop.f32.mrb[0].mxu0
        %2649 = vdwg.mxu0
        %v2650 = vmax.f32 %v2647, 0.0
        %v2651 = vld [vmem:[%s14] sm:$0xff]
        %v2652 = vld [vmem:[%s14 + $0x8] sm:$0xff]
        %v2653 = vld [vmem:[%s14 + $0x10] sm:$0xff]
        %v2654 = vld [vmem:[%s14 + $0x18] sm:$0xff]
        %v2655 = vld [vmem:[%s14 + $0x20] sm:$0xff]
        %v2656 = vld [vmem:[%s14 + $0x28] sm:$0xff]
        %v2657 = vld [vmem:[%s14 + $0x30] sm:$0xff]
        %v2658 = vld [vmem:[%s14 + $0x38] sm:$0xff]
        %v2659 = vld [vmem:[%s15] sm:$0x1]
        %v2661 = vlaneseq
        %v2662 = vshrl.u32 %v2661, 7
        %v2663 = vsub.s32 0, %v2662
        %v2664 = vrot.slane %v2659, %v2663
        %vm2666 = vcmask 523264
        %v2668 = vsel %vm2666, %v2650, 0
        %2670 = vmatprep.subr.mxu0 0.0
        %2671 = vmatpush1.msra.mxu0 %v2651
        %2672 = vmatprep.subr.mxu0 0.0
        %2673 = vmatpush1.msra.mxu0 %v2652
        %2674 = vmatprep.subr.mxu0 0.0
        %2675 = vmatpush1.msra.mxu0 %v2653
        %2676 = vmatprep.subr.mxu0 0.0
        %2677 = vmatpush1.msra.mxu0 %v2654
        %2678 = vmatprep.subr.mxu0 0.0
        %2679 = vmatpush1.msra.mxu0 %v2655
        %2680 = vmatprep.subr.mxu0 0.0
        %2681 = vmatpush1.msra.mxu0 %v2656
        %2682 = vmatprep.subr.mxu0 0.0
        %2683 = vmatpush1.msra.mxu0 %v2657
        %2684 = vmatprep.subr.mxu0 0.0
        %2685 = vmatpush1.msra.mxu0 %v2658
        %2686 = vmatprep.subr.mxu0 0.0
        %2687 = vmatpush1.msra.mxu0 0.0
        %2688 = vmatprep.subr.mxu0 0.0
        %2689 = vmatpush1.msra.mxu0 0.0
        %2690 = vmatprep.subr.mxu0 0.0
        %2691 = vmatpush1.msra.mxu0 0.0
        %2692 = vmatprep.subr.mxu0 0.0
        %2693 = vmatpush1.msra.mxu0 0.0
        %2694 = vmatprep.subr.mxu0 0.0
        %2695 = vmatpush1.msra.mxu0 0.0
        %2696 = vmatprep.subr.mxu0 0.0
        %2697 = vmatpush1.msra.mxu0 0.0
        %2698 = vmatprep.subr.mxu0 0.0
        %2699 = vmatpush1.msra.mxu0 0.0
        %2700 = vmatprep.subr.mxu0 0.0
        %2701 = vmatpush1.msra.mxu0 0.0
        %2702 = vmatprep.subr.mxu0 0.0
        %2703 = vmatpush1.msra.mxu0 0.0
        %2704 = vmatprep.subr.mxu0 0.0
        %2705 = vmatpush1.msra.mxu0 0.0
        %2706 = vmatprep.subr.mxu0 0.0
        %2707 = vmatpush1.msra.mxu0 0.0
        %2708 = vmatprep.subr.mxu0 0.0
        %2709 = vmatpush1.msra.mxu0 0.0
        %2710 = vmatprep.subr.mxu0 0.0
        %2711 = vmatpush1.msra.mxu0 0.0
        %2712 = vmatprep.subr.mxu0 0.0
        %2713 = vmatpush1.msra.mxu0 0.0
        %2714 = vmatprep.subr.mxu0 0.0
        %2715 = vmatpush1.msra.mxu0 0.0
        %2716 = vmatprep.subr.mxu0 0.0
        %2717 = vmatpush1.msra.mxu0 0.0
        %2718 = vmatprep.subr.mxu0 0.0
        %2719 = vmatpush1.msra.mxu0 0.0
        %2720 = vmatprep.subr.mxu0 0.0
        %2721 = vmatpush1.msra.mxu0 0.0
        %2722 = vmatprep.subr.mxu0 0.0
        %2723 = vmatpush1.msra.mxu0 0.0
        %2724 = vmatprep.subr.mxu0 0.0
        %2725 = vmatpush1.msra.mxu0 0.0
        %2726 = vmatprep.subr.mxu0 0.0
        %2727 = vmatpush1.msra.mxu0 0.0
        %2728 = vmatprep.subr.mxu0 0.0
        %2729 = vmatpush1.msra.mxu0 0.0
        %2730 = vmatprep.subr.mxu0 0.0
        %2731 = vmatpush1.msra.mxu0 0.0
        %2732 = vmatprep.subr.mxu0 0.0
        %2733 = vmatpush1.msra.mxu0 0.0
        %2734 = vmatprep.mubr.f32.mxu0 0.0
        %2735 = vmatmul.mubr.f32.gmra.mrb[0].mxu0 %v2668
        %v2736 = vpop.f32.mrb[0].mxu0
        %v2737 = vadd.f32 %v2664, %v2736
        %v2738 = vpop.f32.mrb[0].mxu0
        %2739 = vdwg.mxu0
        %v2740 = vadd.f32 %v2737, %v2565
        %v2741 = vld [vmem:[%s16] sm:$0x1]
        %v2742 = vld [vmem:[%s17] sm:$0x1]
        %v2743 = vsel %vm655, %v2740, 0.0
        %2744 = vadd.xlane.f32.xlu0 %v2743
        %v2745 = vpop.xlane.xlu0 %2744
        %v2746 = vmul.f32 %v2745, %v1551
        %v2747 = vsub.f32 %v2740, %v2746
        %v2748 = vmul.f32 %v2747, %v2747
        %v2749 = vsel %vm655, %v2748, 0.0
        %2750 = vadd.xlane.f32.xlu0 %v2749
        %v2751 = vpop.xlane.xlu0 %2750
        %v2752 = vmul.f32 %v2751, %v1551
        %v2753 = vadd.f32 %v2752, 1e-05
        %v2754 = vrsqrt.pop %v2753
        %v2755 = vmul.f32 %v2747, %v2754
        %v2757 = vlaneseq
        %v2758 = vshrl.u32 %v2757, 7
        %v2759 = vsub.s32 0, %v2758
        %v2760 = vrot.slane %v2741, %v2759
        %v2762 = vmul.f32 %v2755, %v2760
        %v2764 = vlaneseq
        %v2765 = vshrl.u32 %v2764, 7
        %v2766 = vsub.s32 0, %v2765
        %v2767 = vrot.slane %v2742, %v2766
        %v2769 = vadd.f32 %v2762, %v2767
        %v2771 = vrot.slane %v2769, 1
        %2772 = vrot.lane.b32.xlu0 %v2771, 32
        %v2773 = vpop.permute.xlu0 %2772
        %v2775 = vrot.slane %v2769, 2
        %2776 = vrot.lane.b32.xlu0 %v2775, 64
        %v2777 = vpop.permute.xlu0 %2776
        %v2779 = vrot.slane %v2769, 3
        %2780 = vrot.lane.b32.xlu0 %v2779, 96
        %v2781 = vpop.permute.xlu0 %2780
        %v2783 = vrot.slane %v2769, 4
        %v2785 = vrot.slane %v2769, 5
        %2786 = vrot.lane.b32.xlu0 %v2785, 32
        %v2787 = vpop.permute.xlu0 %2786
        %v2789 = vrot.slane %v2769, 6
        %2790 = vrot.lane.b32.xlu0 %v2789, 64
        %v2791 = vpop.permute.xlu0 %2790
        %v2793 = vrot.slane %v2769, 7
        %2794 = vrot.lane.b32.xlu0 %v2793, 96
        %v2795 = vpop.permute.xlu0 %2794
        %v2797 = vsel %vm655, %v2769, %v2773
        %v2798 = vsel %vm2666, %v2797, %v2777
        %vm2799 = vcmask 785408
        %v2800 = vsel %vm2799, %v2798, %v2781
        %v2801 = vsel %vm655, %v2783, %v2787
        %v2802 = vsel %vm2666, %v2801, %v2791
        %v2803 = vsel %vm2799, %v2802, %v2795
        %v2806 = vcombine.low %v2800, %v2803
        %v2808 = vunpack.c.l.s4 1966171168
        %v2809 = vunpack.c.0.s8 %v2808
        %v2810 = vlaneseq
        %v2811 = vshrl.u32 %v2810, 7
        %v2812 = vsub.s32 %v2809, %v2811
        %v2813 = vrot.slane %v2806, %v2812
        %v2815 = vunpack.c.l.s4 1966171168
        %v2816 = vunpack.c.0.s8 %v2815
        %v2817 = vlaneseq
        %v2818 = vshrl.u32 %v2817, 7
        %v2819 = vsub.s32 %v2816, %v2818
        %v2820 = vrot.slane %v2813, %v2819
        %v2822 = vlaneseq
        %vm2823 = vcmp.ge.s32.totalorder %v2822, 0
        %vm2824 = vcmp.lt.s32.totalorder %v2822, 256
        %vm2825 = vmand %vm2823, %vm2824
        %2826 = vst.msk [vmem:[%s648] sm:$0x3] %vm2825, %v2820
        %s2827 = sand.u32 %s418, 1
        %s2828 = scalar_lea.sflag [#allocation11], %s2827
        %s2829 = sand.u32 %s418, 1
        %s2830 = smul.addr %s2829, 2
        %s2831 = scalar_lea.vmem [#allocation18], %s2830
        // Predicated region
        $region109: #{tpu_custom_call.1} parent=87 // pred_check
          %p2832 = pneg %p428
        $region110: #{tpu_custom_call.1} parent=87 // pred_check_branch
          %2834 = sbr.rel (%p2832) target = $region112
        $region111: #{tpu_custom_call.1} parent=87 // pred_region
          %s2836 = ssub.s32 32, 32
          %2837 = vsyncadd %s2828, %s2836
          %s2838 = smul.addr %s43, 2
          %s2839 = smul.addr %s2838, 16
          %s2840 = scalar_lea.hbm %s18, %s2839
          %s2842 = sshll.u32 %s2831, 4
          %s2843 = int_to_ptr.vmem [resolvable:$true] %s2842
          %2845 = dma.vmem_to_hbm [thread:$0]  %s2843, 32, %s2840, %s2828
        $region112: #{tpu_custom_call.1} parent=87 // pred_fallthru
          _
      $region88: #{tpu_custom_call.1} parent=5 // pred_fallthru
        _
      %p2846 = scmp.le.s32.totalorder 2, %s38
      // Predicated region
      $region113: #{tpu_custom_call.1} parent=5 // pred_check
        %p2847 = pneg %p2846
      $region114: #{tpu_custom_call.1} parent=5 // pred_check_branch
        %2849 = sbr.rel (%p2847) target = $region116
      $region115: #{tpu_custom_call.1} parent=5 // pred_region
        %s2850 = ssub.s32 %s38, 2
        // Predicated region
        $region117: #{tpu_custom_call.1} parent=115 // pred_check
          %p2851 = pneg %p434
        $region118: #{tpu_custom_call.1} parent=115 // pred_check_branch
          %2853 = sbr.rel (%p2851) target = $region120
        $region119: #{tpu_custom_call.1} parent=115 // pred_region
          %s2854 = sand.u32 %s419, 1
          %s2855 = scalar_lea.sflag [#allocation11], %s2854
          %s2856 = sand.u32 %s419, 1
          %s2857 = smul.addr %s2856, 2
          %s2858 = scalar_lea.vmem [#allocation18], %s2857
          %2859 = dma.done %s2855, 32
        $region120: #{tpu_custom_call.1} parent=115 // pred_fallthru
          _
      $region116: #{tpu_custom_call.1} parent=5 // pred_fallthru
        _
    $region6: #{tpu_custom_call.1} parent=1 // loop_footer
      %s42 = sadd.s32 1, %s38
    $region7: #{tpu_custom_call.1} parent=1 // loop_footer_branch
      %37 = sbr.rel target = $region3
    $region8: #{tpu_custom_call.1} parent=1 // loop_exit
      _
    %2860 = vsyncpa [#allocation10], 1
    %s2861 = scalar_lea.sflag [#allocation10], 1
    %2862 = vsyncpa %s2861, 1
    %2863 = vsyncpa [#allocation13], 1
    %s2864 = scalar_lea.sflag [#allocation13], 1
    %2865 = vsyncpa %s2864, 1
    %2866 = vsyncpa [#allocation16], 1
    %2867 = vsyncpa [#allocation11], 1
    %s2868 = scalar_lea.sflag [#allocation11], 1
    %2869 = vsyncpa %s2868, 1

</llo_original>
